<compile_context>
chip_gen: v6e
topology: v6e:2x2x1
jax: 0.10.0
libtpu: 0.0.40
codegen_flags: <defaults>
</compile_context>

<pallas_src>
import math
import numpy as np
import jax
import jax.numpy as jnp
from jax.experimental import pallas as pl
from jax.experimental.pallas import tpu as pltpu

# ---- small config consistent with ModelConfig / DiffusionModel -------------
D_MODEL = 32
N_LAYERS = 2
D_STATE = 16
D_CONV = 4
EXPAND = 2
D_INNER = EXPAND * D_MODEL                 # 64
IMAGE_SIZE = 8
OUTPUT_DIM = 3 * IMAGE_SIZE * IMAGE_SIZE   # 192
TIME_EMB_DIM = 4 * D_MODEL                 # 128
DT_MIN, DT_MAX, DT_FLOOR, DT_SCALE = 1e-3, 0.1, 1e-4, 1.0
LN_EPS = 1e-5
BATCH = 2
SEQ_LEN = 8
ROWS = SEQ_LEN * BATCH                     # 16 rows, time-major: r = t*B + b
CONV_PAD = 8                               # one full sublane tile of causal zeros


def _silu(x):
    return x * jax.nn.sigmoid(x)


# ----------------------------- fused kernel ---------------------------------

def fused_diffusion_kernel(
    latent_ref, noise_ref, t_ref, freqs_ref,
    w_t1_ref, b_t1_ref, w_t2_ref, b_t2_ref,
    w_lat_ref, w_noise_ref, b_fuse_ref,
    w_in_ref, b_in_ref, w_conv_ref, b_conv_ref,
    w_dtx_ref, b_dtx_ref, a_neg_ref, d_vec_ref, w_out_ref,
    w_head_ref, b_head_ref,
    out_ref,
    conv_scr,    # VMEM (CONV_PAD + ROWS, d_inner)      conv staging (causal pad)
    decay_scr,   # VMEM (L, B, d_state, d_inner)        staged exp(A*dt)
    bbc_scr,     # VMEM (L, B, d_state, d_inner)        staged lane-broadcast B
    hist_scr,    # VMEM (L, B, d_state, d_inner)        per-step state history
):
    B, L, D = BATCH, SEQ_LEN, D_MODEL
    R = ROWS

    # ---- prologue: sinusoidal timestep embedding computed in-kernel --------
    args = t_ref[...] * freqs_ref[...]                                # (B,1)*(1,D)->(B,D)
    col = jax.lax.broadcasted_iota(jnp.int32, (1, D), 1)
    t_raw = jnp.where(col < D // 2, jnp.sin(args), jnp.cos(args))     # concat(sin,cos)

    # time_embed MLP
    h_t = _silu(jnp.dot(t_raw, w_t1_ref[...],
                        preferred_element_type=jnp.float32) + b_t1_ref[...])
    t_emb = jnp.dot(h_t, w_t2_ref[...],
                    preferred_element_type=jnp.float32) + b_t2_ref[...]   # (B, D)

    # fused input projection: concat([latent, noise_seq]) @ W + b
    #   == latent @ W_lat + noise @ W_noise + b   (noise part constant over t)
    xl = jnp.dot(latent_ref[...], w_lat_ref[...],
                 preferred_element_type=jnp.float32)                  # (R, D), t-major
    xn = jnp.dot(noise_ref[...], w_noise_ref[...],
                 preferred_element_type=jnp.float32)                  # (B, D)
    add_b = xn + t_emb + b_fuse_ref[...]                              # (B, D)
    x = xl + jnp.broadcast_to(add_b.reshape(1, B, D), (L, B, D)).reshape(R, D)

    # causal zero rows for the conv staging scratch (written once)
    conv_scr[0:CONV_PAD, :] = jnp.zeros((CONV_PAD, D_INNER), jnp.float32)

    # ---- N_LAYERS MambaBlocks (LayerNorm -> SelectiveSSM -> residual) ------
    for layer in range(N_LAYERS):
        # LayerNorm (eps=1e-5); affine gamma/beta folded into w_in/b_in host-side.
        mu = jnp.mean(x, axis=-1, keepdims=True)
        var = jnp.mean((x - mu) ** 2, axis=-1, keepdims=True)
        xhat = (x - mu) * jax.lax.rsqrt(var + LN_EPS)

        # in_proj (LN affine folded in) -> split into x / z
        xz = jnp.dot(xhat, w_in_ref[layer],
                     preferred_element_type=jnp.float32) + b_in_ref[layer]
        xp = xz[:, :D_INNER]                                          # (R, d_inner)
        zp = xz[:, D_INNER:]

        # depthwise causal conv1d (padding=K-1, truncated to L) + bias + SiLU.
        # Shifts are static shifted slice loads from a zero-padded VMEM scratch
        # (no MXU shift-matmuls).  Shift step is s*B in time-major layout, so it
        # never crosses a batch boundary; t-s < 0 falls into the zero-pad rows.
        conv_scr[CONV_PAD:CONV_PAD + R, :] = xp
        w_conv_l = w_conv_ref[layer]                                  # (K, d_inner)
        conv = xp * w_conv_l[D_CONV - 1] + b_conv_ref[layer]
        for s in range(1, D_CONV):
            shifted = conv_scr[CONV_PAD - s * B:CONV_PAD - s * B + R, :]
            conv = conv + shifted * w_conv_l[D_CONV - 1 - s]
        xs = _silu(conv)                                              # (R, d_inner)

        # fused dt_proj + x_proj: one (R,64)@(64,80) matmul, then column split
        dtx = jnp.dot(xs, w_dtx_ref[layer],
                      preferred_element_type=jnp.float32) + b_dtx_ref[layer]
        dt = jax.nn.softplus(dtx[:, :D_INNER])                        # (R, d_inner)
        b_state = dtx[:, D_INNER:]                                    # (R, d_state)

        # Vectorized pre-pass (off the serial chain): decay = exp(A*dt) and the
        # lane-broadcast B-state are staged into VMEM scratch so they are never
        # held live in vregs across the unrolled scan.
        a_neg = a_neg_ref[layer]                                      # (d_state, d_inner)
        decay_scr[...] = jnp.exp(
            a_neg[None, None, :, :] * dt.reshape(L, B, 1, D_INNER))   # (L,B,n,c)
        bbc_scr[...] = jnp.broadcast_to(
            b_state.reshape(L, B, D_STATE, 1), (L, B, D_STATE, D_INNER))

        # Serial selective scan: L=8 steps, both batch elements in lockstep.
        # Per-step body = 2 VPU ops + one scratch store; the d_state reduction
        # is deferred out of the loop.
        hs = jnp.zeros((B, D_STATE, D_INNER), jnp.float32)
        for t in range(L):                       # fully unrolled straight-line code
            hs = hs * decay_scr[t, :, :, :] + bbc_scr[t, :, :, :]
            hist_scr[t, :, :, :] = hs

        # Deferred cross-sublane reduction over d_state in one vectorized pass.
        y_ssm = (jnp.sum(hist_scr[...], axis=2).reshape(R, D_INNER)
                 + d_vec_ref[layer] * xs)
        y = y_ssm * _silu(zp)                                         # (R, d_inner)
        x = x + jnp.dot(y, w_out_ref[layer],
                        preferred_element_type=jnp.float32)           # residual

    # ---- head: fold mean over L into the output projection (exact) --------
    x_mean = jnp.mean(x.reshape(L, B, D), axis=0)                     # (B, D)
    out_ref[...] = (jnp.dot(x_mean, w_head_ref[...],
                            preferred_element_type=jnp.float32)
                    + b_head_ref[...])                                # (B, OUTPUT_DIM)


# ------------------------------- wrapper -------------------------------------

def diffusion_forward(params, latent, noise, timesteps):
    B, L, D = latent.shape
    # time-major row layout (r = t*B + b) for the lockstep scan; tiny transpose
    latent_t = jnp.transpose(latent, (1, 0, 2)).reshape(L * B, D)
    flat_noise = noise.reshape(B, -1)                                 # (B, 3*H*W)
    t_f32 = timesteps.astype(jnp.float32).reshape(B, 1)

    out = pl.pallas_call(
        fused_diffusion_kernel,
        out_shape=jax.ShapeDtypeStruct((B, OUTPUT_DIM), jnp.float32),
        scratch_shapes=[
            pltpu.VMEM((CONV_PAD + L * B, D_INNER), jnp.float32),     # conv staging
            pltpu.VMEM((L, B, D_STATE, D_INNER), jnp.float32),        # decay
            pltpu.VMEM((L, B, D_STATE, D_INNER), jnp.float32),        # broadcast B
            pltpu.VMEM((L, B, D_STATE, D_INNER), jnp.float32),        # state history
        ],
    )(latent_t, flat_noise, t_f32, params["freqs"],
      params["w_t1"], params["b_t1"], params["w_t2"], params["b_t2"],
      params["w_lat"], params["w_noise"], params["b_fuse"],
      params["w_in_g"], params["b_in"],
      params["w_conv"], params["b_conv"],
      params["w_dtx"], params["b_dtx"],
      params["a_neg_t"], params["d_vec"], params["w_out"],
      params["w_outproj"], params["b_outproj"])
    return out.reshape(B, 3, IMAGE_SIZE, IMAGE_SIZE)


# ----------------------------- param init ------------------------------------

def init_params(key):
    ks = iter(jax.random.split(key, 32))
    std = 0.05

    def rnd(shape):
        return (std * jax.random.normal(next(ks), shape)).astype(jnp.float32)

    # sinusoidal-embedding frequencies, duplicated so col<half -> sin, else cos
    half = D_MODEL // 2
    scale = math.log(10000.0) / (half - 1)
    freqs_half = np.exp(np.arange(half, dtype=np.float32) * -scale)
    freqs = jnp.asarray(np.concatenate([freqs_half, freqs_half])[None, :],
                        dtype=jnp.float32)                            # (1, D_MODEL)

    params = {
        "freqs": freqs,
        # time_embed: Linear(d_model, 4*d_model) -> SiLU -> Linear(4*d_model, d_model)
        "w_t1": rnd((D_MODEL, TIME_EMB_DIM)), "b_t1": rnd((1, TIME_EMB_DIM)),
        "w_t2": rnd((TIME_EMB_DIM, D_MODEL)), "b_t2": rnd((1, D_MODEL)),
        # per-forward nn.Linear(d_model + output_dim, d_model): deterministic here
        "w_lat": rnd((D_MODEL, D_MODEL)),
        "w_noise": rnd((OUTPUT_DIM, D_MODEL)),
        "b_fuse": rnd((1, D_MODEL)),
        # output_proj: Linear(d_model, output_dim)
        "w_outproj": rnd((D_MODEL, OUTPUT_DIM)), "b_outproj": rnd((1, OUTPUT_DIM)),
    }

    # SelectiveSSM._initialize_parameters (verified against the reference):
    #   A_log = -exp(log(k*pi) + dt_min), k = 1..d_state (same row per channel);
    #   forward uses A = -exp(A_log)  =>  A = -exp(-k*pi*e^{dt_min}).
    a_real = jnp.arange(1, D_STATE + 1, dtype=jnp.float32) * jnp.pi
    a_log_row = -jnp.exp(jnp.log(a_real) + DT_MIN)        # value stored in A_log
    a_neg_row = -jnp.exp(a_log_row)                       # A used in forward
    a_neg_t = jnp.broadcast_to(a_neg_row[:, None],
                               (D_STATE, D_INNER)).astype(jnp.float32)  # (n, c)
    #   D = ones with D[::2] = -1 (per the reference init)
    d_vec = jnp.ones((1, D_INNER), jnp.float32).at[0, ::2].set(-1.0)

    w_ins, b_ins, w_convs, b_convs = [], [], [], []
    w_dtxs, b_dtxs, a_negs, d_vecs, w_outs = [], [], [], [], []
    for _ in range(N_LAYERS):
        # LayerNorm affine folded into in_proj (exact: (x*g+b)@W = x@(diag(g)W)+b@W)
        gamma = jnp.ones((D_MODEL,), jnp.float32)
        beta = jnp.zeros((D_MODEL,), jnp.float32)
        w_in = rnd((D_MODEL, 2 * D_INNER))
        w_ins.append(gamma[:, None] * w_in)
        b_ins.append((beta @ w_in)[None, :])

        w_convs.append(rnd((D_CONV, D_INNER)))            # depthwise taps x channels
        b_convs.append(rnd((1, D_INNER)))

        # dt_proj bias: inverse softplus of dt ~ LogUniform[dt_min, dt_max]
        u = jax.random.uniform(next(ks), (D_INNER,), dtype=jnp.float32)
        dt = jnp.exp(u * (math.log(DT_MAX) - math.log(DT_MIN)) + math.log(DT_MIN))
        dt = jnp.maximum(dt, DT_FLOOR) * DT_SCALE
        b_dt = dt + jnp.log(-jnp.expm1(-dt))              # inverse softplus

        # dt_proj and x_proj fused into one (d_inner, d_inner + d_state) weight
        w_dt = rnd((D_INNER, D_INNER))
        w_x = rnd((D_INNER, D_STATE))
        w_dtxs.append(jnp.concatenate([w_dt, w_x], axis=1))
        b_dtxs.append(jnp.concatenate(
            [b_dt, jnp.zeros((D_STATE,), jnp.float32)])[None, :])

        a_negs.append(a_neg_t)
        d_vecs.append(d_vec)
        w_outs.append(rnd((D_INNER, D_MODEL)))

    params.update({
        "w_in_g": jnp.stack(w_ins), "b_in": jnp.stack(b_ins),
        "w_conv": jnp.stack(w_convs), "b_conv": jnp.stack(b_convs),
        "w_dtx": jnp.stack(w_dtxs), "b_dtx": jnp.stack(b_dtxs),
        "a_neg_t": jnp.stack(a_negs), "d_vec": jnp.stack(d_vecs),
        "w_out": jnp.stack(w_outs),
    })
    return params


# ------------------------------- main -----------------------------------------

if __name__ == "__main__":
    key = jax.random.PRNGKey(0)
    k_param, k_lat, k_noise = jax.random.split(key, 3)

    params = init_params(k_param)
    latent = jax.random.normal(k_lat, (BATCH, SEQ_LEN, D_MODEL), dtype=jnp.float32)
    noise = jax.random.normal(k_noise, (BATCH, 3, IMAGE_SIZE, IMAGE_SIZE),
                              dtype=jnp.float32)
    timesteps = jnp.array([7, 423], dtype=jnp.int32)

    fwd = jax.jit(diffusion_forward)
    out = jax.block_until_ready(fwd(params, latent, noise, timesteps))

    assert out.shape == (BATCH, 3, IMAGE_SIZE, IMAGE_SIZE)
    assert bool(jnp.all(jnp.isfinite(out)))
    # TODO(synk): nn.Dropout is a no-op here (drop_rate=0.0) and is not implemented.
    # TODO(synk): the reference builds a fresh randomly-initialized nn.Linear per
    # forward for the latent/noise fusion; replaced by fixed deterministic weights.
    print("KERNEL_OK")
</pallas_src>

<mosaic_0001>
module attributes {stable_mosaic.version = 11 : i64} {
  func.func @fused_diffusion_kernel(%arg0: memref<16x32xf32, #tpu.memory_space<vmem>>, %arg1: memref<2x192xf32, #tpu.memory_space<vmem>>, %arg2: memref<2x1xf32, #tpu.memory_space<vmem>>, %arg3: memref<1x32xf32, #tpu.memory_space<vmem>>, %arg4: memref<32x128xf32, #tpu.memory_space<vmem>>, %arg5: memref<1x128xf32, #tpu.memory_space<vmem>>, %arg6: memref<128x32xf32, #tpu.memory_space<vmem>>, %arg7: memref<1x32xf32, #tpu.memory_space<vmem>>, %arg8: memref<32x32xf32, #tpu.memory_space<vmem>>, %arg9: memref<192x32xf32, #tpu.memory_space<vmem>>, %arg10: memref<1x32xf32, #tpu.memory_space<vmem>>, %arg11: memref<2x32x128xf32, #tpu.memory_space<vmem>>, %arg12: memref<2x1x128xf32, #tpu.memory_space<vmem>>, %arg13: memref<2x4x64xf32, #tpu.memory_space<vmem>>, %arg14: memref<2x1x64xf32, #tpu.memory_space<vmem>>, %arg15: memref<2x64x80xf32, #tpu.memory_space<vmem>>, %arg16: memref<2x1x80xf32, #tpu.memory_space<vmem>>, %arg17: memref<2x16x64xf32, #tpu.memory_space<vmem>>, %arg18: memref<2x1x64xf32, #tpu.memory_space<vmem>>, %arg19: memref<2x64x32xf32, #tpu.memory_space<vmem>>, %arg20: memref<32x192xf32, #tpu.memory_space<vmem>>, %arg21: memref<1x192xf32, #tpu.memory_space<vmem>>, %arg22: memref<2x192xf32, #tpu.memory_space<vmem>>, %arg23: memref<24x64xf32, #tpu.memory_space<vmem>>, %arg24: memref<8x2x16x64xf32, #tpu.memory_space<vmem>>, %arg25: memref<8x2x16x64xf32, #tpu.memory_space<vmem>>, %arg26: memref<8x2x16x64xf32, #tpu.memory_space<vmem>>) attributes {dimension_semantics = [], scalar_prefetch = 0 : i64, scratch_operands = 4 : i64, tpu.core_type = #tpu.core_type<tc>} {
    %c0 = arith.constant 0 : index
    %c0_0 = arith.constant 0 : index
    %0 = vector.load %arg2[%c0, %c0_0] : memref<2x1xf32, #tpu.memory_space<vmem>>, vector<2x1xf32>
    %c0_1 = arith.constant 0 : index
    %c0_2 = arith.constant 0 : index
    %1 = vector.load %arg3[%c0_1, %c0_2] : memref<1x32xf32, #tpu.memory_space<vmem>>, vector<1x32xf32>
    %2 = vector.broadcast %0 : vector<2x1xf32> to vector<2x32xf32>
    %3 = vector.broadcast %1 : vector<1x32xf32> to vector<2x32xf32>
    %4 = arith.mulf %2, %3 : vector<2x32xf32>
    %5 = tpu.iota {dimensions = array<i32: 1>} : vector<1x32xi32>
    %c16_i32 = arith.constant 16 : i32
    %6 = vector.broadcast %c16_i32 : i32 to vector<1x32xi32>
    %7 = arith.cmpi slt, %5, %6 : vector<1x32xi32>
    %8 = math.sin %4 : vector<2x32xf32>
    %9 = math.cos %4 : vector<2x32xf32>
    %10 = vector.shape_cast %7 : vector<1x32xi1> to vector<1x32xi1>
    %11 = vector.broadcast %10 : vector<1x32xi1> to vector<2x32xi1>
    %12 = arith.select %11, %8, %9 : vector<2x32xi1>, vector<2x32xf32>
    %c0_3 = arith.constant 0 : index
    %c0_4 = arith.constant 0 : index
    %13 = vector.load %arg4[%c0_3, %c0_4] : memref<32x128xf32, #tpu.memory_space<vmem>>, vector<32x128xf32>
    %cst = arith.constant dense<0.000000e+00> : vector<2x128xf32>
    %14 = tpu.matmul %12, %13, %cst {dimension_numbers = #tpu.dot_dimension_numbers<[1], [0], [0], [1], [0, 0, 1, 1], [], []>} : vector<2x32xf32>, vector<32x128xf32>, vector<2x128xf32> -> vector<2x128xf32>
    %c0_5 = arith.constant 0 : index
    %c0_6 = arith.constant 0 : index
    %15 = vector.load %arg5[%c0_5, %c0_6] : memref<1x128xf32, #tpu.memory_space<vmem>>, vector<1x128xf32>
    %16 = vector.broadcast %15 : vector<1x128xf32> to vector<2x128xf32>
    %17 = arith.addf %14, %16 : vector<2x128xf32>
    %18 = arith.negf %17 : vector<2x128xf32>
    %19 = math.exp %18 : vector<2x128xf32>
    %cst_7 = arith.constant 1.000000e+00 : f32
    %20 = vector.broadcast %cst_7 : f32 to vector<2x128xf32>
    %21 = arith.addf %20, %19 : vector<2x128xf32>
    %22 = arith.divf %20, %21 : vector<2x128xf32>
    %23 = arith.mulf %17, %22 : vector<2x128xf32>
    %c0_8 = arith.constant 0 : index
    %c0_9 = arith.constant 0 : index
    %24 = vector.load %arg6[%c0_8, %c0_9] : memref<128x32xf32, #tpu.memory_space<vmem>>, vector<128x32xf32>
    %cst_10 = arith.constant dense<0.000000e+00> : vector<2x32xf32>
    %25 = tpu.matmul %23, %24, %cst_10 {dimension_numbers = #tpu.dot_dimension_numbers<[1], [0], [0], [1], [0, 0, 1, 1], [], []>} : vector<2x128xf32>, vector<128x32xf32>, vector<2x32xf32> -> vector<2x32xf32>
    %c0_11 = arith.constant 0 : index
    %c0_12 = arith.constant 0 : index
    %26 = vector.load %arg7[%c0_11, %c0_12] : memref<1x32xf32, #tpu.memory_space<vmem>>, vector<1x32xf32>
    %27 = vector.broadcast %26 : vector<1x32xf32> to vector<2x32xf32>
    %28 = arith.addf %25, %27 : vector<2x32xf32>
    %c0_13 = arith.constant 0 : index
    %c0_14 = arith.constant 0 : index
    %29 = vector.load %arg0[%c0_13, %c0_14] : memref<16x32xf32, #tpu.memory_space<vmem>>, vector<16x32xf32>
    %c0_15 = arith.constant 0 : index
    %c0_16 = arith.constant 0 : index
    %30 = vector.load %arg8[%c0_15, %c0_16] : memref<32x32xf32, #tpu.memory_space<vmem>>, vector<32x32xf32>
    %cst_17 = arith.constant dense<0.000000e+00> : vector<16x32xf32>
    %31 = tpu.matmul %29, %30, %cst_17 {dimension_numbers = #tpu.dot_dimension_numbers<[1], [0], [0], [1], [0, 0, 1, 1], [], []>} : vector<16x32xf32>, vector<32x32xf32>, vector<16x32xf32> -> vector<16x32xf32>
    %c0_18 = arith.constant 0 : index
    %c0_19 = arith.constant 0 : index
    %32 = vector.load %arg1[%c0_18, %c0_19] : memref<2x192xf32, #tpu.memory_space<vmem>>, vector<2x192xf32>
    %c0_20 = arith.constant 0 : index
    %c0_21 = arith.constant 0 : index
    %33 = vector.load %arg9[%c0_20, %c0_21] : memref<192x32xf32, #tpu.memory_space<vmem>>, vector<192x32xf32>
    %cst_22 = arith.constant dense<0.000000e+00> : vector<2x32xf32>
    %34 = tpu.matmul %32, %33, %cst_22 {dimension_numbers = #tpu.dot_dimension_numbers<[1], [0], [0], [1], [0, 0, 1, 1], [], []>} : vector<2x192xf32>, vector<192x32xf32>, vector<2x32xf32> -> vector<2x32xf32>
    %35 = arith.addf %34, %28 : vector<2x32xf32>
    %c0_23 = arith.constant 0 : index
    %c0_24 = arith.constant 0 : index
    %36 = vector.load %arg10[%c0_23, %c0_24] : memref<1x32xf32, #tpu.memory_space<vmem>>, vector<1x32xf32>
    %37 = vector.broadcast %36 : vector<1x32xf32> to vector<2x32xf32>
    %38 = arith.addf %35, %37 : vector<2x32xf32>
    %39 = vector.shape_cast %38 : vector<2x32xf32> to vector<1x2x32xf32>
    %40 = vector.shape_cast %39 : vector<1x2x32xf32> to vector<1x2x32xf32>
    %41 = vector.broadcast %40 : vector<1x2x32xf32> to vector<8x2x32xf32>
    %42 = vector.shape_cast %41 : vector<8x2x32xf32> to vector<16x32xf32>
    %43 = arith.addf %31, %42 : vector<16x32xf32>
    %cst_25 = arith.constant 0.000000e+00 : f32
    %44 = vector.broadcast %cst_25 : f32 to vector<8x64xf32>
    %c0_26 = arith.constant 0 : index
    %c0_27 = arith.constant 0 : index
    %45 = vector.load %arg23[%c0_26, %c0_27] : memref<24x64xf32, #tpu.memory_space<vmem>>, vector<8x64xf32>
    tpu.vector_store %arg23[%c0_26, %c0_27], %44 {strides = array<i32>} : memref<24x64xf32, #tpu.memory_space<vmem>>, vector<8x64xf32>,
    %cst_28 = arith.constant dense<0.000000e+00> : vector<16xf32>
    %46 = vector.multi_reduction <add>, %43, %cst_28 [1] : vector<16x32xf32> to vector<16xf32>
    %47 = vector.shape_cast %46 : vector<16xf32> to vector<16x1xf32>
    %cst_29 = arith.constant 3.200000e+01 : f32
    %48 = vector.broadcast %cst_29 : f32 to vector<16x1xf32>
    %49 = arith.divf %47, %48 : vector<16x1xf32>
    %50 = vector.broadcast %49 : vector<16x1xf32> to vector<16x32xf32>
    %51 = arith.subf %43, %50 : vector<16x32xf32>
    %52 = arith.mulf %51, %51 : vector<16x32xf32>
    %cst_30 = arith.constant dense<0.000000e+00> : vector<16xf32>
    %53 = vector.multi_reduction <add>, %52, %cst_30 [1] : vector<16x32xf32> to vector<16xf32>
    %54 = vector.shape_cast %53 : vector<16xf32> to vector<16x1xf32>
    %cst_31 = arith.constant 3.200000e+01 : f32
    %55 = vector.broadcast %cst_31 : f32 to vector<16x1xf32>
    %56 = arith.divf %54, %55 : vector<16x1xf32>
    %57 = vector.broadcast %49 : vector<16x1xf32> to vector<16x32xf32>
    %58 = arith.subf %43, %57 : vector<16x32xf32>
    %cst_32 = arith.constant 9.99999974E-6 : f32
    %59 = vector.broadcast %cst_32 : f32 to vector<16x1xf32>
    %60 = arith.addf %56, %59 : vector<16x1xf32>
    %61 = math.rsqrt %60 : vector<16x1xf32>
    %62 = vector.broadcast %61 : vector<16x1xf32> to vector<16x32xf32>
    %63 = arith.mulf %58, %62 : vector<16x32xf32>
    %c0_33 = arith.constant 0 : index
    %c0_34 = arith.constant 0 : index
    %c0_35 = arith.constant 0 : index
    %64 = vector.load %arg11[%c0_33, %c0_34, %c0_35] : memref<2x32x128xf32, #tpu.memory_space<vmem>>, vector<1x32x128xf32>
    %65 = vector.shape_cast %64 : vector<1x32x128xf32> to vector<32x128xf32>
    %cst_36 = arith.constant dense<0.000000e+00> : vector<16x128xf32>
    %66 = tpu.matmul %63, %65, %cst_36 {dimension_numbers = #tpu.dot_dimension_numbers<[1], [0], [0], [1], [0, 0, 1, 1], [], []>} : vector<16x32xf32>, vector<32x128xf32>, vector<16x128xf32> -> vector<16x128xf32>
    %c0_37 = arith.constant 0 : index
    %c0_38 = arith.constant 0 : index
    %c0_39 = arith.constant 0 : index
    %67 = vector.load %arg12[%c0_37, %c0_38, %c0_39] : memref<2x1x128xf32, #tpu.memory_space<vmem>>, vector<1x1x128xf32>
    %68 = vector.shape_cast %67 : vector<1x1x128xf32> to vector<1x128xf32>
    %69 = vector.broadcast %68 : vector<1x128xf32> to vector<16x128xf32>
    %70 = arith.addf %66, %69 : vector<16x128xf32>
    %71 = vector.extract_strided_slice %70 {offsets = [0, 0], sizes = [16, 64], strides = [1, 1]} : vector<16x128xf32> to vector<16x64xf32>
    %72 = vector.extract_strided_slice %70 {offsets = [0, 64], sizes = [16, 64], strides = [1, 1]} : vector<16x128xf32> to vector<16x64xf32>
    %c8 = arith.constant 8 : index
    %c0_40 = arith.constant 0 : index
    %73 = vector.load %arg23[%c8, %c0_40] : memref<24x64xf32, #tpu.memory_space<vmem>>, vector<16x64xf32>
    tpu.vector_store %arg23[%c8, %c0_40], %71 {strides = array<i32>} : memref<24x64xf32, #tpu.memory_space<vmem>>, vector<16x64xf32>,
    %c0_41 = arith.constant 0 : index
    %c0_42 = arith.constant 0 : index
    %c0_43 = arith.constant 0 : index
    %74 = vector.load %arg13[%c0_41, %c0_42, %c0_43] : memref<2x4x64xf32, #tpu.memory_space<vmem>>, vector<1x4x64xf32>
    %75 = vector.shape_cast %74 : vector<1x4x64xf32> to vector<4x64xf32>
    %76 = vector.extract_strided_slice %75 {offsets = [3, 0], sizes = [1, 64], strides = [1, 1]} : vector<4x64xf32> to vector<1x64xf32>
    %77 = vector.shape_cast %76 : vector<1x64xf32> to vector<64xf32>
    %78 = vector.shape_cast %77 : vector<64xf32> to vector<1x64xf32>
    %79 = vector.broadcast %78 : vector<1x64xf32> to vector<16x64xf32>
    %80 = arith.mulf %71, %79 : vector<16x64xf32>
    %c0_44 = arith.constant 0 : index
    %c0_45 = arith.constant 0 : index
    %c0_46 = arith.constant 0 : index
    %81 = vector.load %arg14[%c0_44, %c0_45, %c0_46] : memref<2x1x64xf32, #tpu.memory_space<vmem>>, vector<1x1x64xf32>
    %82 = vector.shape_cast %81 : vector<1x1x64xf32> to vector<1x64xf32>
    %83 = vector.broadcast %82 : vector<1x64xf32> to vector<16x64xf32>
    %84 = arith.addf %80, %83 : vector<16x64xf32>
    %c6 = arith.constant 6 : index
    %c0_47 = arith.constant 0 : index
    %85 = vector.load %arg23[%c6, %c0_47] : memref<24x64xf32, #tpu.memory_space<vmem>>, vector<16x64xf32>
    %86 = vector.extract_strided_slice %75 {offsets = [2, 0], sizes = [1, 64], strides = [1, 1]} : vector<4x64xf32> to vector<1x64xf32>
    %87 = vector.shape_cast %86 : vector<1x64xf32> to vector<64xf32>
    %88 = vector.shape_cast %87 : vector<64xf32> to vector<1x64xf32>
    %89 = vector.broadcast %88 : vector<1x64xf32> to vector<16x64xf32>
    %90 = arith.mulf %85, %89 : vector<16x64xf32>
    %91 = arith.addf %84, %90 : vector<16x64xf32>
    %c4 = arith.constant 4 : index
    %c0_48 = arith.constant 0 : index
    %92 = vector.load %arg23[%c4, %c0_48] : memref<24x64xf32, #tpu.memory_space<vmem>>, vector<16x64xf32>
    %93 = vector.extract_strided_slice %75 {offsets = [1, 0], sizes = [1, 64], strides = [1, 1]} : vector<4x64xf32> to vector<1x64xf32>
    %94 = vector.shape_cast %93 : vector<1x64xf32> to vector<64xf32>
    %95 = vector.shape_cast %94 : vector<64xf32> to vector<1x64xf32>
    %96 = vector.broadcast %95 : vector<1x64xf32> to vector<16x64xf32>
    %97 = arith.mulf %92, %96 : vector<16x64xf32>
    %98 = arith.addf %91, %97 : vector<16x64xf32>
    %c2 = arith.constant 2 : index
    %c0_49 = arith.constant 0 : index
    %99 = vector.load %arg23[%c2, %c0_49] : memref<24x64xf32, #tpu.memory_space<vmem>>, vector<16x64xf32>
    %100 = vector.extract_strided_slice %75 {offsets = [0, 0], sizes = [1, 64], strides = [1, 1]} : vector<4x64xf32> to vector<1x64xf32>
    %101 = vector.shape_cast %100 : vector<1x64xf32> to vector<64xf32>
    %102 = vector.shape_cast %101 : vector<64xf32> to vector<1x64xf32>
    %103 = vector.broadcast %102 : vector<1x64xf32> to vector<16x64xf32>
    %104 = arith.mulf %99, %103 : vector<16x64xf32>
    %105 = arith.addf %98, %104 : vector<16x64xf32>
    %106 = arith.negf %105 : vector<16x64xf32>
    %107 = math.exp %106 : vector<16x64xf32>
    %cst_50 = arith.constant 1.000000e+00 : f32
    %108 = vector.broadcast %cst_50 : f32 to vector<16x64xf32>
    %109 = arith.addf %108, %107 : vector<16x64xf32>
    %110 = arith.divf %108, %109 : vector<16x64xf32>
    %111 = arith.mulf %105, %110 : vector<16x64xf32>
    %c0_51 = arith.constant 0 : index
    %c0_52 = arith.constant 0 : index
    %c0_53 = arith.constant 0 : index
    %112 = vector.load %arg15[%c0_51, %c0_52, %c0_53] : memref<2x64x80xf32, #tpu.memory_space<vmem>>, vector<1x64x80xf32>
    %113 = vector.shape_cast %112 : vector<1x64x80xf32> to vector<64x80xf32>
    %cst_54 = arith.constant dense<0.000000e+00> : vector<16x80xf32>
    %114 = tpu.matmul %111, %113, %cst_54 {dimension_numbers = #tpu.dot_dimension_numbers<[1], [0], [0], [1], [0, 0, 1, 1], [], []>} : vector<16x64xf32>, vector<64x80xf32>, vector<16x80xf32> -> vector<16x80xf32>
    %c0_55 = arith.constant 0 : index
    %c0_56 = arith.constant 0 : index
    %c0_57 = arith.constant 0 : index
    %115 = vector.load %arg16[%c0_55, %c0_56, %c0_57] : memref<2x1x80xf32, #tpu.memory_space<vmem>>, vector<1x1x80xf32>
    %116 = vector.shape_cast %115 : vector<1x1x80xf32> to vector<1x80xf32>
    %117 = vector.broadcast %116 : vector<1x80xf32> to vector<16x80xf32>
    %118 = arith.addf %114, %117 : vector<16x80xf32>
    %119 = vector.extract_strided_slice %118 {offsets = [0, 0], sizes = [16, 64], strides = [1, 1]} : vector<16x80xf32> to vector<16x64xf32>
    %cst_58 = arith.constant 0.000000e+00 : f32
    %120 = vector.broadcast %cst_58 : f32 to vector<16x64xf32>
    %121 = arith.maximumf %119, %120 : vector<16x64xf32>
    %122 = vector.broadcast %cst_58 : f32 to vector<16x64xf32>
    %123 = arith.subf %119, %122 : vector<16x64xf32>
    %124 = arith.cmpf one, %123, %123 : vector<16x64xf32>
    %125 = vector.broadcast %cst_58 : f32 to vector<16x64xf32>
    %126 = arith.addf %119, %125 : vector<16x64xf32>
    %127 = math.absf %123 : vector<16x64xf32>
    %cst_59 = arith.constant 0.000000e+00 : f32
    %128 = vector.broadcast %cst_59 : f32 to vector<16x64xf32>
    %129 = arith.subf %128, %127 : vector<16x64xf32>
    %130 = math.exp %129 : vector<16x64xf32>
    %131 = math.log1p %130 : vector<16x64xf32>
    %132 = arith.addf %121, %131 : vector<16x64xf32>
    %133 = arith.select %124, %126, %132 : vector<16x64xi1>, vector<16x64xf32>
    %134 = vector.extract_strided_slice %118 {offsets = [0, 64], sizes = [16, 16], strides = [1, 1]} : vector<16x80xf32> to vector<16x16xf32>
    %c0_60 = arith.constant 0 : index
    %c0_61 = arith.constant 0 : index
    %c0_62 = arith.constant 0 : index
    %135 = vector.load %arg17[%c0_60, %c0_61, %c0_62] : memref<2x16x64xf32, #tpu.memory_space<vmem>>, vector<1x16x64xf32>
    %136 = vector.shape_cast %135 : vector<1x16x64xf32> to vector<16x64xf32>
    %137 = vector.shape_cast %136 : vector<16x64xf32> to vector<1x1x16x64xf32>
    %138 = vector.shape_cast %133 : vector<16x64xf32> to vector<8x2x1x64xf32>
    %139 = vector.broadcast %137 : vector<1x1x16x64xf32> to vector<8x2x16x64xf32>
    %140 = vector.broadcast %138 : vector<8x2x1x64xf32> to vector<8x2x16x64xf32>
    %141 = arith.mulf %139, %140 : vector<8x2x16x64xf32>
    %142 = math.exp %141 : vector<8x2x16x64xf32>
    %c0_63 = arith.constant 0 : index
    %c0_64 = arith.constant 0 : index
    %c0_65 = arith.constant 0 : index
    %c0_66 = arith.constant 0 : index
    %143 = vector.load %arg24[%c0_63, %c0_64, %c0_65, %c0_66] : memref<8x2x16x64xf32, #tpu.memory_space<vmem>>, vector<8x2x16x64xf32>
    tpu.vector_store %arg24[%c0_63, %c0_64, %c0_65, %c0_66], %142 {strides = array<i32>} : memref<8x2x16x64xf32, #tpu.memory_space<vmem>>, vector<8x2x16x64xf32>,
    %144 = vector.shape_cast %134 : vector<16x16xf32> to vector<8x2x16x1xf32>
    %145 = vector.shape_cast %144 : vector<8x2x16x1xf32> to vector<8x2x16x1xf32>
    %146 = vector.broadcast %145 : vector<8x2x16x1xf32> to vector<8x2x16x64xf32>
    %c0_67 = arith.constant 0 : index
    %c0_68 = arith.constant 0 : index
    %c0_69 = arith.constant 0 : index
    %c0_70 = arith.constant 0 : index
    %147 = vector.load %arg25[%c0_67, %c0_68, %c0_69, %c0_70] : memref<8x2x16x64xf32, #tpu.memory_space<vmem>>, vector<8x2x16x64xf32>
    tpu.vector_store %arg25[%c0_67, %c0_68, %c0_69, %c0_70], %146 {strides = array<i32>} : memref<8x2x16x64xf32, #tpu.memory_space<vmem>>, vector<8x2x16x64xf32>,
    %cst_71 = arith.constant 0.000000e+00 : f32
    %148 = vector.broadcast %cst_71 : f32 to vector<2x16x64xf32>
    %c0_72 = arith.constant 0 : index
    %c0_73 = arith.constant 0 : index
    %c0_74 = arith.constant 0 : index
    %c0_75 = arith.constant 0 : index
    %149 = vector.load %arg24[%c0_72, %c0_73, %c0_74, %c0_75] : memref<8x2x16x64xf32, #tpu.memory_space<vmem>>, vector<1x2x16x64xf32>
    %150 = vector.shape_cast %149 : vector<1x2x16x64xf32> to vector<2x16x64xf32>
    %151 = arith.mulf %148, %150 : vector<2x16x64xf32>
    %c0_76 = arith.constant 0 : index
    %c0_77 = arith.constant 0 : index
    %c0_78 = arith.constant 0 : index
    %c0_79 = arith.constant 0 : index
    %152 = vector.load %arg25[%c0_76, %c0_77, %c0_78, %c0_79] : memref<8x2x16x64xf32, #tpu.memory_space<vmem>>, vector<1x2x16x64xf32>
    %153 = vector.shape_cast %152 : vector<1x2x16x64xf32> to vector<2x16x64xf32>
    %154 = arith.addf %151, %153 : vector<2x16x64xf32>
    %c0_80 = arith.constant 0 : index
    %c0_81 = arith.constant 0 : index
    %c0_82 = arith.constant 0 : index
    %c0_83 = arith.constant 0 : index
    %155 = vector.load %arg26[%c0_80, %c0_81, %c0_82, %c0_83] : memref<8x2x16x64xf32, #tpu.memory_space<vmem>>, vector<1x2x16x64xf32>
    %156 = vector.shape_cast %155 : vector<1x2x16x64xf32> to vector<2x16x64xf32>
    %157 = vector.shape_cast %154 : vector<2x16x64xf32> to vector<1x2x16x64xf32>
    tpu.vector_store %arg26[%c0_80, %c0_81, %c0_82, %c0_83], %157 {strides = array<i32>} : memref<8x2x16x64xf32, #tpu.memory_space<vmem>>, vector<1x2x16x64xf32>,
    %c1 = arith.constant 1 : index
    %c0_84 = arith.constant 0 : index
    %c0_85 = arith.constant 0 : index
    %c0_86 = arith.constant 0 : index
    %158 = vector.load %arg24[%c1, %c0_84, %c0_85, %c0_86] : memref<8x2x16x64xf32, #tpu.memory_space<vmem>>, vector<1x2x16x64xf32>
    %159 = vector.shape_cast %158 : vector<1x2x16x64xf32> to vector<2x16x64xf32>
    %160 = arith.mulf %154, %159 : vector<2x16x64xf32>
    %c1_87 = arith.constant 1 : index
    %c0_88 = arith.constant 0 : index
    %c0_89 = arith.constant 0 : index
    %c0_90 = arith.constant 0 : index
    %161 = vector.load %arg25[%c1_87, %c0_88, %c0_89, %c0_90] : memref<8x2x16x64xf32, #tpu.memory_space<vmem>>, vector<1x2x16x64xf32>
    %162 = vector.shape_cast %161 : vector<1x2x16x64xf32> to vector<2x16x64xf32>
    %163 = arith.addf %160, %162 : vector<2x16x64xf32>
    %c1_91 = arith.constant 1 : index
    %c0_92 = arith.constant 0 : index
    %c0_93 = arith.constant 0 : index
    %c0_94 = arith.constant 0 : index
    %164 = vector.load %arg26[%c1_91, %c0_92, %c0_93, %c0_94] : memref<8x2x16x64xf32, #tpu.memory_space<vmem>>, vector<1x2x16x64xf32>
    %165 = vector.shape_cast %164 : vector<1x2x16x64xf32> to vector<2x16x64xf32>
    %166 = vector.shape_cast %163 : vector<2x16x64xf32> to vector<1x2x16x64xf32>
    tpu.vector_store %arg26[%c1_91, %c0_92, %c0_93, %c0_94], %166 {strides = array<i32>} : memref<8x2x16x64xf32, #tpu.memory_space<vmem>>, vector<1x2x16x64xf32>,
    %c2_95 = arith.constant 2 : index
    %c0_96 = arith.constant 0 : index
    %c0_97 = arith.constant 0 : index
    %c0_98 = arith.constant 0 : index
    %167 = vector.load %arg24[%c2_95, %c0_96, %c0_97, %c0_98] : memref<8x2x16x64xf32, #tpu.memory_space<vmem>>, vector<1x2x16x64xf32>
    %168 = vector.shape_cast %167 : vector<1x2x16x64xf32> to vector<2x16x64xf32>
    %169 = arith.mulf %163, %168 : vector<2x16x64xf32>
    %c2_99 = arith.constant 2 : index
    %c0_100 = arith.constant 0 : index
    %c0_101 = arith.constant 0 : index
    %c0_102 = arith.constant 0 : index
    %170 = vector.load %arg25[%c2_99, %c0_100, %c0_101, %c0_102] : memref<8x2x16x64xf32, #tpu.memory_space<vmem>>, vector<1x2x16x64xf32>
    %171 = vector.shape_cast %170 : vector<1x2x16x64xf32> to vector<2x16x64xf32>
    %172 = arith.addf %169, %171 : vector<2x16x64xf32>
    %c2_103 = arith.constant 2 : index
    %c0_104 = arith.constant 0 : index
    %c0_105 = arith.constant 0 : index
    %c0_106 = arith.constant 0 : index
    %173 = vector.load %arg26[%c2_103, %c0_104, %c0_105, %c0_106] : memref<8x2x16x64xf32, #tpu.memory_space<vmem>>, vector<1x2x16x64xf32>
    %174 = vector.shape_cast %173 : vector<1x2x16x64xf32> to vector<2x16x64xf32>
    %175 = vector.shape_cast %172 : vector<2x16x64xf32> to vector<1x2x16x64xf32>
    tpu.vector_store %arg26[%c2_103, %c0_104, %c0_105, %c0_106], %175 {strides = array<i32>} : memref<8x2x16x64xf32, #tpu.memory_space<vmem>>, vector<1x2x16x64xf32>,
    %c3 = arith.constant 3 : index
    %c0_107 = arith.constant 0 : index
    %c0_108 = arith.constant 0 : index
    %c0_109 = arith.constant 0 : index
    %176 = vector.load %arg24[%c3, %c0_107, %c0_108, %c0_109] : memref<8x2x16x64xf32, #tpu.memory_space<vmem>>, vector<1x2x16x64xf32>
    %177 = vector.shape_cast %176 : vector<1x2x16x64xf32> to vector<2x16x64xf32>
    %178 = arith.mulf %172, %177 : vector<2x16x64xf32>
    %c3_110 = arith.constant 3 : index
    %c0_111 = arith.constant 0 : index
    %c0_112 = arith.constant 0 : index
    %c0_113 = arith.constant 0 : index
    %179 = vector.load %arg25[%c3_110, %c0_111, %c0_112, %c0_113] : memref<8x2x16x64xf32, #tpu.memory_space<vmem>>, vector<1x2x16x64xf32>
    %180 = vector.shape_cast %179 : vector<1x2x16x64xf32> to vector<2x16x64xf32>
    %181 = arith.addf %178, %180 : vector<2x16x64xf32>
    %c3_114 = arith.constant 3 : index
    %c0_115 = arith.constant 0 : index
    %c0_116 = arith.constant 0 : index
    %c0_117 = arith.constant 0 : index
    %182 = vector.load %arg26[%c3_114, %c0_115, %c0_116, %c0_117] : memref<8x2x16x64xf32, #tpu.memory_space<vmem>>, vector<1x2x16x64xf32>
    %183 = vector.shape_cast %182 : vector<1x2x16x64xf32> to vector<2x16x64xf32>
    %184 = vector.shape_cast %181 : vector<2x16x64xf32> to vector<1x2x16x64xf32>
    tpu.vector_store %arg26[%c3_114, %c0_115, %c0_116, %c0_117], %184 {strides = array<i32>} : memref<8x2x16x64xf32, #tpu.memory_space<vmem>>, vector<1x2x16x64xf32>,
    %c4_118 = arith.constant 4 : index
    %c0_119 = arith.constant 0 : index
    %c0_120 = arith.constant 0 : index
    %c0_121 = arith.constant 0 : index
    %185 = vector.load %arg24[%c4_118, %c0_119, %c0_120, %c0_121] : memref<8x2x16x64xf32, #tpu.memory_space<vmem>>, vector<1x2x16x64xf32>
    %186 = vector.shape_cast %185 : vector<1x2x16x64xf32> to vector<2x16x64xf32>
    %187 = arith.mulf %181, %186 : vector<2x16x64xf32>
    %c4_122 = arith.constant 4 : index
    %c0_123 = arith.constant 0 : index
    %c0_124 = arith.constant 0 : index
    %c0_125 = arith.constant 0 : index
    %188 = vector.load %arg25[%c4_122, %c0_123, %c0_124, %c0_125] : memref<8x2x16x64xf32, #tpu.memory_space<vmem>>, vector<1x2x16x64xf32>
    %189 = vector.shape_cast %188 : vector<1x2x16x64xf32> to vector<2x16x64xf32>
    %190 = arith.addf %187, %189 : vector<2x16x64xf32>
    %c4_126 = arith.constant 4 : index
    %c0_127 = arith.constant 0 : index
    %c0_128 = arith.constant 0 : index
    %c0_129 = arith.constant 0 : index
    %191 = vector.load %arg26[%c4_126, %c0_127, %c0_128, %c0_129] : memref<8x2x16x64xf32, #tpu.memory_space<vmem>>, vector<1x2x16x64xf32>
    %192 = vector.shape_cast %191 : vector<1x2x16x64xf32> to vector<2x16x64xf32>
    %193 = vector.shape_cast %190 : vector<2x16x64xf32> to vector<1x2x16x64xf32>
    tpu.vector_store %arg26[%c4_126, %c0_127, %c0_128, %c0_129], %193 {strides = array<i32>} : memref<8x2x16x64xf32, #tpu.memory_space<vmem>>, vector<1x2x16x64xf32>,
    %c5 = arith.constant 5 : index
    %c0_130 = arith.constant 0 : index
    %c0_131 = arith.constant 0 : index
    %c0_132 = arith.constant 0 : index
    %194 = vector.load %arg24[%c5, %c0_130, %c0_131, %c0_132] : memref<8x2x16x64xf32, #tpu.memory_space<vmem>>, vector<1x2x16x64xf32>
    %195 = vector.shape_cast %194 : vector<1x2x16x64xf32> to vector<2x16x64xf32>
    %196 = arith.mulf %190, %195 : vector<2x16x64xf32>
    %c5_133 = arith.constant 5 : index
    %c0_134 = arith.constant 0 : index
    %c0_135 = arith.constant 0 : index
    %c0_136 = arith.constant 0 : index
    %197 = vector.load %arg25[%c5_133, %c0_134, %c0_135, %c0_136] : memref<8x2x16x64xf32, #tpu.memory_space<vmem>>, vector<1x2x16x64xf32>
    %198 = vector.shape_cast %197 : vector<1x2x16x64xf32> to vector<2x16x64xf32>
    %199 = arith.addf %196, %198 : vector<2x16x64xf32>
    %c5_137 = arith.constant 5 : index
    %c0_138 = arith.constant 0 : index
    %c0_139 = arith.constant 0 : index
    %c0_140 = arith.constant 0 : index
    %200 = vector.load %arg26[%c5_137, %c0_138, %c0_139, %c0_140] : memref<8x2x16x64xf32, #tpu.memory_space<vmem>>, vector<1x2x16x64xf32>
    %201 = vector.shape_cast %200 : vector<1x2x16x64xf32> to vector<2x16x64xf32>
    %202 = vector.shape_cast %199 : vector<2x16x64xf32> to vector<1x2x16x64xf32>
    tpu.vector_store %arg26[%c5_137, %c0_138, %c0_139, %c0_140], %202 {strides = array<i32>} : memref<8x2x16x64xf32, #tpu.memory_space<vmem>>, vector<1x2x16x64xf32>,
    %c6_141 = arith.constant 6 : index
    %c0_142 = arith.constant 0 : index
    %c0_143 = arith.constant 0 : index
    %c0_144 = arith.constant 0 : index
    %203 = vector.load %arg24[%c6_141, %c0_142, %c0_143, %c0_144] : memref<8x2x16x64xf32, #tpu.memory_space<vmem>>, vector<1x2x16x64xf32>
    %204 = vector.shape_cast %203 : vector<1x2x16x64xf32> to vector<2x16x64xf32>
    %205 = arith.mulf %199, %204 : vector<2x16x64xf32>
    %c6_145 = arith.constant 6 : index
    %c0_146 = arith.constant 0 : index
    %c0_147 = arith.constant 0 : index
    %c0_148 = arith.constant 0 : index
    %206 = vector.load %arg25[%c6_145, %c0_146, %c0_147, %c0_148] : memref<8x2x16x64xf32, #tpu.memory_space<vmem>>, vector<1x2x16x64xf32>
    %207 = vector.shape_cast %206 : vector<1x2x16x64xf32> to vector<2x16x64xf32>
    %208 = arith.addf %205, %207 : vector<2x16x64xf32>
    %c6_149 = arith.constant 6 : index
    %c0_150 = arith.constant 0 : index
    %c0_151 = arith.constant 0 : index
    %c0_152 = arith.constant 0 : index
    %209 = vector.load %arg26[%c6_149, %c0_150, %c0_151, %c0_152] : memref<8x2x16x64xf32, #tpu.memory_space<vmem>>, vector<1x2x16x64xf32>
    %210 = vector.shape_cast %209 : vector<1x2x16x64xf32> to vector<2x16x64xf32>
    %211 = vector.shape_cast %208 : vector<2x16x64xf32> to vector<1x2x16x64xf32>
    tpu.vector_store %arg26[%c6_149, %c0_150, %c0_151, %c0_152], %211 {strides = array<i32>} : memref<8x2x16x64xf32, #tpu.memory_space<vmem>>, vector<1x2x16x64xf32>,
    %c7 = arith.constant 7 : index
    %c0_153 = arith.constant 0 : index
    %c0_154 = arith.constant 0 : index
    %c0_155 = arith.constant 0 : index
    %212 = vector.load %arg24[%c7, %c0_153, %c0_154, %c0_155] : memref<8x2x16x64xf32, #tpu.memory_space<vmem>>, vector<1x2x16x64xf32>
    %213 = vector.shape_cast %212 : vector<1x2x16x64xf32> to vector<2x16x64xf32>
    %214 = arith.mulf %208, %213 : vector<2x16x64xf32>
    %c7_156 = arith.constant 7 : index
    %c0_157 = arith.constant 0 : index
    %c0_158 = arith.constant 0 : index
    %c0_159 = arith.constant 0 : index
    %215 = vector.load %arg25[%c7_156, %c0_157, %c0_158, %c0_159] : memref<8x2x16x64xf32, #tpu.memory_space<vmem>>, vector<1x2x16x64xf32>
    %216 = vector.shape_cast %215 : vector<1x2x16x64xf32> to vector<2x16x64xf32>
    %217 = arith.addf %214, %216 : vector<2x16x64xf32>
    %c7_160 = arith.constant 7 : index
    %c0_161 = arith.constant 0 : index
    %c0_162 = arith.constant 0 : index
    %c0_163 = arith.constant 0 : index
    %218 = vector.load %arg26[%c7_160, %c0_161, %c0_162, %c0_163] : memref<8x2x16x64xf32, #tpu.memory_space<vmem>>, vector<1x2x16x64xf32>
    %219 = vector.shape_cast %218 : vector<1x2x16x64xf32> to vector<2x16x64xf32>
    %220 = vector.shape_cast %217 : vector<2x16x64xf32> to vector<1x2x16x64xf32>
    tpu.vector_store %arg26[%c7_160, %c0_161, %c0_162, %c0_163], %220 {strides = array<i32>} : memref<8x2x16x64xf32, #tpu.memory_space<vmem>>, vector<1x2x16x64xf32>,
    %c0_164 = arith.constant 0 : index
    %c0_165 = arith.constant 0 : index
    %c0_166 = arith.constant 0 : index
    %c0_167 = arith.constant 0 : index
    %221 = vector.load %arg26[%c0_164, %c0_165, %c0_166, %c0_167] : memref<8x2x16x64xf32, #tpu.memory_space<vmem>>, vector<8x2x16x64xf32>
    %cst_168 = arith.constant dense<0.000000e+00> : vector<8x2x64xf32>
    %222 = vector.multi_reduction <add>, %221, %cst_168 [2] : vector<8x2x16x64xf32> to vector<8x2x64xf32>
    %223 = vector.shape_cast %222 : vector<8x2x64xf32> to vector<16x64xf32>
    %c0_169 = arith.constant 0 : index
    %c0_170 = arith.constant 0 : index
    %c0_171 = arith.constant 0 : index
    %224 = vector.load %arg18[%c0_169, %c0_170, %c0_171] : memref<2x1x64xf32, #tpu.memory_space<vmem>>, vector<1x1x64xf32>
    %225 = vector.shape_cast %224 : vector<1x1x64xf32> to vector<1x64xf32>
    %226 = vector.broadcast %225 : vector<1x64xf32> to vector<16x64xf32>
    %227 = arith.mulf %226, %111 : vector<16x64xf32>
    %228 = arith.addf %223, %227 : vector<16x64xf32>
    %229 = arith.negf %72 : vector<16x64xf32>
    %230 = math.exp %229 : vector<16x64xf32>
    %cst_172 = arith.constant 1.000000e+00 : f32
    %231 = vector.broadcast %cst_172 : f32 to vector<16x64xf32>
    %232 = arith.addf %231, %230 : vector<16x64xf32>
    %233 = arith.divf %231, %232 : vector<16x64xf32>
    %234 = arith.mulf %72, %233 : vector<16x64xf32>
    %235 = arith.mulf %228, %234 : vector<16x64xf32>
    %c0_173 = arith.constant 0 : index
    %c0_174 = arith.constant 0 : index
    %c0_175 = arith.constant 0 : index
    %236 = vector.load %arg19[%c0_173, %c0_174, %c0_175] : memref<2x64x32xf32, #tpu.memory_space<vmem>>, vector<1x64x32xf32>
    %237 = vector.shape_cast %236 : vector<1x64x32xf32> to vector<64x32xf32>
    %cst_176 = arith.constant dense<0.000000e+00> : vector<16x32xf32>
    %238 = tpu.matmul %235, %237, %cst_176 {dimension_numbers = #tpu.dot_dimension_numbers<[1], [0], [0], [1], [0, 0, 1, 1], [], []>} : vector<16x64xf32>, vector<64x32xf32>, vector<16x32xf32> -> vector<16x32xf32>
    %239 = arith.addf %43, %238 : vector<16x32xf32>
    %cst_177 = arith.constant dense<0.000000e+00> : vector<16xf32>
    %240 = vector.multi_reduction <add>, %239, %cst_177 [1] : vector<16x32xf32> to vector<16xf32>
    %241 = vector.shape_cast %240 : vector<16xf32> to vector<16x1xf32>
    %cst_178 = arith.constant 3.200000e+01 : f32
    %242 = vector.broadcast %cst_178 : f32 to vector<16x1xf32>
    %243 = arith.divf %241, %242 : vector<16x1xf32>
    %244 = vector.broadcast %243 : vector<16x1xf32> to vector<16x32xf32>
    %245 = arith.subf %239, %244 : vector<16x32xf32>
    %246 = arith.mulf %245, %245 : vector<16x32xf32>
    %cst_179 = arith.constant dense<0.000000e+00> : vector<16xf32>
    %247 = vector.multi_reduction <add>, %246, %cst_179 [1] : vector<16x32xf32> to vector<16xf32>
    %248 = vector.shape_cast %247 : vector<16xf32> to vector<16x1xf32>
    %cst_180 = arith.constant 3.200000e+01 : f32
    %249 = vector.broadcast %cst_180 : f32 to vector<16x1xf32>
    %250 = arith.divf %248, %249 : vector<16x1xf32>
    %251 = vector.broadcast %243 : vector<16x1xf32> to vector<16x32xf32>
    %252 = arith.subf %239, %251 : vector<16x32xf32>
    %cst_181 = arith.constant 9.99999974E-6 : f32
    %253 = vector.broadcast %cst_181 : f32 to vector<16x1xf32>
    %254 = arith.addf %250, %253 : vector<16x1xf32>
    %255 = math.rsqrt %254 : vector<16x1xf32>
    %256 = vector.broadcast %255 : vector<16x1xf32> to vector<16x32xf32>
    %257 = arith.mulf %252, %256 : vector<16x32xf32>
    %c1_182 = arith.constant 1 : index
    %c0_183 = arith.constant 0 : index
    %c0_184 = arith.constant 0 : index
    %258 = vector.load %arg11[%c1_182, %c0_183, %c0_184] : memref<2x32x128xf32, #tpu.memory_space<vmem>>, vector<1x32x128xf32>
    %259 = vector.shape_cast %258 : vector<1x32x128xf32> to vector<32x128xf32>
    %cst_185 = arith.constant dense<0.000000e+00> : vector<16x128xf32>
    %260 = tpu.matmul %257, %259, %cst_185 {dimension_numbers = #tpu.dot_dimension_numbers<[1], [0], [0], [1], [0, 0, 1, 1], [], []>} : vector<16x32xf32>, vector<32x128xf32>, vector<16x128xf32> -> vector<16x128xf32>
    %c1_186 = arith.constant 1 : index
    %c0_187 = arith.constant 0 : index
    %c0_188 = arith.constant 0 : index
    %261 = vector.load %arg12[%c1_186, %c0_187, %c0_188] : memref<2x1x128xf32, #tpu.memory_space<vmem>>, vector<1x1x128xf32>
    %262 = vector.shape_cast %261 : vector<1x1x128xf32> to vector<1x128xf32>
    %263 = vector.broadcast %262 : vector<1x128xf32> to vector<16x128xf32>
    %264 = arith.addf %260, %263 : vector<16x128xf32>
    %265 = vector.extract_strided_slice %264 {offsets = [0, 0], sizes = [16, 64], strides = [1, 1]} : vector<16x128xf32> to vector<16x64xf32>
    %266 = vector.extract_strided_slice %264 {offsets = [0, 64], sizes = [16, 64], strides = [1, 1]} : vector<16x128xf32> to vector<16x64xf32>
    %c8_189 = arith.constant 8 : index
    %c0_190 = arith.constant 0 : index
    %267 = vector.load %arg23[%c8_189, %c0_190] : memref<24x64xf32, #tpu.memory_space<vmem>>, vector<16x64xf32>
    tpu.vector_store %arg23[%c8_189, %c0_190], %265 {strides = array<i32>} : memref<24x64xf32, #tpu.memory_space<vmem>>, vector<16x64xf32>,
    %c1_191 = arith.constant 1 : index
    %c0_192 = arith.constant 0 : index
    %c0_193 = arith.constant 0 : index
    %268 = vector.load %arg13[%c1_191, %c0_192, %c0_193] : memref<2x4x64xf32, #tpu.memory_space<vmem>>, vector<1x4x64xf32>
    %269 = vector.shape_cast %268 : vector<1x4x64xf32> to vector<4x64xf32>
    %270 = vector.extract_strided_slice %269 {offsets = [3, 0], sizes = [1, 64], strides = [1, 1]} : vector<4x64xf32> to vector<1x64xf32>
    %271 = vector.shape_cast %270 : vector<1x64xf32> to vector<64xf32>
    %272 = vector.shape_cast %271 : vector<64xf32> to vector<1x64xf32>
    %273 = vector.broadcast %272 : vector<1x64xf32> to vector<16x64xf32>
    %274 = arith.mulf %265, %273 : vector<16x64xf32>
    %c1_194 = arith.constant 1 : index
    %c0_195 = arith.constant 0 : index
    %c0_196 = arith.constant 0 : index
    %275 = vector.load %arg14[%c1_194, %c0_195, %c0_196] : memref<2x1x64xf32, #tpu.memory_space<vmem>>, vector<1x1x64xf32>
    %276 = vector.shape_cast %275 : vector<1x1x64xf32> to vector<1x64xf32>
    %277 = vector.broadcast %276 : vector<1x64xf32> to vector<16x64xf32>
    %278 = arith.addf %274, %277 : vector<16x64xf32>
    %c6_197 = arith.constant 6 : index
    %c0_198 = arith.constant 0 : index
    %279 = vector.load %arg23[%c6_197, %c0_198] : memref<24x64xf32, #tpu.memory_space<vmem>>, vector<16x64xf32>
    %280 = vector.extract_strided_slice %269 {offsets = [2, 0], sizes = [1, 64], strides = [1, 1]} : vector<4x64xf32> to vector<1x64xf32>
    %281 = vector.shape_cast %280 : vector<1x64xf32> to vector<64xf32>
    %282 = vector.shape_cast %281 : vector<64xf32> to vector<1x64xf32>
    %283 = vector.broadcast %282 : vector<1x64xf32> to vector<16x64xf32>
    %284 = arith.mulf %279, %283 : vector<16x64xf32>
    %285 = arith.addf %278, %284 : vector<16x64xf32>
    %c4_199 = arith.constant 4 : index
    %c0_200 = arith.constant 0 : index
    %286 = vector.load %arg23[%c4_199, %c0_200] : memref<24x64xf32, #tpu.memory_space<vmem>>, vector<16x64xf32>
    %287 = vector.extract_strided_slice %269 {offsets = [1, 0], sizes = [1, 64], strides = [1, 1]} : vector<4x64xf32> to vector<1x64xf32>
    %288 = vector.shape_cast %287 : vector<1x64xf32> to vector<64xf32>
    %289 = vector.shape_cast %288 : vector<64xf32> to vector<1x64xf32>
    %290 = vector.broadcast %289 : vector<1x64xf32> to vector<16x64xf32>
    %291 = arith.mulf %286, %290 : vector<16x64xf32>
    %292 = arith.addf %285, %291 : vector<16x64xf32>
    %c2_201 = arith.constant 2 : index
    %c0_202 = arith.constant 0 : index
    %293 = vector.load %arg23[%c2_201, %c0_202] : memref<24x64xf32, #tpu.memory_space<vmem>>, vector<16x64xf32>
    %294 = vector.extract_strided_slice %269 {offsets = [0, 0], sizes = [1, 64], strides = [1, 1]} : vector<4x64xf32> to vector<1x64xf32>
    %295 = vector.shape_cast %294 : vector<1x64xf32> to vector<64xf32>
    %296 = vector.shape_cast %295 : vector<64xf32> to vector<1x64xf32>
    %297 = vector.broadcast %296 : vector<1x64xf32> to vector<16x64xf32>
    %298 = arith.mulf %293, %297 : vector<16x64xf32>
    %299 = arith.addf %292, %298 : vector<16x64xf32>
    %300 = arith.negf %299 : vector<16x64xf32>
    %301 = math.exp %300 : vector<16x64xf32>
    %cst_203 = arith.constant 1.000000e+00 : f32
    %302 = vector.broadcast %cst_203 : f32 to vector<16x64xf32>
    %303 = arith.addf %302, %301 : vector<16x64xf32>
    %304 = arith.divf %302, %303 : vector<16x64xf32>
    %305 = arith.mulf %299, %304 : vector<16x64xf32>
    %c1_204 = arith.constant 1 : index
    %c0_205 = arith.constant 0 : index
    %c0_206 = arith.constant 0 : index
    %306 = vector.load %arg15[%c1_204, %c0_205, %c0_206] : memref<2x64x80xf32, #tpu.memory_space<vmem>>, vector<1x64x80xf32>
    %307 = vector.shape_cast %306 : vector<1x64x80xf32> to vector<64x80xf32>
    %cst_207 = arith.constant dense<0.000000e+00> : vector<16x80xf32>
    %308 = tpu.matmul %305, %307, %cst_207 {dimension_numbers = #tpu.dot_dimension_numbers<[1], [0], [0], [1], [0, 0, 1, 1], [], []>} : vector<16x64xf32>, vector<64x80xf32>, vector<16x80xf32> -> vector<16x80xf32>
    %c1_208 = arith.constant 1 : index
    %c0_209 = arith.constant 0 : index
    %c0_210 = arith.constant 0 : index
    %309 = vector.load %arg16[%c1_208, %c0_209, %c0_210] : memref<2x1x80xf32, #tpu.memory_space<vmem>>, vector<1x1x80xf32>
    %310 = vector.shape_cast %309 : vector<1x1x80xf32> to vector<1x80xf32>
    %311 = vector.broadcast %310 : vector<1x80xf32> to vector<16x80xf32>
    %312 = arith.addf %308, %311 : vector<16x80xf32>
    %313 = vector.extract_strided_slice %312 {offsets = [0, 0], sizes = [16, 64], strides = [1, 1]} : vector<16x80xf32> to vector<16x64xf32>
    %cst_211 = arith.constant 0.000000e+00 : f32
    %314 = vector.broadcast %cst_211 : f32 to vector<16x64xf32>
    %315 = arith.maximumf %313, %314 : vector<16x64xf32>
    %316 = vector.broadcast %cst_211 : f32 to vector<16x64xf32>
    %317 = arith.subf %313, %316 : vector<16x64xf32>
    %318 = arith.cmpf one, %317, %317 : vector<16x64xf32>
    %319 = vector.broadcast %cst_211 : f32 to vector<16x64xf32>
    %320 = arith.addf %313, %319 : vector<16x64xf32>
    %321 = math.absf %317 : vector<16x64xf32>
    %cst_212 = arith.constant 0.000000e+00 : f32
    %322 = vector.broadcast %cst_212 : f32 to vector<16x64xf32>
    %323 = arith.subf %322, %321 : vector<16x64xf32>
    %324 = math.exp %323 : vector<16x64xf32>
    %325 = math.log1p %324 : vector<16x64xf32>
    %326 = arith.addf %315, %325 : vector<16x64xf32>
    %327 = arith.select %318, %320, %326 : vector<16x64xi1>, vector<16x64xf32>
    %328 = vector.extract_strided_slice %312 {offsets = [0, 64], sizes = [16, 16], strides = [1, 1]} : vector<16x80xf32> to vector<16x16xf32>
    %c1_213 = arith.constant 1 : index
    %c0_214 = arith.constant 0 : index
    %c0_215 = arith.constant 0 : index
    %329 = vector.load %arg17[%c1_213, %c0_214, %c0_215] : memref<2x16x64xf32, #tpu.memory_space<vmem>>, vector<1x16x64xf32>
    %330 = vector.shape_cast %329 : vector<1x16x64xf32> to vector<16x64xf32>
    %331 = vector.shape_cast %330 : vector<16x64xf32> to vector<1x1x16x64xf32>
    %332 = vector.shape_cast %327 : vector<16x64xf32> to vector<8x2x1x64xf32>
    %333 = vector.broadcast %331 : vector<1x1x16x64xf32> to vector<8x2x16x64xf32>
    %334 = vector.broadcast %332 : vector<8x2x1x64xf32> to vector<8x2x16x64xf32>
    %335 = arith.mulf %333, %334 : vector<8x2x16x64xf32>
    %336 = math.exp %335 : vector<8x2x16x64xf32>
    %c0_216 = arith.constant 0 : index
    %c0_217 = arith.constant 0 : index
    %c0_218 = arith.constant 0 : index
    %c0_219 = arith.constant 0 : index
    %337 = vector.load %arg24[%c0_216, %c0_217, %c0_218, %c0_219] : memref<8x2x16x64xf32, #tpu.memory_space<vmem>>, vector<8x2x16x64xf32>
    tpu.vector_store %arg24[%c0_216, %c0_217, %c0_218, %c0_219], %336 {strides = array<i32>} : memref<8x2x16x64xf32, #tpu.memory_space<vmem>>, vector<8x2x16x64xf32>,
    %338 = vector.shape_cast %328 : vector<16x16xf32> to vector<8x2x16x1xf32>
    %339 = vector.shape_cast %338 : vector<8x2x16x1xf32> to vector<8x2x16x1xf32>
    %340 = vector.broadcast %339 : vector<8x2x16x1xf32> to vector<8x2x16x64xf32>
    %c0_220 = arith.constant 0 : index
    %c0_221 = arith.constant 0 : index
    %c0_222 = arith.constant 0 : index
    %c0_223 = arith.constant 0 : index
    %341 = vector.load %arg25[%c0_220, %c0_221, %c0_222, %c0_223] : memref<8x2x16x64xf32, #tpu.memory_space<vmem>>, vector<8x2x16x64xf32>
    tpu.vector_store %arg25[%c0_220, %c0_221, %c0_222, %c0_223], %340 {strides = array<i32>} : memref<8x2x16x64xf32, #tpu.memory_space<vmem>>, vector<8x2x16x64xf32>,
    %cst_224 = arith.constant 0.000000e+00 : f32
    %342 = vector.broadcast %cst_224 : f32 to vector<2x16x64xf32>
    %c0_225 = arith.constant 0 : index
    %c0_226 = arith.constant 0 : index
    %c0_227 = arith.constant 0 : index
    %c0_228 = arith.constant 0 : index
    %343 = vector.load %arg24[%c0_225, %c0_226, %c0_227, %c0_228] : memref<8x2x16x64xf32, #tpu.memory_space<vmem>>, vector<1x2x16x64xf32>
    %344 = vector.shape_cast %343 : vector<1x2x16x64xf32> to vector<2x16x64xf32>
    %345 = arith.mulf %342, %344 : vector<2x16x64xf32>
    %c0_229 = arith.constant 0 : index
    %c0_230 = arith.constant 0 : index
    %c0_231 = arith.constant 0 : index
    %c0_232 = arith.constant 0 : index
    %346 = vector.load %arg25[%c0_229, %c0_230, %c0_231, %c0_232] : memref<8x2x16x64xf32, #tpu.memory_space<vmem>>, vector<1x2x16x64xf32>
    %347 = vector.shape_cast %346 : vector<1x2x16x64xf32> to vector<2x16x64xf32>
    %348 = arith.addf %345, %347 : vector<2x16x64xf32>
    %c0_233 = arith.constant 0 : index
    %c0_234 = arith.constant 0 : index
    %c0_235 = arith.constant 0 : index
    %c0_236 = arith.constant 0 : index
    %349 = vector.load %arg26[%c0_233, %c0_234, %c0_235, %c0_236] : memref<8x2x16x64xf32, #tpu.memory_space<vmem>>, vector<1x2x16x64xf32>
    %350 = vector.shape_cast %349 : vector<1x2x16x64xf32> to vector<2x16x64xf32>
    %351 = vector.shape_cast %348 : vector<2x16x64xf32> to vector<1x2x16x64xf32>
    tpu.vector_store %arg26[%c0_233, %c0_234, %c0_235, %c0_236], %351 {strides = array<i32>} : memref<8x2x16x64xf32, #tpu.memory_space<vmem>>, vector<1x2x16x64xf32>,
    %c1_237 = arith.constant 1 : index
    %c0_238 = arith.constant 0 : index
    %c0_239 = arith.constant 0 : index
    %c0_240 = arith.constant 0 : index
    %352 = vector.load %arg24[%c1_237, %c0_238, %c0_239, %c0_240] : memref<8x2x16x64xf32, #tpu.memory_space<vmem>>, vector<1x2x16x64xf32>
    %353 = vector.shape_cast %352 : vector<1x2x16x64xf32> to vector<2x16x64xf32>
    %354 = arith.mulf %348, %353 : vector<2x16x64xf32>
    %c1_241 = arith.constant 1 : index
    %c0_242 = arith.constant 0 : index
    %c0_243 = arith.constant 0 : index
    %c0_244 = arith.constant 0 : index
    %355 = vector.load %arg25[%c1_241, %c0_242, %c0_243, %c0_244] : memref<8x2x16x64xf32, #tpu.memory_space<vmem>>, vector<1x2x16x64xf32>
    %356 = vector.shape_cast %355 : vector<1x2x16x64xf32> to vector<2x16x64xf32>
    %357 = arith.addf %354, %356 : vector<2x16x64xf32>
    %c1_245 = arith.constant 1 : index
    %c0_246 = arith.constant 0 : index
    %c0_247 = arith.constant 0 : index
    %c0_248 = arith.constant 0 : index
    %358 = vector.load %arg26[%c1_245, %c0_246, %c0_247, %c0_248] : memref<8x2x16x64xf32, #tpu.memory_space<vmem>>, vector<1x2x16x64xf32>
    %359 = vector.shape_cast %358 : vector<1x2x16x64xf32> to vector<2x16x64xf32>
    %360 = vector.shape_cast %357 : vector<2x16x64xf32> to vector<1x2x16x64xf32>
    tpu.vector_store %arg26[%c1_245, %c0_246, %c0_247, %c0_248], %360 {strides = array<i32>} : memref<8x2x16x64xf32, #tpu.memory_space<vmem>>, vector<1x2x16x64xf32>,
    %c2_249 = arith.constant 2 : index
    %c0_250 = arith.constant 0 : index
    %c0_251 = arith.constant 0 : index
    %c0_252 = arith.constant 0 : index
    %361 = vector.load %arg24[%c2_249, %c0_250, %c0_251, %c0_252] : memref<8x2x16x64xf32, #tpu.memory_space<vmem>>, vector<1x2x16x64xf32>
    %362 = vector.shape_cast %361 : vector<1x2x16x64xf32> to vector<2x16x64xf32>
    %363 = arith.mulf %357, %362 : vector<2x16x64xf32>
    %c2_253 = arith.constant 2 : index
    %c0_254 = arith.constant 0 : index
    %c0_255 = arith.constant 0 : index
    %c0_256 = arith.constant 0 : index
    %364 = vector.load %arg25[%c2_253, %c0_254, %c0_255, %c0_256] : memref<8x2x16x64xf32, #tpu.memory_space<vmem>>, vector<1x2x16x64xf32>
    %365 = vector.shape_cast %364 : vector<1x2x16x64xf32> to vector<2x16x64xf32>
    %366 = arith.addf %363, %365 : vector<2x16x64xf32>
    %c2_257 = arith.constant 2 : index
    %c0_258 = arith.constant 0 : index
    %c0_259 = arith.constant 0 : index
    %c0_260 = arith.constant 0 : index
    %367 = vector.load %arg26[%c2_257, %c0_258, %c0_259, %c0_260] : memref<8x2x16x64xf32, #tpu.memory_space<vmem>>, vector<1x2x16x64xf32>
    %368 = vector.shape_cast %367 : vector<1x2x16x64xf32> to vector<2x16x64xf32>
    %369 = vector.shape_cast %366 : vector<2x16x64xf32> to vector<1x2x16x64xf32>
    tpu.vector_store %arg26[%c2_257, %c0_258, %c0_259, %c0_260], %369 {strides = array<i32>} : memref<8x2x16x64xf32, #tpu.memory_space<vmem>>, vector<1x2x16x64xf32>,
    %c3_261 = arith.constant 3 : index
    %c0_262 = arith.constant 0 : index
    %c0_263 = arith.constant 0 : index
    %c0_264 = arith.constant 0 : index
    %370 = vector.load %arg24[%c3_261, %c0_262, %c0_263, %c0_264] : memref<8x2x16x64xf32, #tpu.memory_space<vmem>>, vector<1x2x16x64xf32>
    %371 = vector.shape_cast %370 : vector<1x2x16x64xf32> to vector<2x16x64xf32>
    %372 = arith.mulf %366, %371 : vector<2x16x64xf32>
    %c3_265 = arith.constant 3 : index
    %c0_266 = arith.constant 0 : index
    %c0_267 = arith.constant 0 : index
    %c0_268 = arith.constant 0 : index
    %373 = vector.load %arg25[%c3_265, %c0_266, %c0_267, %c0_268] : memref<8x2x16x64xf32, #tpu.memory_space<vmem>>, vector<1x2x16x64xf32>
    %374 = vector.shape_cast %373 : vector<1x2x16x64xf32> to vector<2x16x64xf32>
    %375 = arith.addf %372, %374 : vector<2x16x64xf32>
    %c3_269 = arith.constant 3 : index
    %c0_270 = arith.constant 0 : index
    %c0_271 = arith.constant 0 : index
    %c0_272 = arith.constant 0 : index
    %376 = vector.load %arg26[%c3_269, %c0_270, %c0_271, %c0_272] : memref<8x2x16x64xf32, #tpu.memory_space<vmem>>, vector<1x2x16x64xf32>
    %377 = vector.shape_cast %376 : vector<1x2x16x64xf32> to vector<2x16x64xf32>
    %378 = vector.shape_cast %375 : vector<2x16x64xf32> to vector<1x2x16x64xf32>
    tpu.vector_store %arg26[%c3_269, %c0_270, %c0_271, %c0_272], %378 {strides = array<i32>} : memref<8x2x16x64xf32, #tpu.memory_space<vmem>>, vector<1x2x16x64xf32>,
    %c4_273 = arith.constant 4 : index
    %c0_274 = arith.constant 0 : index
    %c0_275 = arith.constant 0 : index
    %c0_276 = arith.constant 0 : index
    %379 = vector.load %arg24[%c4_273, %c0_274, %c0_275, %c0_276] : memref<8x2x16x64xf32, #tpu.memory_space<vmem>>, vector<1x2x16x64xf32>
    %380 = vector.shape_cast %379 : vector<1x2x16x64xf32> to vector<2x16x64xf32>
    %381 = arith.mulf %375, %380 : vector<2x16x64xf32>
    %c4_277 = arith.constant 4 : index
    %c0_278 = arith.constant 0 : index
    %c0_279 = arith.constant 0 : index
    %c0_280 = arith.constant 0 : index
    %382 = vector.load %arg25[%c4_277, %c0_278, %c0_279, %c0_280] : memref<8x2x16x64xf32, #tpu.memory_space<vmem>>, vector<1x2x16x64xf32>
    %383 = vector.shape_cast %382 : vector<1x2x16x64xf32> to vector<2x16x64xf32>
    %384 = arith.addf %381, %383 : vector<2x16x64xf32>
    %c4_281 = arith.constant 4 : index
    %c0_282 = arith.constant 0 : index
    %c0_283 = arith.constant 0 : index
    %c0_284 = arith.constant 0 : index
    %385 = vector.load %arg26[%c4_281, %c0_282, %c0_283, %c0_284] : memref<8x2x16x64xf32, #tpu.memory_space<vmem>>, vector<1x2x16x64xf32>
    %386 = vector.shape_cast %385 : vector<1x2x16x64xf32> to vector<2x16x64xf32>
    %387 = vector.shape_cast %384 : vector<2x16x64xf32> to vector<1x2x16x64xf32>
    tpu.vector_store %arg26[%c4_281, %c0_282, %c0_283, %c0_284], %387 {strides = array<i32>} : memref<8x2x16x64xf32, #tpu.memory_space<vmem>>, vector<1x2x16x64xf32>,
    %c5_285 = arith.constant 5 : index
    %c0_286 = arith.constant 0 : index
    %c0_287 = arith.constant 0 : index
    %c0_288 = arith.constant 0 : index
    %388 = vector.load %arg24[%c5_285, %c0_286, %c0_287, %c0_288] : memref<8x2x16x64xf32, #tpu.memory_space<vmem>>, vector<1x2x16x64xf32>
    %389 = vector.shape_cast %388 : vector<1x2x16x64xf32> to vector<2x16x64xf32>
    %390 = arith.mulf %384, %389 : vector<2x16x64xf32>
    %c5_289 = arith.constant 5 : index
    %c0_290 = arith.constant 0 : index
    %c0_291 = arith.constant 0 : index
    %c0_292 = arith.constant 0 : index
    %391 = vector.load %arg25[%c5_289, %c0_290, %c0_291, %c0_292] : memref<8x2x16x64xf32, #tpu.memory_space<vmem>>, vector<1x2x16x64xf32>
    %392 = vector.shape_cast %391 : vector<1x2x16x64xf32> to vector<2x16x64xf32>
    %393 = arith.addf %390, %392 : vector<2x16x64xf32>
    %c5_293 = arith.constant 5 : index
    %c0_294 = arith.constant 0 : index
    %c0_295 = arith.constant 0 : index
    %c0_296 = arith.constant 0 : index
    %394 = vector.load %arg26[%c5_293, %c0_294, %c0_295, %c0_296] : memref<8x2x16x64xf32, #tpu.memory_space<vmem>>, vector<1x2x16x64xf32>
    %395 = vector.shape_cast %394 : vector<1x2x16x64xf32> to vector<2x16x64xf32>
    %396 = vector.shape_cast %393 : vector<2x16x64xf32> to vector<1x2x16x64xf32>
    tpu.vector_store %arg26[%c5_293, %c0_294, %c0_295, %c0_296], %396 {strides = array<i32>} : memref<8x2x16x64xf32, #tpu.memory_space<vmem>>, vector<1x2x16x64xf32>,
    %c6_297 = arith.constant 6 : index
    %c0_298 = arith.constant 0 : index
    %c0_299 = arith.constant 0 : index
    %c0_300 = arith.constant 0 : index
    %397 = vector.load %arg24[%c6_297, %c0_298, %c0_299, %c0_300] : memref<8x2x16x64xf32, #tpu.memory_space<vmem>>, vector<1x2x16x64xf32>
    %398 = vector.shape_cast %397 : vector<1x2x16x64xf32> to vector<2x16x64xf32>
    %399 = arith.mulf %393, %398 : vector<2x16x64xf32>
    %c6_301 = arith.constant 6 : index
    %c0_302 = arith.constant 0 : index
    %c0_303 = arith.constant 0 : index
    %c0_304 = arith.constant 0 : index
    %400 = vector.load %arg25[%c6_301, %c0_302, %c0_303, %c0_304] : memref<8x2x16x64xf32, #tpu.memory_space<vmem>>, vector<1x2x16x64xf32>
    %401 = vector.shape_cast %400 : vector<1x2x16x64xf32> to vector<2x16x64xf32>
    %402 = arith.addf %399, %401 : vector<2x16x64xf32>
    %c6_305 = arith.constant 6 : index
    %c0_306 = arith.constant 0 : index
    %c0_307 = arith.constant 0 : index
    %c0_308 = arith.constant 0 : index
    %403 = vector.load %arg26[%c6_305, %c0_306, %c0_307, %c0_308] : memref<8x2x16x64xf32, #tpu.memory_space<vmem>>, vector<1x2x16x64xf32>
    %404 = vector.shape_cast %403 : vector<1x2x16x64xf32> to vector<2x16x64xf32>
    %405 = vector.shape_cast %402 : vector<2x16x64xf32> to vector<1x2x16x64xf32>
    tpu.vector_store %arg26[%c6_305, %c0_306, %c0_307, %c0_308], %405 {strides = array<i32>} : memref<8x2x16x64xf32, #tpu.memory_space<vmem>>, vector<1x2x16x64xf32>,
    %c7_309 = arith.constant 7 : index
    %c0_310 = arith.constant 0 : index
    %c0_311 = arith.constant 0 : index
    %c0_312 = arith.constant 0 : index
    %406 = vector.load %arg24[%c7_309, %c0_310, %c0_311, %c0_312] : memref<8x2x16x64xf32, #tpu.memory_space<vmem>>, vector<1x2x16x64xf32>
    %407 = vector.shape_cast %406 : vector<1x2x16x64xf32> to vector<2x16x64xf32>
    %408 = arith.mulf %402, %407 : vector<2x16x64xf32>
    %c7_313 = arith.constant 7 : index
    %c0_314 = arith.constant 0 : index
    %c0_315 = arith.constant 0 : index
    %c0_316 = arith.constant 0 : index
    %409 = vector.load %arg25[%c7_313, %c0_314, %c0_315, %c0_316] : memref<8x2x16x64xf32, #tpu.memory_space<vmem>>, vector<1x2x16x64xf32>
    %410 = vector.shape_cast %409 : vector<1x2x16x64xf32> to vector<2x16x64xf32>
    %411 = arith.addf %408, %410 : vector<2x16x64xf32>
    %c7_317 = arith.constant 7 : index
    %c0_318 = arith.constant 0 : index
    %c0_319 = arith.constant 0 : index
    %c0_320 = arith.constant 0 : index
    %412 = vector.load %arg26[%c7_317, %c0_318, %c0_319, %c0_320] : memref<8x2x16x64xf32, #tpu.memory_space<vmem>>, vector<1x2x16x64xf32>
    %413 = vector.shape_cast %412 : vector<1x2x16x64xf32> to vector<2x16x64xf32>
    %414 = vector.shape_cast %411 : vector<2x16x64xf32> to vector<1x2x16x64xf32>
    tpu.vector_store %arg26[%c7_317, %c0_318, %c0_319, %c0_320], %414 {strides = array<i32>} : memref<8x2x16x64xf32, #tpu.memory_space<vmem>>, vector<1x2x16x64xf32>,
    %c0_321 = arith.constant 0 : index
    %c0_322 = arith.constant 0 : index
    %c0_323 = arith.constant 0 : index
    %c0_324 = arith.constant 0 : index
    %415 = vector.load %arg26[%c0_321, %c0_322, %c0_323, %c0_324] : memref<8x2x16x64xf32, #tpu.memory_space<vmem>>, vector<8x2x16x64xf32>
    %cst_325 = arith.constant dense<0.000000e+00> : vector<8x2x64xf32>
    %416 = vector.multi_reduction <add>, %415, %cst_325 [2] : vector<8x2x16x64xf32> to vector<8x2x64xf32>
    %417 = vector.shape_cast %416 : vector<8x2x64xf32> to vector<16x64xf32>
    %c1_326 = arith.constant 1 : index
    %c0_327 = arith.constant 0 : index
    %c0_328 = arith.constant 0 : index
    %418 = vector.load %arg18[%c1_326, %c0_327, %c0_328] : memref<2x1x64xf32, #tpu.memory_space<vmem>>, vector<1x1x64xf32>
    %419 = vector.shape_cast %418 : vector<1x1x64xf32> to vector<1x64xf32>
    %420 = vector.broadcast %419 : vector<1x64xf32> to vector<16x64xf32>
    %421 = arith.mulf %420, %305 : vector<16x64xf32>
    %422 = arith.addf %417, %421 : vector<16x64xf32>
    %423 = arith.negf %266 : vector<16x64xf32>
    %424 = math.exp %423 : vector<16x64xf32>
    %cst_329 = arith.constant 1.000000e+00 : f32
    %425 = vector.broadcast %cst_329 : f32 to vector<16x64xf32>
    %426 = arith.addf %425, %424 : vector<16x64xf32>
    %427 = arith.divf %425, %426 : vector<16x64xf32>
    %428 = arith.mulf %266, %427 : vector<16x64xf32>
    %429 = arith.mulf %422, %428 : vector<16x64xf32>
    %c1_330 = arith.constant 1 : index
    %c0_331 = arith.constant 0 : index
    %c0_332 = arith.constant 0 : index
    %430 = vector.load %arg19[%c1_330, %c0_331, %c0_332] : memref<2x64x32xf32, #tpu.memory_space<vmem>>, vector<1x64x32xf32>
    %431 = vector.shape_cast %430 : vector<1x64x32xf32> to vector<64x32xf32>
    %cst_333 = arith.constant dense<0.000000e+00> : vector<16x32xf32>
    %432 = tpu.matmul %429, %431, %cst_333 {dimension_numbers = #tpu.dot_dimension_numbers<[1], [0], [0], [1], [0, 0, 1, 1], [], []>} : vector<16x64xf32>, vector<64x32xf32>, vector<16x32xf32> -> vector<16x32xf32>
    %433 = arith.addf %239, %432 : vector<16x32xf32>
    %434 = vector.shape_cast %433 : vector<16x32xf32> to vector<8x2x32xf32>
    %cst_334 = arith.constant dense<0.000000e+00> : vector<2x32xf32>
    %435 = vector.multi_reduction <add>, %434, %cst_334 [0] : vector<8x2x32xf32> to vector<2x32xf32>
    %cst_335 = arith.constant 8.000000e+00 : f32
    %436 = vector.broadcast %cst_335 : f32 to vector<2x32xf32>
    %437 = arith.divf %435, %436 : vector<2x32xf32>
    %c0_336 = arith.constant 0 : index
    %c0_337 = arith.constant 0 : index
    %438 = vector.load %arg20[%c0_336, %c0_337] : memref<32x192xf32, #tpu.memory_space<vmem>>, vector<32x192xf32>
    %cst_338 = arith.constant dense<0.000000e+00> : vector<2x192xf32>
    %439 = tpu.matmul %437, %438, %cst_338 {dimension_numbers = #tpu.dot_dimension_numbers<[1], [0], [0], [1], [0, 0, 1, 1], [], []>} : vector<2x32xf32>, vector<32x192xf32>, vector<2x192xf32> -> vector<2x192xf32>
    %c0_339 = arith.constant 0 : index
    %c0_340 = arith.constant 0 : index
    %440 = vector.load %arg21[%c0_339, %c0_340] : memref<1x192xf32, #tpu.memory_space<vmem>>, vector<1x192xf32>
    %441 = vector.broadcast %440 : vector<1x192xf32> to vector<2x192xf32>
    %442 = arith.addf %439, %441 : vector<2x192xf32>
    %c0_341 = arith.constant 0 : index
    %c0_342 = arith.constant 0 : index
    %443 = vector.load %arg22[%c0_341, %c0_342] : memref<2x192xf32, #tpu.memory_space<vmem>>, vector<2x192xf32>
    tpu.vector_store %arg22[%c0_341, %c0_342], %442 {strides = array<i32>} : memref<2x192xf32, #tpu.memory_space<vmem>>, vector<2x192xf32>,
    return
  }
}

</mosaic_0001>

<llo_original>
// kernel: diffusion_forward.1
$region0: #{diffusion_forward.1}
  #allocation0 [shape = 'u32[]', space=smem, size = 0x4, offset = 0x4, fixed_abs, tag = 'smem constant byte address 0x4 - core index']
  #allocation1 [shape = 'u32[144,128]{1,0:T(1,128)}', space=vmem, size = 0x12000, scoped, tag = 'internal scratch']
  #allocation2 [shape = 'f32[24,64]{1,0:T(8,128)}', space=vmem, size = 0x3000, scoped, tag = 'scratch operand']
  #allocation3 [shape = 'f32[8,2,16,64]{3,2,1,0:T(8,128)}', space=vmem, size = 0x20000, scoped, tag = 'scratch operand']
  #allocation4 [shape = 'f32[8,2,16,64]{3,2,1,0:T(8,128)}', space=vmem, size = 0x20000, scoped, tag = 'scratch operand']
  #allocation5 [shape = 'f32[8,2,16,64]{3,2,1,0:T(8,128)}', space=vmem, size = 0x20000, scoped, tag = 'scratch operand']
  %s0 = inlined_call_operand.vmem [shape: f32[16,32], index: 0, kind: input, shape index: {}]
  %s1 = inlined_call_operand.vmem [shape: f32[2,192], index: 1, kind: input, shape index: {}]
  %s2 = inlined_call_operand.vmem [shape: f32[2,1], index: 2, kind: input, shape index: {}]
  %s3 = inlined_call_operand.vmem [shape: f32[1,32], index: 3, kind: input, shape index: {}]
  %s4 = inlined_call_operand.vmem [shape: f32[32,128], index: 4, kind: input, shape index: {}]
  %s5 = inlined_call_operand.vmem [shape: f32[1,128], index: 5, kind: input, shape index: {}]
  %s6 = inlined_call_operand.vmem [shape: f32[128,32], index: 6, kind: input, shape index: {}]
  %s7 = inlined_call_operand.vmem [shape: f32[1,32], index: 7, kind: input, shape index: {}]
  %s8 = inlined_call_operand.vmem [shape: f32[32,32], index: 8, kind: input, shape index: {}]
  %s9 = inlined_call_operand.vmem [shape: f32[192,32], index: 9, kind: input, shape index: {}]
  %s10 = inlined_call_operand.vmem [shape: f32[1,32], index: 10, kind: input, shape index: {}]
  %s11 = inlined_call_operand.vmem [shape: f32[2,32,128], index: 11, kind: input, shape index: {}]
  %s12 = inlined_call_operand.vmem [shape: f32[2,1,128], index: 12, kind: input, shape index: {}]
  %s13 = inlined_call_operand.vmem [shape: f32[2,4,64], index: 13, kind: input, shape index: {}]
  %s14 = inlined_call_operand.vmem [shape: f32[2,1,64], index: 14, kind: input, shape index: {}]
  %s15 = inlined_call_operand.vmem [shape: f32[2,64,80], index: 15, kind: input, shape index: {}]
  %s16 = inlined_call_operand.vmem [shape: f32[2,1,80], index: 16, kind: input, shape index: {}]
  %s17 = inlined_call_operand.vmem [shape: f32[2,16,64], index: 17, kind: input, shape index: {}]
  %s18 = inlined_call_operand.vmem [shape: f32[2,1,64], index: 18, kind: input, shape index: {}]
  %s19 = inlined_call_operand.vmem [shape: f32[2,64,32], index: 19, kind: input, shape index: {}]
  %s20 = inlined_call_operand.vmem [shape: f32[32,192], index: 20, kind: input, shape index: {}]
  %s21 = inlined_call_operand.vmem [shape: f32[1,192], index: 21, kind: input, shape index: {}]
  %s22 = inlined_call_operand.vmem [shape: f32[2,192], index: 22, kind: output, shape index: {}]
  %s23 = sld [smem:[#allocation0]]
  $region98: #{diffusion_forward.1} parent=0
    _
  %s25 = ssub.s32 1, %s23
  %s26 = scalar_select 0, %s25, %s23
  // Predicated region
  $region2: #{diffusion_forward.1} parent=0 // pred_check
    _
  $region3: #{diffusion_forward.1} parent=0 // pred_check_branch
    %28 = sbr.rel (0) target = $region5
  $region4: #{diffusion_forward.1} parent=0 // pred_region
    _
  $region5: #{diffusion_forward.1} parent=0 // pred_fallthru
    _
  // Predicated region
  $region6: #{diffusion_forward.1} parent=0 // pred_check
    _
  $region7: #{diffusion_forward.1} parent=0 // pred_check_branch
    %30 = sbr.rel (0) target = $region9
  $region8: #{diffusion_forward.1} parent=0 // pred_region
    _
  $region9: #{diffusion_forward.1} parent=0 // pred_fallthru
    _
  // Predicated region
  $region10: #{diffusion_forward.1} parent=0 // pred_check
    _
  $region11: #{diffusion_forward.1} parent=0 // pred_check_branch
    %32 = sbr.rel (0) target = $region13
  $region12: #{diffusion_forward.1} parent=0 // pred_region
    _
  $region13: #{diffusion_forward.1} parent=0 // pred_fallthru
    _
  // Predicated region
  $region14: #{diffusion_forward.1} parent=0 // pred_check
    _
  $region15: #{diffusion_forward.1} parent=0 // pred_check_branch
    %34 = sbr.rel (0) target = $region17
  $region16: #{diffusion_forward.1} parent=0 // pred_region
    _
  $region17: #{diffusion_forward.1} parent=0 // pred_fallthru
    _
  // Predicated region
  $region18: #{diffusion_forward.1} parent=0 // pred_check
    _
  $region19: #{diffusion_forward.1} parent=0 // pred_check_branch
    %36 = sbr.rel (0) target = $region21
  $region20: #{diffusion_forward.1} parent=0 // pred_region
    _
  $region21: #{diffusion_forward.1} parent=0 // pred_fallthru
    _
  // Predicated region
  $region22: #{diffusion_forward.1} parent=0 // pred_check
    _
  $region23: #{diffusion_forward.1} parent=0 // pred_check_branch
    %38 = sbr.rel (0) target = $region25
  $region24: #{diffusion_forward.1} parent=0 // pred_region
    _
  $region25: #{diffusion_forward.1} parent=0 // pred_fallthru
    _
  // Predicated region
  $region26: #{diffusion_forward.1} parent=0 // pred_check
    _
  $region27: #{diffusion_forward.1} parent=0 // pred_check_branch
    %40 = sbr.rel (0) target = $region29
  $region28: #{diffusion_forward.1} parent=0 // pred_region
    _
  $region29: #{diffusion_forward.1} parent=0 // pred_fallthru
    _
  // Predicated region
  $region30: #{diffusion_forward.1} parent=0 // pred_check
    _
  $region31: #{diffusion_forward.1} parent=0 // pred_check_branch
    %42 = sbr.rel (0) target = $region33
  $region32: #{diffusion_forward.1} parent=0 // pred_region
    _
  $region33: #{diffusion_forward.1} parent=0 // pred_fallthru
    _
  // Predicated region
  $region34: #{diffusion_forward.1} parent=0 // pred_check
    _
  $region35: #{diffusion_forward.1} parent=0 // pred_check_branch
    %44 = sbr.rel (0) target = $region37
  $region36: #{diffusion_forward.1} parent=0 // pred_region
    _
  $region37: #{diffusion_forward.1} parent=0 // pred_fallthru
    _
  // Predicated region
  $region38: #{diffusion_forward.1} parent=0 // pred_check
    _
  $region39: #{diffusion_forward.1} parent=0 // pred_check_branch
    %46 = sbr.rel (0) target = $region41
  $region40: #{diffusion_forward.1} parent=0 // pred_region
    _
  $region41: #{diffusion_forward.1} parent=0 // pred_fallthru
    _
  // Predicated region
  $region42: #{diffusion_forward.1} parent=0 // pred_check
    _
  $region43: #{diffusion_forward.1} parent=0 // pred_check_branch
    %48 = sbr.rel (0) target = $region45
  $region44: #{diffusion_forward.1} parent=0 // pred_region
    _
  $region45: #{diffusion_forward.1} parent=0 // pred_fallthru
    _
  // Predicated region
  $region46: #{diffusion_forward.1} parent=0 // pred_check
    _
  $region47: #{diffusion_forward.1} parent=0 // pred_check_branch
    %50 = sbr.rel (0) target = $region49
  $region48: #{diffusion_forward.1} parent=0 // pred_region
    _
  $region49: #{diffusion_forward.1} parent=0 // pred_fallthru
    _
  // Predicated region
  $region50: #{diffusion_forward.1} parent=0 // pred_check
    _
  $region51: #{diffusion_forward.1} parent=0 // pred_check_branch
    %52 = sbr.rel (0) target = $region53
  $region52: #{diffusion_forward.1} parent=0 // pred_region
    _
  $region53: #{diffusion_forward.1} parent=0 // pred_fallthru
    _
  // Predicated region
  $region54: #{diffusion_forward.1} parent=0 // pred_check
    _
  $region55: #{diffusion_forward.1} parent=0 // pred_check_branch
    %54 = sbr.rel (0) target = $region57
  $region56: #{diffusion_forward.1} parent=0 // pred_region
    _
  $region57: #{diffusion_forward.1} parent=0 // pred_fallthru
    _
  // Predicated region
  $region58: #{diffusion_forward.1} parent=0 // pred_check
    _
  $region59: #{diffusion_forward.1} parent=0 // pred_check_branch
    %56 = sbr.rel (0) target = $region61
  $region60: #{diffusion_forward.1} parent=0 // pred_region
    _
  $region61: #{diffusion_forward.1} parent=0 // pred_fallthru
    _
  // Predicated region
  $region62: #{diffusion_forward.1} parent=0 // pred_check
    _
  $region63: #{diffusion_forward.1} parent=0 // pred_check_branch
    %58 = sbr.rel (0) target = $region65
  $region64: #{diffusion_forward.1} parent=0 // pred_region
    _
  $region65: #{diffusion_forward.1} parent=0 // pred_fallthru
    _
  // Predicated region
  $region66: #{diffusion_forward.1} parent=0 // pred_check
    _
  $region67: #{diffusion_forward.1} parent=0 // pred_check_branch
    %60 = sbr.rel (0) target = $region69
  $region68: #{diffusion_forward.1} parent=0 // pred_region
    _
  $region69: #{diffusion_forward.1} parent=0 // pred_fallthru
    _
  // Predicated region
  $region70: #{diffusion_forward.1} parent=0 // pred_check
    _
  $region71: #{diffusion_forward.1} parent=0 // pred_check_branch
    %62 = sbr.rel (0) target = $region73
  $region72: #{diffusion_forward.1} parent=0 // pred_region
    _
  $region73: #{diffusion_forward.1} parent=0 // pred_fallthru
    _
  // Predicated region
  $region74: #{diffusion_forward.1} parent=0 // pred_check
    _
  $region75: #{diffusion_forward.1} parent=0 // pred_check_branch
    %64 = sbr.rel (0) target = $region77
  $region76: #{diffusion_forward.1} parent=0 // pred_region
    _
  $region77: #{diffusion_forward.1} parent=0 // pred_fallthru
    _
  // Predicated region
  $region78: #{diffusion_forward.1} parent=0 // pred_check
    _
  $region79: #{diffusion_forward.1} parent=0 // pred_check_branch
    %66 = sbr.rel (0) target = $region81
  $region80: #{diffusion_forward.1} parent=0 // pred_region
    _
  $region81: #{diffusion_forward.1} parent=0 // pred_fallthru
    _
  // Predicated region
  $region82: #{diffusion_forward.1} parent=0 // pred_check
    _
  $region83: #{diffusion_forward.1} parent=0 // pred_check_branch
    %68 = sbr.rel (0) target = $region85
  $region84: #{diffusion_forward.1} parent=0 // pred_region
    _
  $region85: #{diffusion_forward.1} parent=0 // pred_fallthru
    _
  // Predicated region
  $region86: #{diffusion_forward.1} parent=0 // pred_check
    _
  $region87: #{diffusion_forward.1} parent=0 // pred_check_branch
    %70 = sbr.rel (0) target = $region89
  $region88: #{diffusion_forward.1} parent=0 // pred_region
    _
  $region89: #{diffusion_forward.1} parent=0 // pred_fallthru
    _
  %v71 = vld [vmem:[%s2] sm:$0x3]
  %v72 = vld [vmem:[%s3] sm:$0x1]
  %74 = vset.pattern.permute.xlu0 0
  %75 = vperm.xlu0 %74, %v71
  %v76 = vpop.permute.xlu0 %75
  %v79 = vlaneseq
  %v80 = vshrl.u32 %v79, 7
  %v81 = vsub.s32 0, %v80
  %v82 = vrot.slane %v72, %v81
  %v84 = vmul.f32 %v76, %v82
  %v85 = vlaneseq
  %v86 = vand.u32 %v85, 127
  %vm87 = vcmp.lt.s32.totalorder %v86, 16
  %v88 = vand.u32 2147483647, %v84
  %vm89 = vcmp.le.f32.partialorder %v88, 0.7853982
  %vm90 = vcmp.lt.s32.totalorder %v84, 0
  %v91 = vand.u32 %v84, 2139095040
  %v92 = vshrl.u32 %v91, 23
  %v93 = vsub.s32 %v92, 127
  %v94 = vand.u32 2147483647, %v84
  %v95 = vand.u32 %v94, 8388607
  %v96 = vor.u32 %v95, 8388608
  %v97 = vsub.s32 0, %v96
  %v98 = vadd.s32 %v93, 1
  %vm99 = vcmp.gt.s32.totalorder %v98, 0
  %v100 = vsel %vm99, %v98, 0
  %v101 = vshrl.u32 %v100, 5
  %v102 = vand.u32 %v100, 31
  %v103 = vsub.s32 32, %v102
  %v104 = vshrl.u32 683565275, %v103
  %v105 = vshll.u32 683565275, %v102
  %v106 = vshrl.u32 2475754826, %v103
  %v107 = vor.u32 %v105, %v106
  %v108 = vshll.u32 2475754826, %v102
  %v109 = vshrl.u32 2131351028, %v103
  %v110 = vor.u32 %v108, %v109
  %v111 = vshll.u32 2131351028, %v102
  %v112 = vshrl.u32 2102212464, %v103
  %v113 = vor.u32 %v111, %v112
  %v114 = vshll.u32 2102212464, %v102
  %v115 = vshrl.u32 920167782, %v103
  %v116 = vor.u32 %v114, %v115
  %v117 = vshll.u32 920167782, %v102
  %v118 = vshrl.u32 1326507024, %v103
  %v119 = vor.u32 %v117, %v118
  %vm120 = vcmp.lt.s32.totalorder %v101, 1
  %vm121 = vcmp.lt.s32.totalorder %v101, 2
  %vm122 = vcmp.lt.s32.totalorder %v101, 3
  %vm123 = vcmp.lt.s32.totalorder %v101, 4
  %v124 = vsel %vm120, %v104, %v107
  %v125 = vsel %vm123, %v113, 2102212464
  %v126 = vsel %vm122, %v110, %v125
  %v127 = vsel %vm121, %v124, %v126
  %v128 = vsel %vm120, %v107, %v110
  %v129 = vsel %vm123, %v116, 920167782
  %v130 = vsel %vm122, %v113, %v129
  %v131 = vsel %vm121, %v128, %v130
  %v132 = vsel %vm120, %v110, %v113
  %v133 = vsel %vm123, %v119, 1326507024
  %v134 = vsel %vm122, %v116, %v133
  %v135 = vsel %vm121, %v132, %v134
  %v136 = vshll.u32 %v96, 8
  %v137 = vmul.u32.u64.compose %v136, %v135
  %v138 = vextract.low.u32 %v137
  %v139 = vextract.high.u32 %v137
  %v140 = vmul.u32.u64.compose %v136, %v131
  %v141 = vextract.low.u32 %v140
  %v142 = vextract.high.u32 %v140
  %v143 = vmul.u32 %v136, %v127
  %v144 = vadd.s32 %v139, %v141
  %vm145 = vc.u32 %v139, %v141
  %v146 = vadd.s32 %v142, 1
  %v147 = vsel %vm145, %v146, %v142
  %v148 = vadd.s32 %v143, %v147
  %v149 = vadd.s32 %v148, 536870912
  %v150 = vshrl.u32 %v149, 30
  %v151 = vshll.u32 %v150, 30
  %v152 = vsub.s32 %v148, %v151
  %vm153 = vcmp.lt.s32.totalorder %v152, 0
  %v154 = vsub.s32 0, %v152
  %v155 = vsel %vm153, %v154, %v152
  %v156 = vclz %v155
  %v157 = vsub.s32 %v156, 2
  %vm158 = vcmp.gt.s32.totalorder 0, %v157
  %v159 = vsel %vm158, 0, %v157
  %v160 = vsub.s32 32, %v159
  %v161 = vshll.u32 %v152, %v159
  %v162 = vshrl.u32 %v144, %v160
  %v163 = vor.u32 %v161, %v162
  %v164 = vsub.s32 4294967266, %v159
  %v165 = vadd.s32 %v164, 127
  %v166 = vshll.u32 %v165, 23
  %v167 = vor.u32 4788187, %v166
  %v168 = vand.u32 2147483647, %v167
  %v170 = vcvt.s32.f32 %v163
  %v171 = vmul.f32 %v170, %v168
  %v172 = vxor.u32 %v171, 2147483648
  %v173 = vsel %vm90, %v172, %v171
  %v174 = vsub.s32 4, %v150
  %v175 = vsel %vm90, %v174, %v150
  %v176 = vsel %vm89, %v84, %v173
  %v177 = vsel %vm89, 0, %v175
  %v178 = vcosq.f32.pop %v176
  %v179 = vsinq.f32.pop %v176
  %vm180 = vweird.f32 %v84
  %v181 = vadd.s32 %v177, 3
  %v182 = vand.u32 %v181, 3
  %vm183 = vcmp.lt.s32.totalorder %v182, 2
  %vm184 = vcmp.eq.s32.totalorder %v182, 0
  %v185 = vxor.u32 %v179, 2147483648
  %v186 = vsel %vm184, %v178, %v185
  %vm187 = vcmp.eq.s32.totalorder %v182, 2
  %v188 = vxor.u32 %v178, 2147483648
  %v189 = vsel %vm187, %v188, %v179
  %v190 = vsel %vm183, %v186, %v189
  %v191 = vsel %vm180, nan, %v190
  %v192 = vand.u32 2147483647, %v84
  %vm193 = vcmp.le.f32.partialorder %v192, 0.7853982
  %vm194 = vcmp.lt.s32.totalorder %v84, 0
  %v195 = vand.u32 %v84, 2139095040
  %v196 = vshrl.u32 %v195, 23
  %v197 = vsub.s32 %v196, 127
  %v198 = vand.u32 2147483647, %v84
  %v199 = vand.u32 %v198, 8388607
  %v200 = vor.u32 %v199, 8388608
  %v201 = vsub.s32 0, %v200
  %v202 = vadd.s32 %v197, 1
  %vm203 = vcmp.gt.s32.totalorder %v202, 0
  %v204 = vsel %vm203, %v202, 0
  %v205 = vshrl.u32 %v204, 5
  %v206 = vand.u32 %v204, 31
  %v207 = vsub.s32 32, %v206
  %v208 = vshrl.u32 683565275, %v207
  %v209 = vshll.u32 683565275, %v206
  %v210 = vshrl.u32 2475754826, %v207
  %v211 = vor.u32 %v209, %v210
  %v212 = vshll.u32 2475754826, %v206
  %v213 = vshrl.u32 2131351028, %v207
  %v214 = vor.u32 %v212, %v213
  %v215 = vshll.u32 2131351028, %v206
  %v216 = vshrl.u32 2102212464, %v207
  %v217 = vor.u32 %v215, %v216
  %v218 = vshll.u32 2102212464, %v206
  %v219 = vshrl.u32 920167782, %v207
  %v220 = vor.u32 %v218, %v219
  %v221 = vshll.u32 920167782, %v206
  %v222 = vshrl.u32 1326507024, %v207
  %v223 = vor.u32 %v221, %v222
  %vm224 = vcmp.lt.s32.totalorder %v205, 1
  %vm225 = vcmp.lt.s32.totalorder %v205, 2
  %vm226 = vcmp.lt.s32.totalorder %v205, 3
  %vm227 = vcmp.lt.s32.totalorder %v205, 4
  %v228 = vsel %vm224, %v208, %v211
  %v229 = vsel %vm227, %v217, 2102212464
  %v230 = vsel %vm226, %v214, %v229
  %v231 = vsel %vm225, %v228, %v230
  %v232 = vsel %vm224, %v211, %v214
  %v233 = vsel %vm227, %v220, 920167782
  %v234 = vsel %vm226, %v217, %v233
  %v235 = vsel %vm225, %v232, %v234
  %v236 = vsel %vm224, %v214, %v217
  %v237 = vsel %vm227, %v223, 1326507024
  %v238 = vsel %vm226, %v220, %v237
  %v239 = vsel %vm225, %v236, %v238
  %v240 = vshll.u32 %v200, 8
  %v241 = vmul.u32.u64.compose %v240, %v239
  %v242 = vextract.low.u32 %v241
  %v243 = vextract.high.u32 %v241
  %v244 = vmul.u32.u64.compose %v240, %v235
  %v245 = vextract.low.u32 %v244
  %v246 = vextract.high.u32 %v244
  %v247 = vmul.u32 %v240, %v231
  %v248 = vadd.s32 %v243, %v245
  %vm249 = vc.u32 %v243, %v245
  %v250 = vadd.s32 %v246, 1
  %v251 = vsel %vm249, %v250, %v246
  %v252 = vadd.s32 %v247, %v251
  %v253 = vadd.s32 %v252, 536870912
  %v254 = vshrl.u32 %v253, 30
  %v255 = vshll.u32 %v254, 30
  %v256 = vsub.s32 %v252, %v255
  %vm257 = vcmp.lt.s32.totalorder %v256, 0
  %v258 = vsub.s32 0, %v256
  %v259 = vsel %vm257, %v258, %v256
  %v260 = vclz %v259
  %v261 = vsub.s32 %v260, 2
  %vm262 = vcmp.gt.s32.totalorder 0, %v261
  %v263 = vsel %vm262, 0, %v261
  %v264 = vsub.s32 32, %v263
  %v265 = vshll.u32 %v256, %v263
  %v266 = vshrl.u32 %v248, %v264
  %v267 = vor.u32 %v265, %v266
  %v268 = vsub.s32 4294967266, %v263
  %v269 = vadd.s32 %v268, 127
  %v270 = vshll.u32 %v269, 23
  %v271 = vor.u32 4788187, %v270
  %v272 = vand.u32 2147483647, %v271
  %v274 = vcvt.s32.f32 %v267
  %v275 = vmul.f32 %v274, %v272
  %v276 = vxor.u32 %v275, 2147483648
  %v277 = vsel %vm194, %v276, %v275
  %v278 = vsub.s32 4, %v254
  %v279 = vsel %vm194, %v278, %v254
  %v280 = vsel %vm193, %v84, %v277
  %v281 = vsel %vm193, 0, %v279
  %v282 = vcosq.f32.pop %v280
  %v283 = vsinq.f32.pop %v280
  %vm284 = vweird.f32 %v84
  %v285 = vand.u32 %v281, 3
  %vm286 = vcmp.lt.s32.totalorder %v285, 2
  %vm287 = vcmp.eq.s32.totalorder %v285, 0
  %v288 = vxor.u32 %v283, 2147483648
  %v289 = vsel %vm287, %v282, %v288
  %vm290 = vcmp.eq.s32.totalorder %v285, 2
  %v291 = vxor.u32 %v282, 2147483648
  %v292 = vsel %vm290, %v291, %v283
  %v293 = vsel %vm286, %v289, %v292
  %v294 = vsel %vm284, nan, %v293
  %v295 = vsel %vm87, 1, 0
  %vm296 = vcmp.eq.s32.totalorder %v295, 1
  %v297 = vsel %vm296, %v191, %v294
  %v298 = vld [vmem:[%s4] sm:$0xff]
  %v299 = vld [vmem:[%s4 + $0x8] sm:$0xff]
  %v300 = vld [vmem:[%s4 + $0x10] sm:$0xff]
  %v301 = vld [vmem:[%s4 + $0x18] sm:$0xff]
  %v302 = vld [vmem:[%s5] sm:$0x1]
  %v304 = vlaneseq
  %v305 = vshrl.u32 %v304, 7
  %v306 = vsub.s32 0, %v305
  %v307 = vrot.slane %v302, %v306
  %vm309 = vcmask 261120
  %v311 = vsel %vm309, %v297, 0
  %313 = vmatprep.subr.mxu0 0.0
  %314 = vmatpush1.msra.mxu0 0.0
  %315 = vmatprep.subr.mxu0 0.0
  %316 = vmatpush1.msra.mxu0 0.0
  %317 = vmatprep.subr.mxu0 0.0
  %318 = vmatpush1.msra.mxu0 0.0
  %319 = vmatprep.subr.mxu0 0.0
  %320 = vmatpush1.msra.mxu0 0.0
  %321 = vmatprep.subr.mxu0 0.0
  %322 = vmatpush1.msra.mxu0 0.0
  %323 = vmatprep.subr.mxu0 0.0
  %324 = vmatpush1.msra.mxu0 0.0
  %325 = vmatprep.subr.mxu0 0.0
  %326 = vmatpush1.msra.mxu0 0.0
  %327 = vmatprep.subr.mxu0 0.0
  %328 = vmatpush1.msra.mxu0 0.0
  %329 = vmatprep.subr.mxu0 0.0
  %330 = vmatpush1.msra.mxu0 0.0
  %331 = vmatprep.subr.mxu0 0.0
  %332 = vmatpush1.msra.mxu0 0.0
  %333 = vmatprep.subr.mxu0 0.0
  %334 = vmatpush1.msra.mxu0 0.0
  %335 = vmatprep.subr.mxu0 0.0
  %336 = vmatpush1.msra.mxu0 0.0
  %337 = vmatprep.subr.mxu0 0.0
  %338 = vmatpush1.msra.mxu0 %v301
  %339 = vmatprep.subr.mxu0 0.0
  %340 = vmatpush1.msra.mxu0 %v300
  %341 = vmatprep.subr.mxu0 0.0
  %342 = vmatpush1.msra.mxu0 %v299
  %343 = vmatprep.subr.mxu0 0.0
  %344 = vmatpush1.msra.mxu0 %v298
  %345 = vmatprep.subr.mxu0 0.0
  %346 = vmatpush2.msra.mxu0 0.0
  %347 = vmatprep.subr.mxu0 0.0
  %348 = vmatpush2.msra.mxu0 0.0
  %349 = vmatprep.subr.mxu0 0.0
  %350 = vmatpush2.msra.mxu0 0.0
  %351 = vmatprep.subr.mxu0 0.0
  %352 = vmatpush2.msra.mxu0 0.0
  %353 = vmatprep.subr.mxu0 0.0
  %354 = vmatpush2.msra.mxu0 0.0
  %355 = vmatprep.subr.mxu0 0.0
  %356 = vmatpush2.msra.mxu0 0.0
  %357 = vmatprep.subr.mxu0 0.0
  %358 = vmatpush2.msra.mxu0 0.0
  %359 = vmatprep.subr.mxu0 0.0
  %360 = vmatpush2.msra.mxu0 0.0
  %361 = vmatprep.subr.mxu0 0.0
  %362 = vmatpush2.msra.mxu0 0.0
  %363 = vmatprep.subr.mxu0 0.0
  %364 = vmatpush2.msra.mxu0 0.0
  %365 = vmatprep.subr.mxu0 0.0
  %366 = vmatpush2.msra.mxu0 0.0
  %367 = vmatprep.subr.mxu0 0.0
  %368 = vmatpush2.msra.mxu0 0.0
  %369 = vmatprep.subr.mxu0 0.0
  %370 = vmatpush2.msra.mxu0 0.0
  %371 = vmatprep.subr.mxu0 0.0
  %372 = vmatpush2.msra.mxu0 0.0
  %373 = vmatprep.subr.mxu0 0.0
  %374 = vmatpush2.msra.mxu0 0.0
  %375 = vmatprep.subr.mxu0 0.0
  %376 = vmatpush2.msra.mxu0 0.0
  %377 = vmatprep.mubr.f32.mxu0 0.0
  %378 = vmatmul.mubr.f32.gmra.mxu0 %v311
  %v379 = vpop.f32.mrf.mxu0
  %v380 = vadd.f32 %v307, %v379
  %v381 = vpop.f32.mrf.mxu0
  %382 = vdwg.mxu0
  %v383 = vxor.u32 %v380, 2147483648
  %v384 = vmul.f32 %v383, 1.442695
  %v385 = vpow.pop %v384
  %v386 = vadd.f32 %v385, 1.0
  %v387 = vrcp.pop %v386
  %v388 = vmul.f32 1.0, %v387
  %v389 = vmul.f32 %v380, %v388
  %v390 = vld [vmem:[%s6] sm:$0xff]
  %v391 = vld [vmem:[%s6 + $0x8] sm:$0xff]
  %v392 = vld [vmem:[%s6 + $0x10] sm:$0xff]
  %v393 = vld [vmem:[%s6 + $0x18] sm:$0xff]
  %v394 = vld [vmem:[%s6 + $0x20] sm:$0xff]
  %v395 = vld [vmem:[%s6 + $0x28] sm:$0xff]
  %v396 = vld [vmem:[%s6 + $0x30] sm:$0xff]
  %v397 = vld [vmem:[%s6 + $0x38] sm:$0xff]
  %v398 = vld [vmem:[%s6 + $0x40] sm:$0xff]
  %v399 = vld [vmem:[%s6 + $0x48] sm:$0xff]
  %v400 = vld [vmem:[%s6 + $0x50] sm:$0xff]
  %v401 = vld [vmem:[%s6 + $0x58] sm:$0xff]
  %v402 = vld [vmem:[%s6 + $0x60] sm:$0xff]
  %v403 = vld [vmem:[%s6 + $0x68] sm:$0xff]
  %v404 = vld [vmem:[%s6 + $0x70] sm:$0xff]
  %v405 = vld [vmem:[%s6 + $0x78] sm:$0xff]
  %v406 = vld [vmem:[%s7] sm:$0x1]
  %v408 = vlaneseq
  %v409 = vshrl.u32 %v408, 7
  %v410 = vsub.s32 0, %v409
  %v411 = vrot.slane %v406, %v410
  %413 = vmatprep.subr.mxu0 0.0
  %414 = vmatpush1.msra.mxu0 %v405
  %415 = vmatprep.subr.mxu0 0.0
  %416 = vmatpush1.msra.mxu0 %v404
  %417 = vmatprep.subr.mxu0 0.0
  %418 = vmatpush1.msra.mxu0 %v403
  %419 = vmatprep.subr.mxu0 0.0
  %420 = vmatpush1.msra.mxu0 %v402
  %421 = vmatprep.subr.mxu0 0.0
  %422 = vmatpush1.msra.mxu0 %v401
  %423 = vmatprep.subr.mxu0 0.0
  %424 = vmatpush1.msra.mxu0 %v400
  %425 = vmatprep.subr.mxu0 0.0
  %426 = vmatpush1.msra.mxu0 %v399
  %427 = vmatprep.subr.mxu0 0.0
  %428 = vmatpush1.msra.mxu0 %v398
  %429 = vmatprep.subr.mxu0 0.0
  %430 = vmatpush1.msra.mxu0 %v397
  %431 = vmatprep.subr.mxu0 0.0
  %432 = vmatpush1.msra.mxu0 %v396
  %433 = vmatprep.subr.mxu0 0.0
  %434 = vmatpush1.msra.mxu0 %v395
  %435 = vmatprep.subr.mxu0 0.0
  %436 = vmatpush1.msra.mxu0 %v394
  %437 = vmatprep.subr.mxu0 0.0
  %438 = vmatpush1.msra.mxu0 %v393
  %439 = vmatprep.subr.mxu0 0.0
  %440 = vmatpush1.msra.mxu0 %v392
  %441 = vmatprep.subr.mxu0 0.0
  %442 = vmatpush1.msra.mxu0 %v391
  %443 = vmatprep.subr.mxu0 0.0
  %444 = vmatpush1.msra.mxu0 %v390
  %445 = vmatprep.subr.mxu0 0.0
  %446 = vmatpush2.msra.mxu0 0.0
  %447 = vmatprep.subr.mxu0 0.0
  %448 = vmatpush2.msra.mxu0 0.0
  %449 = vmatprep.subr.mxu0 0.0
  %450 = vmatpush2.msra.mxu0 0.0
  %451 = vmatprep.subr.mxu0 0.0
  %452 = vmatpush2.msra.mxu0 0.0
  %453 = vmatprep.subr.mxu0 0.0
  %454 = vmatpush2.msra.mxu0 0.0
  %455 = vmatprep.subr.mxu0 0.0
  %456 = vmatpush2.msra.mxu0 0.0
  %457 = vmatprep.subr.mxu0 0.0
  %458 = vmatpush2.msra.mxu0 0.0
  %459 = vmatprep.subr.mxu0 0.0
  %460 = vmatpush2.msra.mxu0 0.0
  %461 = vmatprep.subr.mxu0 0.0
  %462 = vmatpush2.msra.mxu0 0.0
  %463 = vmatprep.subr.mxu0 0.0
  %464 = vmatpush2.msra.mxu0 0.0
  %465 = vmatprep.subr.mxu0 0.0
  %466 = vmatpush2.msra.mxu0 0.0
  %467 = vmatprep.subr.mxu0 0.0
  %468 = vmatpush2.msra.mxu0 0.0
  %469 = vmatprep.subr.mxu0 0.0
  %470 = vmatpush2.msra.mxu0 0.0
  %471 = vmatprep.subr.mxu0 0.0
  %472 = vmatpush2.msra.mxu0 0.0
  %473 = vmatprep.subr.mxu0 0.0
  %474 = vmatpush2.msra.mxu0 0.0
  %475 = vmatprep.subr.mxu0 0.0
  %476 = vmatpush2.msra.mxu0 0.0
  %477 = vmatprep.mubr.f32.mxu0 0.0
  %478 = vmatmul.mubr.f32.gmra.mxu0 %v389
  %v479 = vpop.f32.mrf.mxu0
  %v480 = vadd.f32 %v411, %v479
  %v481 = vpop.f32.mrf.mxu0
  %482 = vdwg.mxu0
  %v483 = vld [vmem:[%s0] sm:$0xff]
  %v484 = vld [vmem:[%s0 + $0x8] sm:$0xff]
  %v485 = vld [vmem:[%s8] sm:$0xff]
  %v486 = vld [vmem:[%s8 + $0x8] sm:$0xff]
  %v487 = vld [vmem:[%s8 + $0x10] sm:$0xff]
  %v488 = vld [vmem:[%s8 + $0x18] sm:$0xff]
  %v489 = vld [vmem:[%s1] sm:$0xf]
  %v490 = vld [vmem:[%s9] sm:$0xff]
  %v491 = vld [vmem:[%s9 + $0x8] sm:$0xff]
  %v492 = vld [vmem:[%s9 + $0x10] sm:$0xff]
  %v493 = vld [vmem:[%s9 + $0x18] sm:$0xff]
  %v494 = vld [vmem:[%s9 + $0x20] sm:$0xff]
  %v495 = vld [vmem:[%s9 + $0x28] sm:$0xff]
  %v496 = vld [vmem:[%s9 + $0x30] sm:$0xff]
  %v497 = vld [vmem:[%s9 + $0x38] sm:$0xff]
  %v498 = vld [vmem:[%s9 + $0x40] sm:$0xff]
  %v499 = vld [vmem:[%s9 + $0x48] sm:$0xff]
  %v500 = vld [vmem:[%s9 + $0x50] sm:$0xff]
  %v501 = vld [vmem:[%s9 + $0x58] sm:$0xff]
  %v502 = vld [vmem:[%s9 + $0x60] sm:$0xff]
  %v503 = vld [vmem:[%s9 + $0x68] sm:$0xff]
  %v504 = vld [vmem:[%s9 + $0x70] sm:$0xff]
  %v505 = vld [vmem:[%s9 + $0x78] sm:$0xff]
  %v506 = vld [vmem:[%s9 + $0x80] sm:$0xff]
  %v507 = vld [vmem:[%s9 + $0x88] sm:$0xff]
  %v508 = vld [vmem:[%s9 + $0x90] sm:$0xff]
  %v509 = vld [vmem:[%s9 + $0x98] sm:$0xff]
  %v510 = vld [vmem:[%s9 + $0xa0] sm:$0xff]
  %v511 = vld [vmem:[%s9 + $0xa8] sm:$0xff]
  %v512 = vld [vmem:[%s9 + $0xb0] sm:$0xff]
  %v513 = vld [vmem:[%s9 + $0xb8] sm:$0xff]
  %v516 = vunpack.c.l.s4 1983009808
  %v517 = vunpack.c.0.s8 %v516
  %v518 = vlaneseq
  %v519 = vshrl.u32 %v518, 7
  %v520 = vsub.s32 %v517, %v519
  %v521 = vrot.slane %v489, %v520
  %v522 = vcombine.high %v521, %v521
  %vm524 = vcmask 523264
  %v525 = vsel %vm524, %v522, 0
  %527 = vmatprep.subr.mxu0 0.0
  %528 = vmatpush1.msra.mxu0 %v505
  %529 = vmatprep.subr.mxu0 0.0
  %530 = vmatpush1.msra.mxu0 %v504
  %531 = vmatprep.subr.mxu0 0.0
  %532 = vmatpush1.msra.mxu0 %v503
  %533 = vmatprep.subr.mxu0 0.0
  %534 = vmatpush1.msra.mxu0 %v502
  %535 = vmatprep.subr.mxu0 0.0
  %536 = vmatpush1.msra.mxu0 %v501
  %537 = vmatprep.subr.mxu0 0.0
  %538 = vmatpush1.msra.mxu0 %v500
  %539 = vmatprep.subr.mxu0 0.0
  %540 = vmatpush1.msra.mxu0 %v499
  %541 = vmatprep.subr.mxu0 0.0
  %542 = vmatpush1.msra.mxu0 %v498
  %543 = vmatprep.subr.mxu0 0.0
  %544 = vmatpush1.msra.mxu0 %v497
  %545 = vmatprep.subr.mxu0 0.0
  %546 = vmatpush1.msra.mxu0 %v496
  %547 = vmatprep.subr.mxu0 0.0
  %548 = vmatpush1.msra.mxu0 %v495
  %549 = vmatprep.subr.mxu0 0.0
  %550 = vmatpush1.msra.mxu0 %v494
  %551 = vmatprep.subr.mxu0 0.0
  %552 = vmatpush1.msra.mxu0 %v493
  %553 = vmatprep.subr.mxu0 0.0
  %554 = vmatpush1.msra.mxu0 %v492
  %555 = vmatprep.subr.mxu0 0.0
  %556 = vmatpush1.msra.mxu0 %v491
  %557 = vmatprep.subr.mxu0 0.0
  %558 = vmatpush1.msra.mxu0 %v490
  %559 = vmatprep.subr.mxu0 0.0
  %560 = vmatpush2.msra.mxu0 0.0
  %561 = vmatprep.subr.mxu0 0.0
  %562 = vmatpush2.msra.mxu0 0.0
  %563 = vmatprep.subr.mxu0 0.0
  %564 = vmatpush2.msra.mxu0 0.0
  %565 = vmatprep.subr.mxu0 0.0
  %566 = vmatpush2.msra.mxu0 0.0
  %567 = vmatprep.subr.mxu0 0.0
  %568 = vmatpush2.msra.mxu0 0.0
  %569 = vmatprep.subr.mxu0 0.0
  %570 = vmatpush2.msra.mxu0 0.0
  %571 = vmatprep.subr.mxu0 0.0
  %572 = vmatpush2.msra.mxu0 0.0
  %573 = vmatprep.subr.mxu0 0.0
  %574 = vmatpush2.msra.mxu0 0.0
  %575 = vmatprep.subr.mxu0 0.0
  %576 = vmatpush2.msra.mxu0 %v513
  %577 = vmatprep.subr.mxu0 0.0
  %578 = vmatpush2.msra.mxu0 %v512
  %579 = vmatprep.subr.mxu0 0.0
  %580 = vmatpush2.msra.mxu0 %v511
  %581 = vmatprep.subr.mxu0 0.0
  %582 = vmatpush2.msra.mxu0 %v510
  %583 = vmatprep.subr.mxu0 0.0
  %584 = vmatpush2.msra.mxu0 %v509
  %585 = vmatprep.subr.mxu0 0.0
  %586 = vmatpush2.msra.mxu0 %v508
  %587 = vmatprep.subr.mxu0 0.0
  %588 = vmatpush2.msra.mxu0 %v507
  %589 = vmatprep.subr.mxu0 0.0
  %590 = vmatpush2.msra.mxu0 %v506
  %591 = vmatprep.mubr.f32.mxu0 %v525
  %592 = vmatmul.mubr.f32.gmra.mxu0 %v521
  %v593 = vpop.f32.mrf.mxu0
  %v594 = vadd.f32 %v480, %v593
  %v595 = vpop.f32.mrf.mxu0
  %596 = vdwg.mxu0
  %v597 = vld [vmem:[%s10] sm:$0x1]
  %v599 = vlaneseq
  %v600 = vshrl.u32 %v599, 7
  %v601 = vsub.s32 0, %v600
  %v602 = vrot.slane %v597, %v601
  %v604 = vadd.f32 %v594, %v602
  %v606 = vcombine.low %v604, %v604
  %v608 = vunpack.c.l.s4 1983009808
  %v609 = vunpack.c.0.s8 %v608
  %v610 = vlaneseq
  %v611 = vshrl.u32 %v610, 7
  %v612 = vsub.s32 %v609, %v611
  %v613 = vrot.slane %v606, %v612
  %v614 = vcombine.low %v613, %v613
  %v617 = vsel %vm309, %v483, 0
  %v620 = vsel %vm309, %v484, 0
  %622 = vmatprep.subr.mxu0 0.0
  %623 = vmatpush1.msra.mxu0 0.0
  %624 = vmatprep.subr.mxu0 0.0
  %625 = vmatpush1.msra.mxu0 0.0
  %626 = vmatprep.subr.mxu0 0.0
  %627 = vmatpush1.msra.mxu0 0.0
  %628 = vmatprep.subr.mxu0 0.0
  %629 = vmatpush1.msra.mxu0 0.0
  %630 = vmatprep.subr.mxu0 0.0
  %631 = vmatpush1.msra.mxu0 0.0
  %632 = vmatprep.subr.mxu0 0.0
  %633 = vmatpush1.msra.mxu0 0.0
  %634 = vmatprep.subr.mxu0 0.0
  %635 = vmatpush1.msra.mxu0 0.0
  %636 = vmatprep.subr.mxu0 0.0
  %637 = vmatpush1.msra.mxu0 0.0
  %638 = vmatprep.subr.mxu0 0.0
  %639 = vmatpush1.msra.mxu0 0.0
  %640 = vmatprep.subr.mxu0 0.0
  %641 = vmatpush1.msra.mxu0 0.0
  %642 = vmatprep.subr.mxu0 0.0
  %643 = vmatpush1.msra.mxu0 0.0
  %644 = vmatprep.subr.mxu0 0.0
  %645 = vmatpush1.msra.mxu0 0.0
  %646 = vmatprep.subr.mxu0 0.0
  %647 = vmatpush1.msra.mxu0 %v488
  %648 = vmatprep.subr.mxu0 0.0
  %649 = vmatpush1.msra.mxu0 %v487
  %650 = vmatprep.subr.mxu0 0.0
  %651 = vmatpush1.msra.mxu0 %v486
  %652 = vmatprep.subr.mxu0 0.0
  %653 = vmatpush1.msra.mxu0 %v485
  %654 = vmatprep.subr.mxu0 0.0
  %655 = vmatpush2.msra.mxu0 0.0
  %656 = vmatprep.subr.mxu0 0.0
  %657 = vmatpush2.msra.mxu0 0.0
  %658 = vmatprep.subr.mxu0 0.0
  %659 = vmatpush2.msra.mxu0 0.0
  %660 = vmatprep.subr.mxu0 0.0
  %661 = vmatpush2.msra.mxu0 0.0
  %662 = vmatprep.subr.mxu0 0.0
  %663 = vmatpush2.msra.mxu0 0.0
  %664 = vmatprep.subr.mxu0 0.0
  %665 = vmatpush2.msra.mxu0 0.0
  %666 = vmatprep.subr.mxu0 0.0
  %667 = vmatpush2.msra.mxu0 0.0
  %668 = vmatprep.subr.mxu0 0.0
  %669 = vmatpush2.msra.mxu0 0.0
  %670 = vmatprep.subr.mxu0 0.0
  %671 = vmatpush2.msra.mxu0 0.0
  %672 = vmatprep.subr.mxu0 0.0
  %673 = vmatpush2.msra.mxu0 0.0
  %674 = vmatprep.subr.mxu0 0.0
  %675 = vmatpush2.msra.mxu0 0.0
  %676 = vmatprep.subr.mxu0 0.0
  %677 = vmatpush2.msra.mxu0 0.0
  %678 = vmatprep.subr.mxu0 0.0
  %679 = vmatpush2.msra.mxu0 0.0
  %680 = vmatprep.subr.mxu0 0.0
  %681 = vmatpush2.msra.mxu0 0.0
  %682 = vmatprep.subr.mxu0 0.0
  %683 = vmatpush2.msra.mxu0 0.0
  %684 = vmatprep.subr.mxu0 0.0
  %685 = vmatpush2.msra.mxu0 0.0
  %686 = vmatprep.mubr.f32.mxu0 0.0
  %687 = vmatmul.mubr.f32.gmra.mxu0 %v617
  %v688 = vpop.f32.mrf.mxu0
  %v689 = vadd.f32 %v614, %v688
  %v690 = vpop.f32.mrf.mxu0
  %691 = vmatprep.mubr.f32.mxu0 0.0
  %692 = vmatmul.mubr.f32.gmra.mxu0 %v620
  %v693 = vpop.f32.mrf.mxu0
  %v694 = vadd.f32 %v614, %v693
  %v695 = vpop.f32.mrf.mxu0
  %696 = vdwg.mxu0
  %697 = vst.msk [vmem:[#allocation2] sm:$0xff] %vm524, 0.0
  %v698 = vsel %vm309, %v689, 0.0
  %699 = vadd.xlane.f32.xlu0 %v698
  %v700 = vpop.xlane.xlu0 %699
  %v701 = vsel %vm309, %v694, 0.0
  %702 = vadd.xlane.f32.xlu0 %v701
  %v703 = vpop.xlane.xlu0 %702
  %v704 = vrcp.pop 32.0
  %v705 = vmul.f32 %v700, %v704
  %v706 = vmul.f32 %v703, %v704
  %v707 = vsub.f32 %v689, %v705
  %v708 = vsub.f32 %v694, %v706
  %v709 = vmul.f32 %v707, %v707
  %v710 = vmul.f32 %v708, %v708
  %v711 = vsel %vm309, %v709, 0.0
  %712 = vadd.xlane.f32.xlu0 %v711
  %v713 = vpop.xlane.xlu0 %712
  %v714 = vsel %vm309, %v710, 0.0
  %715 = vadd.xlane.f32.xlu0 %v714
  %v716 = vpop.xlane.xlu0 %715
  %v717 = vmul.f32 %v713, %v704
  %v718 = vmul.f32 %v716, %v704
  %v719 = vadd.f32 %v717, 1e-05
  %v720 = vadd.f32 %v718, 1e-05
  %v721 = vrsqrt.pop %v719
  %v722 = vrsqrt.pop %v720
  %v723 = vmul.f32 %v707, %v721
  %v724 = vmul.f32 %v708, %v722
  %v725 = vld [vmem:[%s11] sm:$0xff]
  %v726 = vld [vmem:[%s11 + $0x8] sm:$0xff]
  %v727 = vld [vmem:[%s11 + $0x10] sm:$0xff]
  %v728 = vld [vmem:[%s11 + $0x18] sm:$0xff]
  %v729 = vld [vmem:[%s12] sm:$0x1]
  %v731 = vlaneseq
  %v732 = vshrl.u32 %v731, 7
  %v733 = vsub.s32 0, %v732
  %v734 = vrot.slane %v729, %v733
  %v737 = vsel %vm309, %v723, 0
  %v740 = vsel %vm309, %v724, 0
  %742 = vmatprep.subr.mxu0 0.0
  %743 = vmatpush1.msra.mxu0 0.0
  %744 = vmatprep.subr.mxu0 0.0
  %745 = vmatpush1.msra.mxu0 0.0
  %746 = vmatprep.subr.mxu0 0.0
  %747 = vmatpush1.msra.mxu0 0.0
  %748 = vmatprep.subr.mxu0 0.0
  %749 = vmatpush1.msra.mxu0 0.0
  %750 = vmatprep.subr.mxu0 0.0
  %751 = vmatpush1.msra.mxu0 0.0
  %752 = vmatprep.subr.mxu0 0.0
  %753 = vmatpush1.msra.mxu0 0.0
  %754 = vmatprep.subr.mxu0 0.0
  %755 = vmatpush1.msra.mxu0 0.0
  %756 = vmatprep.subr.mxu0 0.0
  %757 = vmatpush1.msra.mxu0 0.0
  %758 = vmatprep.subr.mxu0 0.0
  %759 = vmatpush1.msra.mxu0 0.0
  %760 = vmatprep.subr.mxu0 0.0
  %761 = vmatpush1.msra.mxu0 0.0
  %762 = vmatprep.subr.mxu0 0.0
  %763 = vmatpush1.msra.mxu0 0.0
  %764 = vmatprep.subr.mxu0 0.0
  %765 = vmatpush1.msra.mxu0 0.0
  %766 = vmatprep.subr.mxu0 0.0
  %767 = vmatpush1.msra.mxu0 %v728
  %768 = vmatprep.subr.mxu0 0.0
  %769 = vmatpush1.msra.mxu0 %v727
  %770 = vmatprep.subr.mxu0 0.0
  %771 = vmatpush1.msra.mxu0 %v726
  %772 = vmatprep.subr.mxu0 0.0
  %773 = vmatpush1.msra.mxu0 %v725
  %774 = vmatprep.subr.mxu0 0.0
  %775 = vmatpush2.msra.mxu0 0.0
  %776 = vmatprep.subr.mxu0 0.0
  %777 = vmatpush2.msra.mxu0 0.0
  %778 = vmatprep.subr.mxu0 0.0
  %779 = vmatpush2.msra.mxu0 0.0
  %780 = vmatprep.subr.mxu0 0.0
  %781 = vmatpush2.msra.mxu0 0.0
  %782 = vmatprep.subr.mxu0 0.0
  %783 = vmatpush2.msra.mxu0 0.0
  %784 = vmatprep.subr.mxu0 0.0
  %785 = vmatpush2.msra.mxu0 0.0
  %786 = vmatprep.subr.mxu0 0.0
  %787 = vmatpush2.msra.mxu0 0.0
  %788 = vmatprep.subr.mxu0 0.0
  %789 = vmatpush2.msra.mxu0 0.0
  %790 = vmatprep.subr.mxu0 0.0
  %791 = vmatpush2.msra.mxu0 0.0
  %792 = vmatprep.subr.mxu0 0.0
  %793 = vmatpush2.msra.mxu0 0.0
  %794 = vmatprep.subr.mxu0 0.0
  %795 = vmatpush2.msra.mxu0 0.0
  %796 = vmatprep.subr.mxu0 0.0
  %797 = vmatpush2.msra.mxu0 0.0
  %798 = vmatprep.subr.mxu0 0.0
  %799 = vmatpush2.msra.mxu0 0.0
  %800 = vmatprep.subr.mxu0 0.0
  %801 = vmatpush2.msra.mxu0 0.0
  %802 = vmatprep.subr.mxu0 0.0
  %803 = vmatpush2.msra.mxu0 0.0
  %804 = vmatprep.subr.mxu0 0.0
  %805 = vmatpush2.msra.mxu0 0.0
  %806 = vmatprep.mubr.f32.mxu0 0.0
  %807 = vmatmul.mubr.f32.gmra.mxu0 %v737
  %v808 = vpop.f32.mrf.mxu0
  %v809 = vadd.f32 %v734, %v808
  %v810 = vpop.f32.mrf.mxu0
  %811 = vmatprep.mubr.f32.mxu0 0.0
  %812 = vmatmul.mubr.f32.gmra.mxu0 %v740
  %v813 = vpop.f32.mrf.mxu0
  %v814 = vadd.f32 %v734, %v813
  %v815 = vpop.f32.mrf.mxu0
  %816 = vdwg.mxu0
  %817 = vst.msk [vmem:[#allocation2 + $0x8] sm:$0xff] %vm524, %v809
  %818 = vst.msk [vmem:[#allocation2 + $0x10] sm:$0xff] %vm524, %v814
  %v819 = vld [vmem:[%s13] sm:$0xf]
  %v820 = vlaneseq
  %v821 = vshrl.u32 %v820, 7
  %v822 = vsub.s32 3, %v821
  %v823 = vrot.slane %v819, %v822
  %v824 = vmul.f32 %v809, %v823
  %v825 = vmul.f32 %v814, %v823
  %v826 = vld [vmem:[%s14] sm:$0x1]
  %v828 = vlaneseq
  %v829 = vshrl.u32 %v828, 7
  %v830 = vsub.s32 0, %v829
  %v831 = vrot.slane %v826, %v830
  %v833 = vadd.f32 %v824, %v831
  %v834 = vadd.f32 %v825, %v831
  %v835 = vld [vmem:[#allocation2 + $0x6] sm:$0xff]
  %v836 = vld [vmem:[#allocation2 + $0xe] sm:$0xff]
  %v837 = vlaneseq
  %v838 = vshrl.u32 %v837, 7
  %v839 = vsub.s32 2, %v838
  %v840 = vrot.slane %v819, %v839
  %v841 = vmul.f32 %v835, %v840
  %v842 = vmul.f32 %v836, %v840
  %v843 = vadd.f32 %v833, %v841
  %v844 = vadd.f32 %v834, %v842
  %v845 = vld [vmem:[#allocation2 + $0x4] sm:$0xff]
  %v846 = vld [vmem:[#allocation2 + $0xc] sm:$0xff]
  %v847 = vlaneseq
  %v848 = vshrl.u32 %v847, 7
  %v849 = vsub.s32 1, %v848
  %v850 = vrot.slane %v819, %v849
  %v851 = vmul.f32 %v845, %v850
  %v852 = vmul.f32 %v846, %v850
  %v853 = vadd.f32 %v843, %v851
  %v854 = vadd.f32 %v844, %v852
  %v855 = vld [vmem:[#allocation2 + $0x2] sm:$0xff]
  %v856 = vld [vmem:[#allocation2 + $0xa] sm:$0xff]
  %v857 = vlaneseq
  %v858 = vshrl.u32 %v857, 7
  %v859 = vsub.s32 0, %v858
  %v860 = vrot.slane %v819, %v859
  %v861 = vmul.f32 %v855, %v860
  %v862 = vmul.f32 %v856, %v860
  %v863 = vadd.f32 %v853, %v861
  %v864 = vadd.f32 %v854, %v862
  %v865 = vxor.u32 %v863, 2147483648
  %v866 = vxor.u32 %v864, 2147483648
  %v867 = vmul.f32 %v865, 1.442695
  %v868 = vpow.pop %v867
  %v869 = vmul.f32 %v866, 1.442695
  %v870 = vpow.pop %v869
  %v871 = vadd.f32 %v868, 1.0
  %v872 = vadd.f32 %v870, 1.0
  %v873 = vrcp.pop %v871
  %v874 = vmul.f32 1.0, %v873
  %v875 = vrcp.pop %v872
  %v876 = vmul.f32 1.0, %v875
  %v877 = vmul.f32 %v863, %v874
  %v878 = vmul.f32 %v864, %v876
  %v879 = vld [vmem:[%s15] sm:$0xff]
  %v880 = vld [vmem:[%s15 + $0x8] sm:$0xff]
  %v881 = vld [vmem:[%s15 + $0x10] sm:$0xff]
  %v882 = vld [vmem:[%s15 + $0x18] sm:$0xff]
  %v883 = vld [vmem:[%s15 + $0x20] sm:$0xff]
  %v884 = vld [vmem:[%s15 + $0x28] sm:$0xff]
  %v885 = vld [vmem:[%s15 + $0x30] sm:$0xff]
  %v886 = vld [vmem:[%s15 + $0x38] sm:$0xff]
  %v887 = vld [vmem:[%s16] sm:$0x1]
  %v889 = vlaneseq
  %v890 = vshrl.u32 %v889, 7
  %v891 = vsub.s32 0, %v890
  %v892 = vrot.slane %v887, %v891
  %v895 = vsel %vm524, %v877, 0
  %v898 = vsel %vm524, %v878, 0
  %900 = vmatprep.subr.mxu0 0.0
  %901 = vmatpush1.msra.mxu0 0.0
  %902 = vmatprep.subr.mxu0 0.0
  %903 = vmatpush1.msra.mxu0 0.0
  %904 = vmatprep.subr.mxu0 0.0
  %905 = vmatpush1.msra.mxu0 0.0
  %906 = vmatprep.subr.mxu0 0.0
  %907 = vmatpush1.msra.mxu0 0.0
  %908 = vmatprep.subr.mxu0 0.0
  %909 = vmatpush1.msra.mxu0 0.0
  %910 = vmatprep.subr.mxu0 0.0
  %911 = vmatpush1.msra.mxu0 0.0
  %912 = vmatprep.subr.mxu0 0.0
  %913 = vmatpush1.msra.mxu0 0.0
  %914 = vmatprep.subr.mxu0 0.0
  %915 = vmatpush1.msra.mxu0 0.0
  %916 = vmatprep.subr.mxu0 0.0
  %917 = vmatpush1.msra.mxu0 %v886
  %918 = vmatprep.subr.mxu0 0.0
  %919 = vmatpush1.msra.mxu0 %v885
  %920 = vmatprep.subr.mxu0 0.0
  %921 = vmatpush1.msra.mxu0 %v884
  %922 = vmatprep.subr.mxu0 0.0
  %923 = vmatpush1.msra.mxu0 %v883
  %924 = vmatprep.subr.mxu0 0.0
  %925 = vmatpush1.msra.mxu0 %v882
  %926 = vmatprep.subr.mxu0 0.0
  %927 = vmatpush1.msra.mxu0 %v881
  %928 = vmatprep.subr.mxu0 0.0
  %929 = vmatpush1.msra.mxu0 %v880
  %930 = vmatprep.subr.mxu0 0.0
  %931 = vmatpush1.msra.mxu0 %v879
  %932 = vmatprep.subr.mxu0 0.0
  %933 = vmatpush2.msra.mxu0 0.0
  %934 = vmatprep.subr.mxu0 0.0
  %935 = vmatpush2.msra.mxu0 0.0
  %936 = vmatprep.subr.mxu0 0.0
  %937 = vmatpush2.msra.mxu0 0.0
  %938 = vmatprep.subr.mxu0 0.0
  %939 = vmatpush2.msra.mxu0 0.0
  %940 = vmatprep.subr.mxu0 0.0
  %941 = vmatpush2.msra.mxu0 0.0
  %942 = vmatprep.subr.mxu0 0.0
  %943 = vmatpush2.msra.mxu0 0.0
  %944 = vmatprep.subr.mxu0 0.0
  %945 = vmatpush2.msra.mxu0 0.0
  %946 = vmatprep.subr.mxu0 0.0
  %947 = vmatpush2.msra.mxu0 0.0
  %948 = vmatprep.subr.mxu0 0.0
  %949 = vmatpush2.msra.mxu0 0.0
  %950 = vmatprep.subr.mxu0 0.0
  %951 = vmatpush2.msra.mxu0 0.0
  %952 = vmatprep.subr.mxu0 0.0
  %953 = vmatpush2.msra.mxu0 0.0
  %954 = vmatprep.subr.mxu0 0.0
  %955 = vmatpush2.msra.mxu0 0.0
  %956 = vmatprep.subr.mxu0 0.0
  %957 = vmatpush2.msra.mxu0 0.0
  %958 = vmatprep.subr.mxu0 0.0
  %959 = vmatpush2.msra.mxu0 0.0
  %960 = vmatprep.subr.mxu0 0.0
  %961 = vmatpush2.msra.mxu0 0.0
  %962 = vmatprep.subr.mxu0 0.0
  %963 = vmatpush2.msra.mxu0 0.0
  %964 = vmatprep.mubr.f32.mxu0 0.0
  %965 = vmatmul.mubr.f32.gmra.mxu0 %v895
  %v966 = vpop.f32.mrf.mxu0
  %v967 = vadd.f32 %v892, %v966
  %v968 = vpop.f32.mrf.mxu0
  %969 = vmatprep.mubr.f32.mxu0 0.0
  %970 = vmatmul.mubr.f32.gmra.mxu0 %v898
  %v971 = vpop.f32.mrf.mxu0
  %v972 = vadd.f32 %v892, %v971
  %v973 = vpop.f32.mrf.mxu0
  %974 = vdwg.mxu0
  %v975 = vmax.f32 %v967, 0.0
  %v976 = vmax.f32 %v972, 0.0
  %vm977 = vcmp.ne.f32.partialorder %v967, %v967
  %vm978 = vcmp.ne.f32.partialorder %v972, %v972
  %v979 = vadd.f32 %v967, 0.0
  %v980 = vadd.f32 %v972, 0.0
  %v981 = vand.u32 2147483647, %v967
  %v982 = vand.u32 2147483647, %v972
  %v983 = vsub.f32 0.0, %v981
  %v984 = vsub.f32 0.0, %v982
  %v985 = vmul.f32 %v983, 1.442695
  %v986 = vpow.pop %v985
  %v987 = vmul.f32 %v984, 1.442695
  %v988 = vpow.pop %v987
  %v989 = vadd.f32 %v986, 1.0
  %v990 = vlog2.pop %v989
  %v991 = vmul.f32 %v990, 0.6931472
  %v992 = vmul.f32 -0.5, %v986
  %v993 = vadd.f32 %v992, 1.0
  %v994 = vmul.f32 %v993, %v986
  %v995 = vand.u32 2147483647, %v986
  %vm996 = vcmp.lt.f32.partialorder %v995, 0.0004427343
  %v997 = vsel %vm996, %v994, %v991
  %v998 = vadd.f32 %v988, 1.0
  %v999 = vlog2.pop %v998
  %v1000 = vmul.f32 %v999, 0.6931472
  %v1001 = vmul.f32 -0.5, %v988
  %v1002 = vadd.f32 %v1001, 1.0
  %v1003 = vmul.f32 %v1002, %v988
  %v1004 = vand.u32 2147483647, %v988
  %vm1005 = vcmp.lt.f32.partialorder %v1004, 0.0004427343
  %v1006 = vsel %vm1005, %v1003, %v1000
  %v1007 = vadd.f32 %v975, %v997
  %v1008 = vadd.f32 %v976, %v1006
  %v1009 = vsel %vm977, %v979, %v1007
  %v1010 = vsel %vm978, %v980, %v1008
  %v1011 = vld [vmem:[%s17] sm:$0xff]
  %v1012 = vld [vmem:[%s17 + $0x8] sm:$0xff]
  %v1015 = vcombine.high %v1009, %v1009
  %v1017 = vunpack.c.l.s4 1966171168
  %v1018 = vunpack.c.0.s8 %v1017
  %v1019 = vlaneseq
  %v1020 = vshrl.u32 %v1019, 7
  %v1021 = vsub.s32 %v1018, %v1020
  %v1022 = vrot.slane %v1009, %v1021
  %v1024 = vunpack.c.l.s4 1966171168
  %v1025 = vunpack.c.0.s8 %v1024
  %v1026 = vlaneseq
  %v1027 = vshrl.u32 %v1026, 7
  %v1028 = vsub.s32 %v1025, %v1027
  %v1029 = vrot.slane %v1015, %v1028
  %v1030 = vcombine.high %v1022, %v1022
  %v1031 = vcombine.high %v1029, %v1029
  %v1033 = vunpack.c.l.s4 1966171168
  %v1034 = vunpack.c.0.s8 %v1033
  %v1035 = vlaneseq
  %v1036 = vshrl.u32 %v1035, 7
  %v1037 = vsub.s32 %v1034, %v1036
  %v1038 = vrot.slane %v1022, %v1037
  %v1040 = vunpack.c.l.s4 1966171168
  %v1041 = vunpack.c.0.s8 %v1040
  %v1042 = vlaneseq
  %v1043 = vshrl.u32 %v1042, 7
  %v1044 = vsub.s32 %v1041, %v1043
  %v1045 = vrot.slane %v1029, %v1044
  %v1047 = vunpack.c.l.s4 1966171168
  %v1048 = vunpack.c.0.s8 %v1047
  %v1049 = vlaneseq
  %v1050 = vshrl.u32 %v1049, 7
  %v1051 = vsub.s32 %v1048, %v1050
  %v1052 = vrot.slane %v1030, %v1051
  %v1054 = vunpack.c.l.s4 1966171168
  %v1055 = vunpack.c.0.s8 %v1054
  %v1056 = vlaneseq
  %v1057 = vshrl.u32 %v1056, 7
  %v1058 = vsub.s32 %v1055, %v1057
  %v1059 = vrot.slane %v1031, %v1058
  %v1060 = vcombine.high %v1038, %v1038
  %v1061 = vcombine.high %v1045, %v1045
  %v1062 = vcombine.high %v1052, %v1052
  %v1063 = vcombine.high %v1059, %v1059
  %v1064 = vcombine.high %v1010, %v1010
  %v1066 = vunpack.c.l.s4 1966171168
  %v1067 = vunpack.c.0.s8 %v1066
  %v1068 = vlaneseq
  %v1069 = vshrl.u32 %v1068, 7
  %v1070 = vsub.s32 %v1067, %v1069
  %v1071 = vrot.slane %v1010, %v1070
  %v1073 = vunpack.c.l.s4 1966171168
  %v1074 = vunpack.c.0.s8 %v1073
  %v1075 = vlaneseq
  %v1076 = vshrl.u32 %v1075, 7
  %v1077 = vsub.s32 %v1074, %v1076
  %v1078 = vrot.slane %v1064, %v1077
  %v1079 = vcombine.high %v1071, %v1071
  %v1080 = vcombine.high %v1078, %v1078
  %v1082 = vunpack.c.l.s4 1966171168
  %v1083 = vunpack.c.0.s8 %v1082
  %v1084 = vlaneseq
  %v1085 = vshrl.u32 %v1084, 7
  %v1086 = vsub.s32 %v1083, %v1085
  %v1087 = vrot.slane %v1071, %v1086
  %v1089 = vunpack.c.l.s4 1966171168
  %v1090 = vunpack.c.0.s8 %v1089
  %v1091 = vlaneseq
  %v1092 = vshrl.u32 %v1091, 7
  %v1093 = vsub.s32 %v1090, %v1092
  %v1094 = vrot.slane %v1078, %v1093
  %v1096 = vunpack.c.l.s4 1966171168
  %v1097 = vunpack.c.0.s8 %v1096
  %v1098 = vlaneseq
  %v1099 = vshrl.u32 %v1098, 7
  %v1100 = vsub.s32 %v1097, %v1099
  %v1101 = vrot.slane %v1079, %v1100
  %v1103 = vunpack.c.l.s4 1966171168
  %v1104 = vunpack.c.0.s8 %v1103
  %v1105 = vlaneseq
  %v1106 = vshrl.u32 %v1105, 7
  %v1107 = vsub.s32 %v1104, %v1106
  %v1108 = vrot.slane %v1080, %v1107
  %v1109 = vcombine.high %v1087, %v1087
  %v1110 = vcombine.high %v1094, %v1094
  %v1111 = vcombine.high %v1101, %v1101
  %v1112 = vcombine.high %v1108, %v1108
  %v1113 = vlaneseq
  %v1114 = vshrl.u32 %v1113, 7
  %v1115 = vsub.s32 0, %v1114
  %v1116 = vrot.slane %v1038, %v1115
  %v1117 = vlaneseq
  %v1118 = vshrl.u32 %v1117, 7
  %v1119 = vsub.s32 0, %v1118
  %v1120 = vrot.slane %v1052, %v1119
  %v1121 = vlaneseq
  %v1122 = vshrl.u32 %v1121, 7
  %v1123 = vsub.s32 0, %v1122
  %v1124 = vrot.slane %v1060, %v1123
  %v1125 = vlaneseq
  %v1126 = vshrl.u32 %v1125, 7
  %v1127 = vsub.s32 0, %v1126
  %v1128 = vrot.slane %v1062, %v1127
  %v1129 = vlaneseq
  %v1130 = vshrl.u32 %v1129, 7
  %v1131 = vsub.s32 0, %v1130
  %v1132 = vrot.slane %v1045, %v1131
  %v1133 = vlaneseq
  %v1134 = vshrl.u32 %v1133, 7
  %v1135 = vsub.s32 0, %v1134
  %v1136 = vrot.slane %v1059, %v1135
  %v1137 = vlaneseq
  %v1138 = vshrl.u32 %v1137, 7
  %v1139 = vsub.s32 0, %v1138
  %v1140 = vrot.slane %v1061, %v1139
  %v1141 = vlaneseq
  %v1142 = vshrl.u32 %v1141, 7
  %v1143 = vsub.s32 0, %v1142
  %v1144 = vrot.slane %v1063, %v1143
  %v1145 = vlaneseq
  %v1146 = vshrl.u32 %v1145, 7
  %v1147 = vsub.s32 0, %v1146
  %v1148 = vrot.slane %v1087, %v1147
  %v1149 = vlaneseq
  %v1150 = vshrl.u32 %v1149, 7
  %v1151 = vsub.s32 0, %v1150
  %v1152 = vrot.slane %v1101, %v1151
  %v1153 = vlaneseq
  %v1154 = vshrl.u32 %v1153, 7
  %v1155 = vsub.s32 0, %v1154
  %v1156 = vrot.slane %v1109, %v1155
  %v1157 = vlaneseq
  %v1158 = vshrl.u32 %v1157, 7
  %v1159 = vsub.s32 0, %v1158
  %v1160 = vrot.slane %v1111, %v1159
  %v1161 = vlaneseq
  %v1162 = vshrl.u32 %v1161, 7
  %v1163 = vsub.s32 0, %v1162
  %v1164 = vrot.slane %v1094, %v1163
  %v1165 = vlaneseq
  %v1166 = vshrl.u32 %v1165, 7
  %v1167 = vsub.s32 0, %v1166
  %v1168 = vrot.slane %v1108, %v1167
  %v1169 = vlaneseq
  %v1170 = vshrl.u32 %v1169, 7
  %v1171 = vsub.s32 0, %v1170
  %v1172 = vrot.slane %v1110, %v1171
  %v1173 = vlaneseq
  %v1174 = vshrl.u32 %v1173, 7
  %v1175 = vsub.s32 0, %v1174
  %v1176 = vrot.slane %v1112, %v1175
  %v1193 = vmul.f32 %v1011, %v1116
  %v1194 = vmul.f32 %v1012, %v1116
  %v1195 = vmul.f32 %v1011, %v1120
  %v1196 = vmul.f32 %v1012, %v1120
  %v1197 = vmul.f32 %v1011, %v1124
  %v1198 = vmul.f32 %v1012, %v1124
  %v1199 = vmul.f32 %v1011, %v1128
  %v1200 = vmul.f32 %v1012, %v1128
  %v1201 = vmul.f32 %v1011, %v1132
  %v1202 = vmul.f32 %v1012, %v1132
  %v1203 = vmul.f32 %v1011, %v1136
  %v1204 = vmul.f32 %v1012, %v1136
  %v1205 = vmul.f32 %v1011, %v1140
  %v1206 = vmul.f32 %v1012, %v1140
  %v1207 = vmul.f32 %v1011, %v1144
  %v1208 = vmul.f32 %v1012, %v1144
  %v1209 = vmul.f32 %v1011, %v1148
  %v1210 = vmul.f32 %v1012, %v1148
  %v1211 = vmul.f32 %v1011, %v1152
  %v1212 = vmul.f32 %v1012, %v1152
  %v1213 = vmul.f32 %v1011, %v1156
  %v1214 = vmul.f32 %v1012, %v1156
  %v1215 = vmul.f32 %v1011, %v1160
  %v1216 = vmul.f32 %v1012, %v1160
  %v1217 = vmul.f32 %v1011, %v1164
  %v1218 = vmul.f32 %v1012, %v1164
  %v1219 = vmul.f32 %v1011, %v1168
  %v1220 = vmul.f32 %v1012, %v1168
  %v1221 = vmul.f32 %v1011, %v1172
  %v1222 = vmul.f32 %v1012, %v1172
  %v1223 = vmul.f32 %v1011, %v1176
  %v1224 = vmul.f32 %v1012, %v1176
  %v1225 = vmul.f32 %v1193, 1.442695
  %v1226 = vpow.pop %v1225
  %v1227 = vmul.f32 %v1194, 1.442695
  %v1228 = vpow.pop %v1227
  %v1229 = vmul.f32 %v1195, 1.442695
  %v1230 = vpow.pop %v1229
  %v1231 = vmul.f32 %v1196, 1.442695
  %v1232 = vpow.pop %v1231
  %v1233 = vmul.f32 %v1197, 1.442695
  %v1234 = vpow.pop %v1233
  %v1235 = vmul.f32 %v1198, 1.442695
  %v1236 = vpow.pop %v1235
  %v1237 = vmul.f32 %v1199, 1.442695
  %v1238 = vpow.pop %v1237
  %v1239 = vmul.f32 %v1200, 1.442695
  %v1240 = vpow.pop %v1239
  %v1241 = vmul.f32 %v1201, 1.442695
  %v1242 = vpow.pop %v1241
  %v1243 = vmul.f32 %v1202, 1.442695
  %v1244 = vpow.pop %v1243
  %v1245 = vmul.f32 %v1203, 1.442695
  %v1246 = vpow.pop %v1245
  %v1247 = vmul.f32 %v1204, 1.442695
  %v1248 = vpow.pop %v1247
  %v1249 = vmul.f32 %v1205, 1.442695
  %v1250 = vpow.pop %v1249
  %v1251 = vmul.f32 %v1206, 1.442695
  %v1252 = vpow.pop %v1251
  %v1253 = vmul.f32 %v1207, 1.442695
  %v1254 = vpow.pop %v1253
  %v1255 = vmul.f32 %v1208, 1.442695
  %v1256 = vpow.pop %v1255
  %v1257 = vmul.f32 %v1209, 1.442695
  %v1258 = vpow.pop %v1257
  %v1259 = vmul.f32 %v1210, 1.442695
  %v1260 = vpow.pop %v1259
  %v1261 = vmul.f32 %v1211, 1.442695
  %v1262 = vpow.pop %v1261
  %v1263 = vmul.f32 %v1212, 1.442695
  %v1264 = vpow.pop %v1263
  %v1265 = vmul.f32 %v1213, 1.442695
  %v1266 = vpow.pop %v1265
  %v1267 = vmul.f32 %v1214, 1.442695
  %v1268 = vpow.pop %v1267
  %v1269 = vmul.f32 %v1215, 1.442695
  %v1270 = vpow.pop %v1269
  %v1271 = vmul.f32 %v1216, 1.442695
  %v1272 = vpow.pop %v1271
  %v1273 = vmul.f32 %v1217, 1.442695
  %v1274 = vpow.pop %v1273
  %v1275 = vmul.f32 %v1218, 1.442695
  %v1276 = vpow.pop %v1275
  %v1277 = vmul.f32 %v1219, 1.442695
  %v1278 = vpow.pop %v1277
  %v1279 = vmul.f32 %v1220, 1.442695
  %v1280 = vpow.pop %v1279
  %v1281 = vmul.f32 %v1221, 1.442695
  %v1282 = vpow.pop %v1281
  %v1283 = vmul.f32 %v1222, 1.442695
  %v1284 = vpow.pop %v1283
  %v1285 = vmul.f32 %v1223, 1.442695
  %v1286 = vpow.pop %v1285
  %v1287 = vmul.f32 %v1224, 1.442695
  %v1288 = vpow.pop %v1287
  %1289 = vst.msk [vmem:[#allocation3] sm:$0xff] %vm524, %v1226
  %1290 = vst.msk [vmem:[#allocation3 + $0x8] sm:$0xff] %vm524, %v1228
  %1291 = vst.msk [vmem:[#allocation3 + $0x10] sm:$0xff] %vm524, %v1230
  %1292 = vst.msk [vmem:[#allocation3 + $0x18] sm:$0xff] %vm524, %v1232
  %1293 = vst.msk [vmem:[#allocation3 + $0x20] sm:$0xff] %vm524, %v1234
  %1294 = vst.msk [vmem:[#allocation3 + $0x28] sm:$0xff] %vm524, %v1236
  %1295 = vst.msk [vmem:[#allocation3 + $0x30] sm:$0xff] %vm524, %v1238
  %1296 = vst.msk [vmem:[#allocation3 + $0x38] sm:$0xff] %vm524, %v1240
  %1297 = vst.msk [vmem:[#allocation3 + $0x40] sm:$0xff] %vm524, %v1242
  %1298 = vst.msk [vmem:[#allocation3 + $0x48] sm:$0xff] %vm524, %v1244
  %1299 = vst.msk [vmem:[#allocation3 + $0x50] sm:$0xff] %vm524, %v1246
  %1300 = vst.msk [vmem:[#allocation3 + $0x58] sm:$0xff] %vm524, %v1248
  %1301 = vst.msk [vmem:[#allocation3 + $0x60] sm:$0xff] %vm524, %v1250
  %1302 = vst.msk [vmem:[#allocation3 + $0x68] sm:$0xff] %vm524, %v1252
  %1303 = vst.msk [vmem:[#allocation3 + $0x70] sm:$0xff] %vm524, %v1254
  %1304 = vst.msk [vmem:[#allocation3 + $0x78] sm:$0xff] %vm524, %v1256
  %1305 = vst.msk [vmem:[#allocation3 + $0x80] sm:$0xff] %vm524, %v1258
  %1306 = vst.msk [vmem:[#allocation3 + $0x88] sm:$0xff] %vm524, %v1260
  %1307 = vst.msk [vmem:[#allocation3 + $0x90] sm:$0xff] %vm524, %v1262
  %1308 = vst.msk [vmem:[#allocation3 + $0x98] sm:$0xff] %vm524, %v1264
  %1309 = vst.msk [vmem:[#allocation3 + $0xa0] sm:$0xff] %vm524, %v1266
  %1310 = vst.msk [vmem:[#allocation3 + $0xa8] sm:$0xff] %vm524, %v1268
  %1311 = vst.msk [vmem:[#allocation3 + $0xb0] sm:$0xff] %vm524, %v1270
  %1312 = vst.msk [vmem:[#allocation3 + $0xb8] sm:$0xff] %vm524, %v1272
  %1313 = vst.msk [vmem:[#allocation3 + $0xc0] sm:$0xff] %vm524, %v1274
  %1314 = vst.msk [vmem:[#allocation3 + $0xc8] sm:$0xff] %vm524, %v1276
  %1315 = vst.msk [vmem:[#allocation3 + $0xd0] sm:$0xff] %vm524, %v1278
  %1316 = vst.msk [vmem:[#allocation3 + $0xd8] sm:$0xff] %vm524, %v1280
  %1317 = vst.msk [vmem:[#allocation3 + $0xe0] sm:$0xff] %vm524, %v1282
  %1318 = vst.msk [vmem:[#allocation3 + $0xe8] sm:$0xff] %vm524, %v1284
  %1319 = vst.msk [vmem:[#allocation3 + $0xf0] sm:$0xff] %vm524, %v1286
  %1320 = vst.msk [vmem:[#allocation3 + $0xf8] sm:$0xff] %vm524, %v1288
  %v1321 = vlaneseq
  %v1322 = vshrl.u32 %v1321, 7
  %v1323 = vsub.s32 0, %v1322
  %v1324 = vrot.slane %v967, %v1323
  %s1326 = sor.u32 256, 64
  %1327 = vbcast.lane.b32.xlu0 %v1324, %s1326
  %v1328 = vpop.permute.xlu0 %1327
  %s1330 = sor.u32 256, 72
  %1331 = vbcast.lane.b32.xlu0 %v1324, %s1330
  %v1332 = vpop.permute.xlu0 %1331
  %v1333 = vlaneseq
  %v1334 = vshrl.u32 %v1333, 7
  %v1335 = vsub.s32 1, %v1334
  %v1336 = vrot.slane %v967, %v1335
  %s1338 = sor.u32 256, 64
  %1339 = vbcast.lane.b32.xlu0 %v1336, %s1338
  %v1340 = vpop.permute.xlu0 %1339
  %s1342 = sor.u32 256, 72
  %1343 = vbcast.lane.b32.xlu0 %v1336, %s1342
  %v1344 = vpop.permute.xlu0 %1343
  %v1345 = vlaneseq
  %v1346 = vshrl.u32 %v1345, 7
  %v1347 = vsub.s32 2, %v1346
  %v1348 = vrot.slane %v967, %v1347
  %s1350 = sor.u32 256, 64
  %1351 = vbcast.lane.b32.xlu0 %v1348, %s1350
  %v1352 = vpop.permute.xlu0 %1351
  %s1354 = sor.u32 256, 72
  %1355 = vbcast.lane.b32.xlu0 %v1348, %s1354
  %v1356 = vpop.permute.xlu0 %1355
  %v1357 = vlaneseq
  %v1358 = vshrl.u32 %v1357, 7
  %v1359 = vsub.s32 3, %v1358
  %v1360 = vrot.slane %v967, %v1359
  %s1362 = sor.u32 256, 64
  %1363 = vbcast.lane.b32.xlu0 %v1360, %s1362
  %v1364 = vpop.permute.xlu0 %1363
  %s1366 = sor.u32 256, 72
  %1367 = vbcast.lane.b32.xlu0 %v1360, %s1366
  %v1368 = vpop.permute.xlu0 %1367
  %v1369 = vlaneseq
  %v1370 = vshrl.u32 %v1369, 7
  %v1371 = vsub.s32 4, %v1370
  %v1372 = vrot.slane %v967, %v1371
  %s1374 = sor.u32 256, 64
  %1375 = vbcast.lane.b32.xlu0 %v1372, %s1374
  %v1376 = vpop.permute.xlu0 %1375
  %s1378 = sor.u32 256, 72
  %1379 = vbcast.lane.b32.xlu0 %v1372, %s1378
  %v1380 = vpop.permute.xlu0 %1379
  %v1381 = vlaneseq
  %v1382 = vshrl.u32 %v1381, 7
  %v1383 = vsub.s32 5, %v1382
  %v1384 = vrot.slane %v967, %v1383
  %s1386 = sor.u32 256, 64
  %1387 = vbcast.lane.b32.xlu0 %v1384, %s1386
  %v1388 = vpop.permute.xlu0 %1387
  %s1390 = sor.u32 256, 72
  %1391 = vbcast.lane.b32.xlu0 %v1384, %s1390
  %v1392 = vpop.permute.xlu0 %1391
  %v1393 = vlaneseq
  %v1394 = vshrl.u32 %v1393, 7
  %v1395 = vsub.s32 6, %v1394
  %v1396 = vrot.slane %v967, %v1395
  %s1398 = sor.u32 256, 64
  %1399 = vbcast.lane.b32.xlu0 %v1396, %s1398
  %v1400 = vpop.permute.xlu0 %1399
  %s1402 = sor.u32 256, 72
  %1403 = vbcast.lane.b32.xlu0 %v1396, %s1402
  %v1404 = vpop.permute.xlu0 %1403
  %v1405 = vlaneseq
  %v1406 = vshrl.u32 %v1405, 7
  %v1407 = vsub.s32 7, %v1406
  %v1408 = vrot.slane %v967, %v1407
  %s1410 = sor.u32 256, 64
  %1411 = vbcast.lane.b32.xlu0 %v1408, %s1410
  %v1412 = vpop.permute.xlu0 %1411
  %s1414 = sor.u32 256, 72
  %1415 = vbcast.lane.b32.xlu0 %v1408, %s1414
  %v1416 = vpop.permute.xlu0 %1415
  %v1417 = vlaneseq
  %v1418 = vshrl.u32 %v1417, 7
  %v1419 = vsub.s32 0, %v1418
  %v1420 = vrot.slane %v972, %v1419
  %s1422 = sor.u32 256, 64
  %1423 = vbcast.lane.b32.xlu0 %v1420, %s1422
  %v1424 = vpop.permute.xlu0 %1423
  %s1426 = sor.u32 256, 72
  %1427 = vbcast.lane.b32.xlu0 %v1420, %s1426
  %v1428 = vpop.permute.xlu0 %1427
  %v1429 = vlaneseq
  %v1430 = vshrl.u32 %v1429, 7
  %v1431 = vsub.s32 1, %v1430
  %v1432 = vrot.slane %v972, %v1431
  %s1434 = sor.u32 256, 64
  %1435 = vbcast.lane.b32.xlu0 %v1432, %s1434
  %v1436 = vpop.permute.xlu0 %1435
  %s1438 = sor.u32 256, 72
  %1439 = vbcast.lane.b32.xlu0 %v1432, %s1438
  %v1440 = vpop.permute.xlu0 %1439
  %v1441 = vlaneseq
  %v1442 = vshrl.u32 %v1441, 7
  %v1443 = vsub.s32 2, %v1442
  %v1444 = vrot.slane %v972, %v1443
  %s1446 = sor.u32 256, 64
  %1447 = vbcast.lane.b32.xlu0 %v1444, %s1446
  %v1448 = vpop.permute.xlu0 %1447
  %s1450 = sor.u32 256, 72
  %1451 = vbcast.lane.b32.xlu0 %v1444, %s1450
  %v1452 = vpop.permute.xlu0 %1451
  %v1453 = vlaneseq
  %v1454 = vshrl.u32 %v1453, 7
  %v1455 = vsub.s32 3, %v1454
  %v1456 = vrot.slane %v972, %v1455
  %s1458 = sor.u32 256, 64
  %1459 = vbcast.lane.b32.xlu0 %v1456, %s1458
  %v1460 = vpop.permute.xlu0 %1459
  %s1462 = sor.u32 256, 72
  %1463 = vbcast.lane.b32.xlu0 %v1456, %s1462
  %v1464 = vpop.permute.xlu0 %1463
  %v1465 = vlaneseq
  %v1466 = vshrl.u32 %v1465, 7
  %v1467 = vsub.s32 4, %v1466
  %v1468 = vrot.slane %v972, %v1467
  %s1470 = sor.u32 256, 64
  %1471 = vbcast.lane.b32.xlu0 %v1468, %s1470
  %v1472 = vpop.permute.xlu0 %1471
  %s1474 = sor.u32 256, 72
  %1475 = vbcast.lane.b32.xlu0 %v1468, %s1474
  %v1476 = vpop.permute.xlu0 %1475
  %v1477 = vlaneseq
  %v1478 = vshrl.u32 %v1477, 7
  %v1479 = vsub.s32 5, %v1478
  %v1480 = vrot.slane %v972, %v1479
  %s1482 = sor.u32 256, 64
  %1483 = vbcast.lane.b32.xlu0 %v1480, %s1482
  %v1484 = vpop.permute.xlu0 %1483
  %s1486 = sor.u32 256, 72
  %1487 = vbcast.lane.b32.xlu0 %v1480, %s1486
  %v1488 = vpop.permute.xlu0 %1487
  %v1489 = vlaneseq
  %v1490 = vshrl.u32 %v1489, 7
  %v1491 = vsub.s32 6, %v1490
  %v1492 = vrot.slane %v972, %v1491
  %s1494 = sor.u32 256, 64
  %1495 = vbcast.lane.b32.xlu0 %v1492, %s1494
  %v1496 = vpop.permute.xlu0 %1495
  %s1498 = sor.u32 256, 72
  %1499 = vbcast.lane.b32.xlu0 %v1492, %s1498
  %v1500 = vpop.permute.xlu0 %1499
  %v1501 = vlaneseq
  %v1502 = vshrl.u32 %v1501, 7
  %v1503 = vsub.s32 7, %v1502
  %v1504 = vrot.slane %v972, %v1503
  %s1506 = sor.u32 256, 64
  %1507 = vbcast.lane.b32.xlu0 %v1504, %s1506
  %v1508 = vpop.permute.xlu0 %1507
  %s1510 = sor.u32 256, 72
  %1511 = vbcast.lane.b32.xlu0 %v1504, %s1510
  %v1512 = vpop.permute.xlu0 %1511
  %1513 = vst.msk [vmem:[#allocation4] sm:$0xff] %vm524, %v1328
  %1514 = vst.msk [vmem:[#allocation4 + $0x8] sm:$0xff] %vm524, %v1332
  %1515 = vst.msk [vmem:[#allocation4 + $0x10] sm:$0xff] %vm524, %v1340
  %1516 = vst.msk [vmem:[#allocation4 + $0x18] sm:$0xff] %vm524, %v1344
  %1517 = vst.msk [vmem:[#allocation4 + $0x20] sm:$0xff] %vm524, %v1352
  %1518 = vst.msk [vmem:[#allocation4 + $0x28] sm:$0xff] %vm524, %v1356
  %1519 = vst.msk [vmem:[#allocation4 + $0x30] sm:$0xff] %vm524, %v1364
  %1520 = vst.msk [vmem:[#allocation4 + $0x38] sm:$0xff] %vm524, %v1368
  %1521 = vst.msk [vmem:[#allocation4 + $0x40] sm:$0xff] %vm524, %v1376
  %1522 = vst.msk [vmem:[#allocation4 + $0x48] sm:$0xff] %vm524, %v1380
  %1523 = vst.msk [vmem:[#allocation4 + $0x50] sm:$0xff] %vm524, %v1388
  %1524 = vst.msk [vmem:[#allocation4 + $0x58] sm:$0xff] %vm524, %v1392
  %1525 = vst.msk [vmem:[#allocation4 + $0x60] sm:$0xff] %vm524, %v1400
  %1526 = vst.msk [vmem:[#allocation4 + $0x68] sm:$0xff] %vm524, %v1404
  %1527 = vst.msk [vmem:[#allocation4 + $0x70] sm:$0xff] %vm524, %v1412
  %1528 = vst.msk [vmem:[#allocation4 + $0x78] sm:$0xff] %vm524, %v1416
  %1529 = vst.msk [vmem:[#allocation4 + $0x80] sm:$0xff] %vm524, %v1424
  %1530 = vst.msk [vmem:[#allocation4 + $0x88] sm:$0xff] %vm524, %v1428
  %1531 = vst.msk [vmem:[#allocation4 + $0x90] sm:$0xff] %vm524, %v1436
  %1532 = vst.msk [vmem:[#allocation4 + $0x98] sm:$0xff] %vm524, %v1440
  %1533 = vst.msk [vmem:[#allocation4 + $0xa0] sm:$0xff] %vm524, %v1448
  %1534 = vst.msk [vmem:[#allocation4 + $0xa8] sm:$0xff] %vm524, %v1452
  %1535 = vst.msk [vmem:[#allocation4 + $0xb0] sm:$0xff] %vm524, %v1460
  %1536 = vst.msk [vmem:[#allocation4 + $0xb8] sm:$0xff] %vm524, %v1464
  %1537 = vst.msk [vmem:[#allocation4 + $0xc0] sm:$0xff] %vm524, %v1472
  %1538 = vst.msk [vmem:[#allocation4 + $0xc8] sm:$0xff] %vm524, %v1476
  %1539 = vst.msk [vmem:[#allocation4 + $0xd0] sm:$0xff] %vm524, %v1484
  %1540 = vst.msk [vmem:[#allocation4 + $0xd8] sm:$0xff] %vm524, %v1488
  %1541 = vst.msk [vmem:[#allocation4 + $0xe0] sm:$0xff] %vm524, %v1496
  %1542 = vst.msk [vmem:[#allocation4 + $0xe8] sm:$0xff] %vm524, %v1500
  %1543 = vst.msk [vmem:[#allocation4 + $0xf0] sm:$0xff] %vm524, %v1508
  %1544 = vst.msk [vmem:[#allocation4 + $0xf8] sm:$0xff] %vm524, %v1512
  %v1545 = vld [vmem:[#allocation3] sm:$0xff]
  %v1546 = vld [vmem:[#allocation3 + $0x8] sm:$0xff]
  %v1547 = vld [vmem:[#allocation3 + $0x10] sm:$0xff]
  %v1548 = vld [vmem:[#allocation3 + $0x18] sm:$0xff]
  %v1549 = vmul.f32 %v1545, 0.0
  %v1550 = vmul.f32 %v1546, 0.0
  %v1551 = vmul.f32 %v1547, 0.0
  %v1552 = vmul.f32 %v1548, 0.0
  %v1553 = vld [vmem:[#allocation4] sm:$0xff]
  %v1554 = vld [vmem:[#allocation4 + $0x8] sm:$0xff]
  %v1555 = vld [vmem:[#allocation4 + $0x10] sm:$0xff]
  %v1556 = vld [vmem:[#allocation4 + $0x18] sm:$0xff]
  %v1557 = vadd.f32 %v1549, %v1553
  %v1558 = vadd.f32 %v1550, %v1554
  %v1559 = vadd.f32 %v1551, %v1555
  %v1560 = vadd.f32 %v1552, %v1556
  %1561 = vst.msk [vmem:[#allocation5] sm:$0xff] %vm524, %v1557
  %1562 = vst.msk [vmem:[#allocation5 + $0x8] sm:$0xff] %vm524, %v1558
  %1563 = vst.msk [vmem:[#allocation5 + $0x10] sm:$0xff] %vm524, %v1559
  %1564 = vst.msk [vmem:[#allocation5 + $0x18] sm:$0xff] %vm524, %v1560
  %s1565 = scalar_lea.vmem [#allocation3], 32
  %v1566 = vld [vmem:[%s1565] sm:$0xff]
  %v1567 = vld [vmem:[%s1565 + $0x8] sm:$0xff]
  %v1568 = vld [vmem:[%s1565 + $0x10] sm:$0xff]
  %v1569 = vld [vmem:[%s1565 + $0x18] sm:$0xff]
  %v1570 = vmul.f32 %v1557, %v1566
  %v1571 = vmul.f32 %v1558, %v1567
  %v1572 = vmul.f32 %v1559, %v1568
  %v1573 = vmul.f32 %v1560, %v1569
  %s1574 = scalar_lea.vmem [#allocation4], 32
  %v1575 = vld [vmem:[%s1574] sm:$0xff]
  %v1576 = vld [vmem:[%s1574 + $0x8] sm:$0xff]
  %v1577 = vld [vmem:[%s1574 + $0x10] sm:$0xff]
  %v1578 = vld [vmem:[%s1574 + $0x18] sm:$0xff]
  %v1579 = vadd.f32 %v1570, %v1575
  %v1580 = vadd.f32 %v1571, %v1576
  %v1581 = vadd.f32 %v1572, %v1577
  %v1582 = vadd.f32 %v1573, %v1578
  %s1583 = scalar_lea.vmem [#allocation5], 32
  %1584 = vst.msk [vmem:[%s1583] sm:$0xff] %vm524, %v1579
  %1585 = vst.msk [vmem:[%s1583 + $0x8] sm:$0xff] %vm524, %v1580
  %1586 = vst.msk [vmem:[%s1583 + $0x10] sm:$0xff] %vm524, %v1581
  %1587 = vst.msk [vmem:[%s1583 + $0x18] sm:$0xff] %vm524, %v1582
  %s1588 = scalar_lea.vmem [#allocation3], 64
  %v1589 = vld [vmem:[%s1588] sm:$0xff]
  %v1590 = vld [vmem:[%s1588 + $0x8] sm:$0xff]
  %v1591 = vld [vmem:[%s1588 + $0x10] sm:$0xff]
  %v1592 = vld [vmem:[%s1588 + $0x18] sm:$0xff]
  %v1593 = vmul.f32 %v1579, %v1589
  %v1594 = vmul.f32 %v1580, %v1590
  %v1595 = vmul.f32 %v1581, %v1591
  %v1596 = vmul.f32 %v1582, %v1592
  %s1597 = scalar_lea.vmem [#allocation4], 64
  %v1598 = vld [vmem:[%s1597] sm:$0xff]
  %v1599 = vld [vmem:[%s1597 + $0x8] sm:$0xff]
  %v1600 = vld [vmem:[%s1597 + $0x10] sm:$0xff]
  %v1601 = vld [vmem:[%s1597 + $0x18] sm:$0xff]
  %v1602 = vadd.f32 %v1593, %v1598
  %v1603 = vadd.f32 %v1594, %v1599
  %v1604 = vadd.f32 %v1595, %v1600
  %v1605 = vadd.f32 %v1596, %v1601
  %s1606 = scalar_lea.vmem [#allocation5], 64
  %1607 = vst.msk [vmem:[%s1606] sm:$0xff] %vm524, %v1602
  %1608 = vst.msk [vmem:[%s1606 + $0x8] sm:$0xff] %vm524, %v1603
  %1609 = vst.msk [vmem:[%s1606 + $0x10] sm:$0xff] %vm524, %v1604
  %1610 = vst.msk [vmem:[%s1606 + $0x18] sm:$0xff] %vm524, %v1605
  %s1611 = scalar_lea.vmem [#allocation3], 96
  %v1612 = vld [vmem:[%s1611] sm:$0xff]
  %v1613 = vld [vmem:[%s1611 + $0x8] sm:$0xff]
  %v1614 = vld [vmem:[%s1611 + $0x10] sm:$0xff]
  %v1615 = vld [vmem:[%s1611 + $0x18] sm:$0xff]
  %v1616 = vmul.f32 %v1602, %v1612
  %v1617 = vmul.f32 %v1603, %v1613
  %v1618 = vmul.f32 %v1604, %v1614
  %v1619 = vmul.f32 %v1605, %v1615
  %s1620 = scalar_lea.vmem [#allocation4], 96
  %v1621 = vld [vmem:[%s1620] sm:$0xff]
  %v1622 = vld [vmem:[%s1620 + $0x8] sm:$0xff]
  %v1623 = vld [vmem:[%s1620 + $0x10] sm:$0xff]
  %v1624 = vld [vmem:[%s1620 + $0x18] sm:$0xff]
  %v1625 = vadd.f32 %v1616, %v1621
  %v1626 = vadd.f32 %v1617, %v1622
  %v1627 = vadd.f32 %v1618, %v1623
  %v1628 = vadd.f32 %v1619, %v1624
  %s1629 = scalar_lea.vmem [#allocation5], 96
  %1630 = vst.msk [vmem:[%s1629] sm:$0xff] %vm524, %v1625
  %1631 = vst.msk [vmem:[%s1629 + $0x8] sm:$0xff] %vm524, %v1626
  %1632 = vst.msk [vmem:[%s1629 + $0x10] sm:$0xff] %vm524, %v1627
  %1633 = vst.msk [vmem:[%s1629 + $0x18] sm:$0xff] %vm524, %v1628
  %s1634 = scalar_lea.vmem [#allocation3], 128
  %v1635 = vld [vmem:[%s1634] sm:$0xff]
  %v1636 = vld [vmem:[%s1634 + $0x8] sm:$0xff]
  %v1637 = vld [vmem:[%s1634 + $0x10] sm:$0xff]
  %v1638 = vld [vmem:[%s1634 + $0x18] sm:$0xff]
  %v1639 = vmul.f32 %v1625, %v1635
  %v1640 = vmul.f32 %v1626, %v1636
  %v1641 = vmul.f32 %v1627, %v1637
  %v1642 = vmul.f32 %v1628, %v1638
  %s1643 = scalar_lea.vmem [#allocation4], 128
  %v1644 = vld [vmem:[%s1643] sm:$0xff]
  %v1645 = vld [vmem:[%s1643 + $0x8] sm:$0xff]
  %v1646 = vld [vmem:[%s1643 + $0x10] sm:$0xff]
  %v1647 = vld [vmem:[%s1643 + $0x18] sm:$0xff]
  %v1648 = vadd.f32 %v1639, %v1644
  %v1649 = vadd.f32 %v1640, %v1645
  %v1650 = vadd.f32 %v1641, %v1646
  %v1651 = vadd.f32 %v1642, %v1647
  %s1652 = scalar_lea.vmem [#allocation5], 128
  %1653 = vst.msk [vmem:[%s1652] sm:$0xff] %vm524, %v1648
  %1654 = vst.msk [vmem:[%s1652 + $0x8] sm:$0xff] %vm524, %v1649
  %1655 = vst.msk [vmem:[%s1652 + $0x10] sm:$0xff] %vm524, %v1650
  %1656 = vst.msk [vmem:[%s1652 + $0x18] sm:$0xff] %vm524, %v1651
  %s1657 = scalar_lea.vmem [#allocation3], 160
  %v1658 = vld [vmem:[%s1657] sm:$0xff]
  %v1659 = vld [vmem:[%s1657 + $0x8] sm:$0xff]
  %v1660 = vld [vmem:[%s1657 + $0x10] sm:$0xff]
  %v1661 = vld [vmem:[%s1657 + $0x18] sm:$0xff]
  %v1662 = vmul.f32 %v1648, %v1658
  %v1663 = vmul.f32 %v1649, %v1659
  %v1664 = vmul.f32 %v1650, %v1660
  %v1665 = vmul.f32 %v1651, %v1661
  %s1666 = scalar_lea.vmem [#allocation4], 160
  %v1667 = vld [vmem:[%s1666] sm:$0xff]
  %v1668 = vld [vmem:[%s1666 + $0x8] sm:$0xff]
  %v1669 = vld [vmem:[%s1666 + $0x10] sm:$0xff]
  %v1670 = vld [vmem:[%s1666 + $0x18] sm:$0xff]
  %v1671 = vadd.f32 %v1662, %v1667
  %v1672 = vadd.f32 %v1663, %v1668
  %v1673 = vadd.f32 %v1664, %v1669
  %v1674 = vadd.f32 %v1665, %v1670
  %s1675 = scalar_lea.vmem [#allocation5], 160
  %1676 = vst.msk [vmem:[%s1675] sm:$0xff] %vm524, %v1671
  %1677 = vst.msk [vmem:[%s1675 + $0x8] sm:$0xff] %vm524, %v1672
  %1678 = vst.msk [vmem:[%s1675 + $0x10] sm:$0xff] %vm524, %v1673
  %1679 = vst.msk [vmem:[%s1675 + $0x18] sm:$0xff] %vm524, %v1674
  %s1680 = scalar_lea.vmem [#allocation3], 192
  %v1681 = vld [vmem:[%s1680] sm:$0xff]
  %v1682 = vld [vmem:[%s1680 + $0x8] sm:$0xff]
  %v1683 = vld [vmem:[%s1680 + $0x10] sm:$0xff]
  %v1684 = vld [vmem:[%s1680 + $0x18] sm:$0xff]
  %v1685 = vmul.f32 %v1671, %v1681
  %v1686 = vmul.f32 %v1672, %v1682
  %v1687 = vmul.f32 %v1673, %v1683
  %v1688 = vmul.f32 %v1674, %v1684
  %s1689 = scalar_lea.vmem [#allocation4], 192
  %v1690 = vld [vmem:[%s1689] sm:$0xff]
  %v1691 = vld [vmem:[%s1689 + $0x8] sm:$0xff]
  %v1692 = vld [vmem:[%s1689 + $0x10] sm:$0xff]
  %v1693 = vld [vmem:[%s1689 + $0x18] sm:$0xff]
  %v1694 = vadd.f32 %v1685, %v1690
  %v1695 = vadd.f32 %v1686, %v1691
  %v1696 = vadd.f32 %v1687, %v1692
  %v1697 = vadd.f32 %v1688, %v1693
  %s1698 = scalar_lea.vmem [#allocation5], 192
  %1699 = vst.msk [vmem:[%s1698] sm:$0xff] %vm524, %v1694
  %1700 = vst.msk [vmem:[%s1698 + $0x8] sm:$0xff] %vm524, %v1695
  %1701 = vst.msk [vmem:[%s1698 + $0x10] sm:$0xff] %vm524, %v1696
  %1702 = vst.msk [vmem:[%s1698 + $0x18] sm:$0xff] %vm524, %v1697
  %s1703 = scalar_lea.vmem [#allocation3], 224
  %v1704 = vld [vmem:[%s1703] sm:$0xff]
  %v1705 = vld [vmem:[%s1703 + $0x8] sm:$0xff]
  %v1706 = vld [vmem:[%s1703 + $0x10] sm:$0xff]
  %v1707 = vld [vmem:[%s1703 + $0x18] sm:$0xff]
  %v1708 = vmul.f32 %v1694, %v1704
  %v1709 = vmul.f32 %v1695, %v1705
  %v1710 = vmul.f32 %v1696, %v1706
  %v1711 = vmul.f32 %v1697, %v1707
  %s1712 = scalar_lea.vmem [#allocation4], 224
  %v1713 = vld [vmem:[%s1712] sm:$0xff]
  %v1714 = vld [vmem:[%s1712 + $0x8] sm:$0xff]
  %v1715 = vld [vmem:[%s1712 + $0x10] sm:$0xff]
  %v1716 = vld [vmem:[%s1712 + $0x18] sm:$0xff]
  %v1717 = vadd.f32 %v1708, %v1713
  %v1718 = vadd.f32 %v1709, %v1714
  %v1719 = vadd.f32 %v1710, %v1715
  %v1720 = vadd.f32 %v1711, %v1716
  %s1721 = scalar_lea.vmem [#allocation5], 224
  %1722 = vst.msk [vmem:[%s1721] sm:$0xff] %vm524, %v1717
  %1723 = vst.msk [vmem:[%s1721 + $0x8] sm:$0xff] %vm524, %v1718
  %1724 = vst.msk [vmem:[%s1721 + $0x10] sm:$0xff] %vm524, %v1719
  %1725 = vst.msk [vmem:[%s1721 + $0x18] sm:$0xff] %vm524, %v1720
  %v1726 = vld [vmem:[#allocation5] sm:$0xff]
  %v1727 = vld [vmem:[#allocation5 + $0x8] sm:$0xff]
  %v1728 = vld [vmem:[#allocation5 + $0x10] sm:$0xff]
  %v1729 = vld [vmem:[#allocation5 + $0x18] sm:$0xff]
  %v1730 = vld [vmem:[#allocation5 + $0x20] sm:$0xff]
  %v1731 = vld [vmem:[#allocation5 + $0x28] sm:$0xff]
  %v1732 = vld [vmem:[#allocation5 + $0x30] sm:$0xff]
  %v1733 = vld [vmem:[#allocation5 + $0x38] sm:$0xff]
  %v1734 = vld [vmem:[#allocation5 + $0x40] sm:$0xff]
  %v1735 = vld [vmem:[#allocation5 + $0x48] sm:$0xff]
  %v1736 = vld [vmem:[#allocation5 + $0x50] sm:$0xff]
  %v1737 = vld [vmem:[#allocation5 + $0x58] sm:$0xff]
  %v1738 = vld [vmem:[#allocation5 + $0x60] sm:$0xff]
  %v1739 = vld [vmem:[#allocation5 + $0x68] sm:$0xff]
  %v1740 = vld [vmem:[#allocation5 + $0x70] sm:$0xff]
  %v1741 = vld [vmem:[#allocation5 + $0x78] sm:$0xff]
  %v1742 = vld [vmem:[#allocation5 + $0x80] sm:$0xff]
  %v1743 = vld [vmem:[#allocation5 + $0x88] sm:$0xff]
  %v1744 = vld [vmem:[#allocation5 + $0x90] sm:$0xff]
  %v1745 = vld [vmem:[#allocation5 + $0x98] sm:$0xff]
  %v1746 = vld [vmem:[#allocation5 + $0xa0] sm:$0xff]
  %v1747 = vld [vmem:[#allocation5 + $0xa8] sm:$0xff]
  %v1748 = vld [vmem:[#allocation5 + $0xb0] sm:$0xff]
  %v1749 = vld [vmem:[#allocation5 + $0xb8] sm:$0xff]
  %v1750 = vld [vmem:[#allocation5 + $0xc0] sm:$0xff]
  %v1751 = vld [vmem:[#allocation5 + $0xc8] sm:$0xff]
  %v1752 = vld [vmem:[#allocation5 + $0xd0] sm:$0xff]
  %v1753 = vld [vmem:[#allocation5 + $0xd8] sm:$0xff]
  %v1754 = vld [vmem:[#allocation5 + $0xe0] sm:$0xff]
  %v1755 = vld [vmem:[#allocation5 + $0xe8] sm:$0xff]
  %v1756 = vld [vmem:[#allocation5 + $0xf0] sm:$0xff]
  %v1757 = vld [vmem:[#allocation5 + $0xf8] sm:$0xff]
  %v1758 = vsel %vm524, %v1726, 0.0
  %v1759 = vsel %vm524, %v1727, 0.0
  %v1760 = vadd.f32 %v1758, %v1759
  %v1761 = vrot.slane %v1760, 4
  %v1762 = vadd.f32 %v1760, %v1761
  %v1763 = vrot.slane %v1762, 2
  %v1764 = vadd.f32 %v1762, %v1763
  %v1765 = vrot.slane %v1764, 1
  %v1766 = vadd.f32 %v1764, %v1765
  %v1767 = vsel %vm524, %v1728, 0.0
  %v1768 = vsel %vm524, %v1729, 0.0
  %v1769 = vadd.f32 %v1767, %v1768
  %v1770 = vrot.slane %v1769, 4
  %v1771 = vadd.f32 %v1769, %v1770
  %v1772 = vrot.slane %v1771, 2
  %v1773 = vadd.f32 %v1771, %v1772
  %v1774 = vrot.slane %v1773, 1
  %v1775 = vadd.f32 %v1773, %v1774
  %v1776 = vsel %vm524, %v1730, 0.0
  %v1777 = vsel %vm524, %v1731, 0.0
  %v1778 = vadd.f32 %v1776, %v1777
  %v1779 = vrot.slane %v1778, 4
  %v1780 = vadd.f32 %v1778, %v1779
  %v1781 = vrot.slane %v1780, 2
  %v1782 = vadd.f32 %v1780, %v1781
  %v1783 = vrot.slane %v1782, 1
  %v1784 = vadd.f32 %v1782, %v1783
  %v1785 = vsel %vm524, %v1732, 0.0
  %v1786 = vsel %vm524, %v1733, 0.0
  %v1787 = vadd.f32 %v1785, %v1786
  %v1788 = vrot.slane %v1787, 4
  %v1789 = vadd.f32 %v1787, %v1788
  %v1790 = vrot.slane %v1789, 2
  %v1791 = vadd.f32 %v1789, %v1790
  %v1792 = vrot.slane %v1791, 1
  %v1793 = vadd.f32 %v1791, %v1792
  %v1794 = vsel %vm524, %v1734, 0.0
  %v1795 = vsel %vm524, %v1735, 0.0
  %v1796 = vadd.f32 %v1794, %v1795
  %v1797 = vrot.slane %v1796, 4
  %v1798 = vadd.f32 %v1796, %v1797
  %v1799 = vrot.slane %v1798, 2
  %v1800 = vadd.f32 %v1798, %v1799
  %v1801 = vrot.slane %v1800, 1
  %v1802 = vadd.f32 %v1800, %v1801
  %v1803 = vsel %vm524, %v1736, 0.0
  %v1804 = vsel %vm524, %v1737, 0.0
  %v1805 = vadd.f32 %v1803, %v1804
  %v1806 = vrot.slane %v1805, 4
  %v1807 = vadd.f32 %v1805, %v1806
  %v1808 = vrot.slane %v1807, 2
  %v1809 = vadd.f32 %v1807, %v1808
  %v1810 = vrot.slane %v1809, 1
  %v1811 = vadd.f32 %v1809, %v1810
  %v1812 = vsel %vm524, %v1738, 0.0
  %v1813 = vsel %vm524, %v1739, 0.0
  %v1814 = vadd.f32 %v1812, %v1813
  %v1815 = vrot.slane %v1814, 4
  %v1816 = vadd.f32 %v1814, %v1815
  %v1817 = vrot.slane %v1816, 2
  %v1818 = vadd.f32 %v1816, %v1817
  %v1819 = vrot.slane %v1818, 1
  %v1820 = vadd.f32 %v1818, %v1819
  %v1821 = vsel %vm524, %v1740, 0.0
  %v1822 = vsel %vm524, %v1741, 0.0
  %v1823 = vadd.f32 %v1821, %v1822
  %v1824 = vrot.slane %v1823, 4
  %v1825 = vadd.f32 %v1823, %v1824
  %v1826 = vrot.slane %v1825, 2
  %v1827 = vadd.f32 %v1825, %v1826
  %v1828 = vrot.slane %v1827, 1
  %v1829 = vadd.f32 %v1827, %v1828
  %v1830 = vsel %vm524, %v1742, 0.0
  %v1831 = vsel %vm524, %v1743, 0.0
  %v1832 = vadd.f32 %v1830, %v1831
  %v1833 = vrot.slane %v1832, 4
  %v1834 = vadd.f32 %v1832, %v1833
  %v1835 = vrot.slane %v1834, 2
  %v1836 = vadd.f32 %v1834, %v1835
  %v1837 = vrot.slane %v1836, 1
  %v1838 = vadd.f32 %v1836, %v1837
  %v1839 = vsel %vm524, %v1744, 0.0
  %v1840 = vsel %vm524, %v1745, 0.0
  %v1841 = vadd.f32 %v1839, %v1840
  %v1842 = vrot.slane %v1841, 4
  %v1843 = vadd.f32 %v1841, %v1842
  %v1844 = vrot.slane %v1843, 2
  %v1845 = vadd.f32 %v1843, %v1844
  %v1846 = vrot.slane %v1845, 1
  %v1847 = vadd.f32 %v1845, %v1846
  %v1848 = vsel %vm524, %v1746, 0.0
  %v1849 = vsel %vm524, %v1747, 0.0
  %v1850 = vadd.f32 %v1848, %v1849
  %v1851 = vrot.slane %v1850, 4
  %v1852 = vadd.f32 %v1850, %v1851
  %v1853 = vrot.slane %v1852, 2
  %v1854 = vadd.f32 %v1852, %v1853
  %v1855 = vrot.slane %v1854, 1
  %v1856 = vadd.f32 %v1854, %v1855
  %v1857 = vsel %vm524, %v1748, 0.0
  %v1858 = vsel %vm524, %v1749, 0.0
  %v1859 = vadd.f32 %v1857, %v1858
  %v1860 = vrot.slane %v1859, 4
  %v1861 = vadd.f32 %v1859, %v1860
  %v1862 = vrot.slane %v1861, 2
  %v1863 = vadd.f32 %v1861, %v1862
  %v1864 = vrot.slane %v1863, 1
  %v1865 = vadd.f32 %v1863, %v1864
  %v1866 = vsel %vm524, %v1750, 0.0
  %v1867 = vsel %vm524, %v1751, 0.0
  %v1868 = vadd.f32 %v1866, %v1867
  %v1869 = vrot.slane %v1868, 4
  %v1870 = vadd.f32 %v1868, %v1869
  %v1871 = vrot.slane %v1870, 2
  %v1872 = vadd.f32 %v1870, %v1871
  %v1873 = vrot.slane %v1872, 1
  %v1874 = vadd.f32 %v1872, %v1873
  %v1875 = vsel %vm524, %v1752, 0.0
  %v1876 = vsel %vm524, %v1753, 0.0
  %v1877 = vadd.f32 %v1875, %v1876
  %v1878 = vrot.slane %v1877, 4
  %v1879 = vadd.f32 %v1877, %v1878
  %v1880 = vrot.slane %v1879, 2
  %v1881 = vadd.f32 %v1879, %v1880
  %v1882 = vrot.slane %v1881, 1
  %v1883 = vadd.f32 %v1881, %v1882
  %v1884 = vsel %vm524, %v1754, 0.0
  %v1885 = vsel %vm524, %v1755, 0.0
  %v1886 = vadd.f32 %v1884, %v1885
  %v1887 = vrot.slane %v1886, 4
  %v1888 = vadd.f32 %v1886, %v1887
  %v1889 = vrot.slane %v1888, 2
  %v1890 = vadd.f32 %v1888, %v1889
  %v1891 = vrot.slane %v1890, 1
  %v1892 = vadd.f32 %v1890, %v1891
  %v1893 = vsel %vm524, %v1756, 0.0
  %v1894 = vsel %vm524, %v1757, 0.0
  %v1895 = vadd.f32 %v1893, %v1894
  %v1896 = vrot.slane %v1895, 4
  %v1897 = vadd.f32 %v1895, %v1896
  %v1898 = vrot.slane %v1897, 2
  %v1899 = vadd.f32 %v1897, %v1898
  %v1900 = vrot.slane %v1899, 1
  %v1901 = vadd.f32 %v1899, %v1900
  %v1902 = vld [vmem:[%s18] sm:$0x1]
  %v1904 = vlaneseq
  %v1905 = vshrl.u32 %v1904, 7
  %v1906 = vsub.s32 0, %v1905
  %v1907 = vrot.slane %v1902, %v1906
  %v1909 = vmul.f32 %v1907, %v877
  %v1910 = vmul.f32 %v1907, %v878
  %v1913 = vrot.slane %v1909, 1
  %v1914 = vrot.slane %v1909, 2
  %v1915 = vrot.slane %v1909, 3
  %v1916 = vrot.slane %v1909, 4
  %v1917 = vrot.slane %v1909, 5
  %v1918 = vrot.slane %v1909, 6
  %v1919 = vrot.slane %v1909, 7
  %v1920 = vrot.slane %v1910, 1
  %v1921 = vrot.slane %v1910, 2
  %v1922 = vrot.slane %v1910, 3
  %v1923 = vrot.slane %v1910, 4
  %v1924 = vrot.slane %v1910, 5
  %v1925 = vrot.slane %v1910, 6
  %v1926 = vrot.slane %v1910, 7
  %v1943 = vadd.f32 %v1766, %v1909
  %v1944 = vadd.f32 %v1775, %v1913
  %v1945 = vadd.f32 %v1784, %v1914
  %v1946 = vadd.f32 %v1793, %v1915
  %v1947 = vadd.f32 %v1802, %v1916
  %v1948 = vadd.f32 %v1811, %v1917
  %v1949 = vadd.f32 %v1820, %v1918
  %v1950 = vadd.f32 %v1829, %v1919
  %v1951 = vadd.f32 %v1838, %v1910
  %v1952 = vadd.f32 %v1847, %v1920
  %v1953 = vadd.f32 %v1856, %v1921
  %v1954 = vadd.f32 %v1865, %v1922
  %v1955 = vadd.f32 %v1874, %v1923
  %v1956 = vadd.f32 %v1883, %v1924
  %v1957 = vadd.f32 %v1892, %v1925
  %v1958 = vadd.f32 %v1901, %v1926
  %v1959 = vxor.u32 %v809, 2147483648
  %v1960 = vxor.u32 %v814, 2147483648
  %v1961 = vmul.f32 %v1959, 1.442695
  %v1962 = vpow.pop %v1961
  %v1963 = vmul.f32 %v1960, 1.442695
  %v1964 = vpow.pop %v1963
  %v1965 = vadd.f32 %v1962, 1.0
  %v1966 = vadd.f32 %v1964, 1.0
  %v1967 = vrcp.pop %v1965
  %v1968 = vmul.f32 1.0, %v1967
  %v1969 = vrcp.pop %v1966
  %v1970 = vmul.f32 1.0, %v1969
  %v1971 = vmul.f32 %v809, %v1968
  %v1972 = vmul.f32 %v814, %v1970
  %v1975 = vrot.slane %v1971, 1
  %v1976 = vrot.slane %v1971, 2
  %v1977 = vrot.slane %v1971, 3
  %v1978 = vrot.slane %v1971, 4
  %v1979 = vrot.slane %v1971, 5
  %v1980 = vrot.slane %v1971, 6
  %v1981 = vrot.slane %v1971, 7
  %v1982 = vrot.slane %v1972, 1
  %v1983 = vrot.slane %v1972, 2
  %v1984 = vrot.slane %v1972, 3
  %v1985 = vrot.slane %v1972, 4
  %v1986 = vrot.slane %v1972, 5
  %v1987 = vrot.slane %v1972, 6
  %v1988 = vrot.slane %v1972, 7
  %1989 = vrot.lane.b32.xlu0 %v1971, 64
  %v1990 = vpop.permute.xlu0 %1989
  %1991 = vrot.lane.b32.xlu0 %v1975, 64
  %v1992 = vpop.permute.xlu0 %1991
  %1993 = vrot.lane.b32.xlu0 %v1976, 64
  %v1994 = vpop.permute.xlu0 %1993
  %1995 = vrot.lane.b32.xlu0 %v1977, 64
  %v1996 = vpop.permute.xlu0 %1995
  %1997 = vrot.lane.b32.xlu0 %v1978, 64
  %v1998 = vpop.permute.xlu0 %1997
  %1999 = vrot.lane.b32.xlu0 %v1979, 64
  %v2000 = vpop.permute.xlu0 %1999
  %2001 = vrot.lane.b32.xlu0 %v1980, 64
  %v2002 = vpop.permute.xlu0 %2001
  %2003 = vrot.lane.b32.xlu0 %v1981, 64
  %v2004 = vpop.permute.xlu0 %2003
  %2005 = vrot.lane.b32.xlu0 %v1972, 64
  %v2006 = vpop.permute.xlu0 %2005
  %2007 = vrot.lane.b32.xlu0 %v1982, 64
  %v2008 = vpop.permute.xlu0 %2007
  %2009 = vrot.lane.b32.xlu0 %v1983, 64
  %v2010 = vpop.permute.xlu0 %2009
  %2011 = vrot.lane.b32.xlu0 %v1984, 64
  %v2012 = vpop.permute.xlu0 %2011
  %2013 = vrot.lane.b32.xlu0 %v1985, 64
  %v2014 = vpop.permute.xlu0 %2013
  %2015 = vrot.lane.b32.xlu0 %v1986, 64
  %v2016 = vpop.permute.xlu0 %2015
  %2017 = vrot.lane.b32.xlu0 %v1987, 64
  %v2018 = vpop.permute.xlu0 %2017
  %2019 = vrot.lane.b32.xlu0 %v1988, 64
  %v2020 = vpop.permute.xlu0 %2019
  %v2037 = vmul.f32 %v1943, %v1990
  %v2038 = vmul.f32 %v1944, %v1992
  %v2039 = vmul.f32 %v1945, %v1994
  %v2040 = vmul.f32 %v1946, %v1996
  %v2041 = vmul.f32 %v1947, %v1998
  %v2042 = vmul.f32 %v1948, %v2000
  %v2043 = vmul.f32 %v1949, %v2002
  %v2044 = vmul.f32 %v1950, %v2004
  %v2045 = vmul.f32 %v1951, %v2006
  %v2046 = vmul.f32 %v1952, %v2008
  %v2047 = vmul.f32 %v1953, %v2010
  %v2048 = vmul.f32 %v1954, %v2012
  %v2049 = vmul.f32 %v1955, %v2014
  %v2050 = vmul.f32 %v1956, %v2016
  %v2051 = vmul.f32 %v1957, %v2018
  %v2052 = vmul.f32 %v1958, %v2020
  %v2053 = vld [vmem:[%s19] sm:$0xff]
  %v2054 = vld [vmem:[%s19 + $0x8] sm:$0xff]
  %v2055 = vld [vmem:[%s19 + $0x10] sm:$0xff]
  %v2056 = vld [vmem:[%s19 + $0x18] sm:$0xff]
  %v2057 = vld [vmem:[%s19 + $0x20] sm:$0xff]
  %v2058 = vld [vmem:[%s19 + $0x28] sm:$0xff]
  %v2059 = vld [vmem:[%s19 + $0x30] sm:$0xff]
  %v2060 = vld [vmem:[%s19 + $0x38] sm:$0xff]
  %v2077 = vrot.slane %v2038, 7
  %vm2078 = vcmask 1041409
  %v2079 = vsel %vm2078, %v2077, %v2037
  %v2080 = vrot.slane %v2039, 6
  %vm2081 = vcmask 1042434
  %v2082 = vsel %vm2081, %v2080, %v2079
  %v2083 = vrot.slane %v2040, 5
  %vm2084 = vcmask 1043459
  %v2085 = vsel %vm2084, %v2083, %v2082
  %v2086 = vrot.slane %v2041, 4
  %vm2087 = vcmask 1044484
  %v2088 = vsel %vm2087, %v2086, %v2085
  %v2089 = vrot.slane %v2042, 3
  %vm2090 = vcmask 1045509
  %v2091 = vsel %vm2090, %v2089, %v2088
  %v2092 = vrot.slane %v2043, 2
  %vm2093 = vcmask 1046534
  %v2094 = vsel %vm2093, %v2092, %v2091
  %v2095 = vrot.slane %v2044, 1
  %vm2096 = vcmask 1047559
  %v2097 = vsel %vm2096, %v2095, %v2094
  %v2098 = vrot.slane %v2046, 7
  %v2099 = vsel %vm2078, %v2098, %v2045
  %v2100 = vrot.slane %v2047, 6
  %v2101 = vsel %vm2081, %v2100, %v2099
  %v2102 = vrot.slane %v2048, 5
  %v2103 = vsel %vm2084, %v2102, %v2101
  %v2104 = vrot.slane %v2049, 4
  %v2105 = vsel %vm2087, %v2104, %v2103
  %v2106 = vrot.slane %v2050, 3
  %v2107 = vsel %vm2090, %v2106, %v2105
  %v2108 = vrot.slane %v2051, 2
  %v2109 = vsel %vm2093, %v2108, %v2107
  %v2110 = vrot.slane %v2052, 1
  %v2111 = vsel %vm2096, %v2110, %v2109
  %v2112 = vsel %vm524, %v2097, 0
  %v2114 = vsel %vm524, %v2111, 0
  %2116 = vmatprep.subr.mxu0 0.0
  %2117 = vmatpush1.msra.mxu0 0.0
  %2118 = vmatprep.subr.mxu0 0.0
  %2119 = vmatpush1.msra.mxu0 0.0
  %2120 = vmatprep.subr.mxu0 0.0
  %2121 = vmatpush1.msra.mxu0 0.0
  %2122 = vmatprep.subr.mxu0 0.0
  %2123 = vmatpush1.msra.mxu0 0.0
  %2124 = vmatprep.subr.mxu0 0.0
  %2125 = vmatpush1.msra.mxu0 0.0
  %2126 = vmatprep.subr.mxu0 0.0
  %2127 = vmatpush1.msra.mxu0 0.0
  %2128 = vmatprep.subr.mxu0 0.0
  %2129 = vmatpush1.msra.mxu0 0.0
  %2130 = vmatprep.subr.mxu0 0.0
  %2131 = vmatpush1.msra.mxu0 0.0
  %2132 = vmatprep.subr.mxu0 0.0
  %2133 = vmatpush1.msra.mxu0 %v2060
  %2134 = vmatprep.subr.mxu0 0.0
  %2135 = vmatpush1.msra.mxu0 %v2059
  %2136 = vmatprep.subr.mxu0 0.0
  %2137 = vmatpush1.msra.mxu0 %v2058
  %2138 = vmatprep.subr.mxu0 0.0
  %2139 = vmatpush1.msra.mxu0 %v2057
  %2140 = vmatprep.subr.mxu0 0.0
  %2141 = vmatpush1.msra.mxu0 %v2056
  %2142 = vmatprep.subr.mxu0 0.0
  %2143 = vmatpush1.msra.mxu0 %v2055
  %2144 = vmatprep.subr.mxu0 0.0
  %2145 = vmatpush1.msra.mxu0 %v2054
  %2146 = vmatprep.subr.mxu0 0.0
  %2147 = vmatpush1.msra.mxu0 %v2053
  %2148 = vmatprep.subr.mxu0 0.0
  %2149 = vmatpush2.msra.mxu0 0.0
  %2150 = vmatprep.subr.mxu0 0.0
  %2151 = vmatpush2.msra.mxu0 0.0
  %2152 = vmatprep.subr.mxu0 0.0
  %2153 = vmatpush2.msra.mxu0 0.0
  %2154 = vmatprep.subr.mxu0 0.0
  %2155 = vmatpush2.msra.mxu0 0.0
  %2156 = vmatprep.subr.mxu0 0.0
  %2157 = vmatpush2.msra.mxu0 0.0
  %2158 = vmatprep.subr.mxu0 0.0
  %2159 = vmatpush2.msra.mxu0 0.0
  %2160 = vmatprep.subr.mxu0 0.0
  %2161 = vmatpush2.msra.mxu0 0.0
  %2162 = vmatprep.subr.mxu0 0.0
  %2163 = vmatpush2.msra.mxu0 0.0
  %2164 = vmatprep.subr.mxu0 0.0
  %2165 = vmatpush2.msra.mxu0 0.0
  %2166 = vmatprep.subr.mxu0 0.0
  %2167 = vmatpush2.msra.mxu0 0.0
  %2168 = vmatprep.subr.mxu0 0.0
  %2169 = vmatpush2.msra.mxu0 0.0
  %2170 = vmatprep.subr.mxu0 0.0
  %2171 = vmatpush2.msra.mxu0 0.0
  %2172 = vmatprep.subr.mxu0 0.0
  %2173 = vmatpush2.msra.mxu0 0.0
  %2174 = vmatprep.subr.mxu0 0.0
  %2175 = vmatpush2.msra.mxu0 0.0
  %2176 = vmatprep.subr.mxu0 0.0
  %2177 = vmatpush2.msra.mxu0 0.0
  %2178 = vmatprep.subr.mxu0 0.0
  %2179 = vmatpush2.msra.mxu0 0.0
  %2180 = vmatprep.mubr.f32.mxu0 0.0
  %2181 = vmatmul.mubr.f32.gmra.mxu0 %v2112
  %v2182 = vpop.f32.mrf.mxu0
  %v2183 = vadd.f32 0.0, %v2182
  %v2184 = vpop.f32.mrf.mxu0
  %2185 = vmatprep.mubr.f32.mxu0 0.0
  %2186 = vmatmul.mubr.f32.gmra.mxu0 %v2114
  %v2187 = vpop.f32.mrf.mxu0
  %v2188 = vadd.f32 0.0, %v2187
  %v2189 = vpop.f32.mrf.mxu0
  %2190 = vdwg.mxu0
  %v2191 = vadd.f32 %v689, %v2183
  %v2192 = vadd.f32 %v694, %v2188
  %v2193 = vsel %vm309, %v2191, 0.0
  %2194 = vadd.xlane.f32.xlu0 %v2193
  %v2195 = vpop.xlane.xlu0 %2194
  %v2196 = vsel %vm309, %v2192, 0.0
  %2197 = vadd.xlane.f32.xlu0 %v2196
  %v2198 = vpop.xlane.xlu0 %2197
  %v2199 = vmul.f32 %v2195, %v704
  %v2200 = vmul.f32 %v2198, %v704
  %v2201 = vsub.f32 %v2191, %v2199
  %v2202 = vsub.f32 %v2192, %v2200
  %v2203 = vmul.f32 %v2201, %v2201
  %v2204 = vmul.f32 %v2202, %v2202
  %v2205 = vsel %vm309, %v2203, 0.0
  %2206 = vadd.xlane.f32.xlu0 %v2205
  %v2207 = vpop.xlane.xlu0 %2206
  %v2208 = vsel %vm309, %v2204, 0.0
  %2209 = vadd.xlane.f32.xlu0 %v2208
  %v2210 = vpop.xlane.xlu0 %2209
  %v2211 = vmul.f32 %v2207, %v704
  %v2212 = vmul.f32 %v2210, %v704
  %v2213 = vadd.f32 %v2211, 1e-05
  %v2214 = vadd.f32 %v2212, 1e-05
  %v2215 = vrsqrt.pop %v2213
  %v2216 = vrsqrt.pop %v2214
  %v2217 = vmul.f32 %v2201, %v2215
  %v2218 = vmul.f32 %v2202, %v2216
  %s2219 = scalar_lea.vmem %s11, 32
  %v2220 = vld [vmem:[%s2219] sm:$0xff]
  %v2221 = vld [vmem:[%s2219 + $0x8] sm:$0xff]
  %v2222 = vld [vmem:[%s2219 + $0x10] sm:$0xff]
  %v2223 = vld [vmem:[%s2219 + $0x18] sm:$0xff]
  %s2224 = scalar_lea.vmem %s12, 1
  %v2225 = vld [vmem:[%s2224] sm:$0x1]
  %v2227 = vlaneseq
  %v2228 = vshrl.u32 %v2227, 7
  %v2229 = vsub.s32 0, %v2228
  %v2230 = vrot.slane %v2225, %v2229
  %v2233 = vsel %vm309, %v2217, 0
  %v2236 = vsel %vm309, %v2218, 0
  %2238 = vmatprep.subr.mxu0 0.0
  %2239 = vmatpush1.msra.mxu0 0.0
  %2240 = vmatprep.subr.mxu0 0.0
  %2241 = vmatpush1.msra.mxu0 0.0
  %2242 = vmatprep.subr.mxu0 0.0
  %2243 = vmatpush1.msra.mxu0 0.0
  %2244 = vmatprep.subr.mxu0 0.0
  %2245 = vmatpush1.msra.mxu0 0.0
  %2246 = vmatprep.subr.mxu0 0.0
  %2247 = vmatpush1.msra.mxu0 0.0
  %2248 = vmatprep.subr.mxu0 0.0
  %2249 = vmatpush1.msra.mxu0 0.0
  %2250 = vmatprep.subr.mxu0 0.0
  %2251 = vmatpush1.msra.mxu0 0.0
  %2252 = vmatprep.subr.mxu0 0.0
  %2253 = vmatpush1.msra.mxu0 0.0
  %2254 = vmatprep.subr.mxu0 0.0
  %2255 = vmatpush1.msra.mxu0 0.0
  %2256 = vmatprep.subr.mxu0 0.0
  %2257 = vmatpush1.msra.mxu0 0.0
  %2258 = vmatprep.subr.mxu0 0.0
  %2259 = vmatpush1.msra.mxu0 0.0
  %2260 = vmatprep.subr.mxu0 0.0
  %2261 = vmatpush1.msra.mxu0 0.0
  %2262 = vmatprep.subr.mxu0 0.0
  %2263 = vmatpush1.msra.mxu0 %v2223
  %2264 = vmatprep.subr.mxu0 0.0
  %2265 = vmatpush1.msra.mxu0 %v2222
  %2266 = vmatprep.subr.mxu0 0.0
  %2267 = vmatpush1.msra.mxu0 %v2221
  %2268 = vmatprep.subr.mxu0 0.0
  %2269 = vmatpush1.msra.mxu0 %v2220
  %2270 = vmatprep.subr.mxu0 0.0
  %2271 = vmatpush2.msra.mxu0 0.0
  %2272 = vmatprep.subr.mxu0 0.0
  %2273 = vmatpush2.msra.mxu0 0.0
  %2274 = vmatprep.subr.mxu0 0.0
  %2275 = vmatpush2.msra.mxu0 0.0
  %2276 = vmatprep.subr.mxu0 0.0
  %2277 = vmatpush2.msra.mxu0 0.0
  %2278 = vmatprep.subr.mxu0 0.0
  %2279 = vmatpush2.msra.mxu0 0.0
  %2280 = vmatprep.subr.mxu0 0.0
  %2281 = vmatpush2.msra.mxu0 0.0
  %2282 = vmatprep.subr.mxu0 0.0
  %2283 = vmatpush2.msra.mxu0 0.0
  %2284 = vmatprep.subr.mxu0 0.0
  %2285 = vmatpush2.msra.mxu0 0.0
  %2286 = vmatprep.subr.mxu0 0.0
  %2287 = vmatpush2.msra.mxu0 0.0
  %2288 = vmatprep.subr.mxu0 0.0
  %2289 = vmatpush2.msra.mxu0 0.0
  %2290 = vmatprep.subr.mxu0 0.0
  %2291 = vmatpush2.msra.mxu0 0.0
  %2292 = vmatprep.subr.mxu0 0.0
  %2293 = vmatpush2.msra.mxu0 0.0
  %2294 = vmatprep.subr.mxu0 0.0
  %2295 = vmatpush2.msra.mxu0 0.0
  %2296 = vmatprep.subr.mxu0 0.0
  %2297 = vmatpush2.msra.mxu0 0.0
  %2298 = vmatprep.subr.mxu0 0.0
  %2299 = vmatpush2.msra.mxu0 0.0
  %2300 = vmatprep.subr.mxu0 0.0
  %2301 = vmatpush2.msra.mxu0 0.0
  %2302 = vmatprep.mubr.f32.mxu0 0.0
  %2303 = vmatmul.mubr.f32.gmra.mxu0 %v2233
  %v2304 = vpop.f32.mrf.mxu0
  %v2305 = vadd.f32 %v2230, %v2304
  %v2306 = vpop.f32.mrf.mxu0
  %2307 = vmatprep.mubr.f32.mxu0 0.0
  %2308 = vmatmul.mubr.f32.gmra.mxu0 %v2236
  %v2309 = vpop.f32.mrf.mxu0
  %v2310 = vadd.f32 %v2230, %v2309
  %v2311 = vpop.f32.mrf.mxu0
  %2312 = vdwg.mxu0
  %2313 = vst.msk [vmem:[#allocation2 + $0x8] sm:$0xff] %vm524, %v2305
  %2314 = vst.msk [vmem:[#allocation2 + $0x10] sm:$0xff] %vm524, %v2310
  %s2315 = scalar_lea.vmem %s13, 4
  %v2316 = vld [vmem:[%s2315] sm:$0xf]
  %v2317 = vlaneseq
  %v2318 = vshrl.u32 %v2317, 7
  %v2319 = vsub.s32 3, %v2318
  %v2320 = vrot.slane %v2316, %v2319
  %v2321 = vmul.f32 %v2305, %v2320
  %v2322 = vmul.f32 %v2310, %v2320
  %s2323 = scalar_lea.vmem %s14, 1
  %v2324 = vld [vmem:[%s2323] sm:$0x1]
  %v2326 = vlaneseq
  %v2327 = vshrl.u32 %v2326, 7
  %v2328 = vsub.s32 0, %v2327
  %v2329 = vrot.slane %v2324, %v2328
  %v2331 = vadd.f32 %v2321, %v2329
  %v2332 = vadd.f32 %v2322, %v2329
  %v2333 = vld [vmem:[#allocation2 + $0x6] sm:$0xff]
  %v2334 = vld [vmem:[#allocation2 + $0xe] sm:$0xff]
  %v2335 = vlaneseq
  %v2336 = vshrl.u32 %v2335, 7
  %v2337 = vsub.s32 2, %v2336
  %v2338 = vrot.slane %v2316, %v2337
  %v2339 = vmul.f32 %v2333, %v2338
  %v2340 = vmul.f32 %v2334, %v2338
  %v2341 = vadd.f32 %v2331, %v2339
  %v2342 = vadd.f32 %v2332, %v2340
  %v2343 = vld [vmem:[#allocation2 + $0x4] sm:$0xff]
  %v2344 = vld [vmem:[#allocation2 + $0xc] sm:$0xff]
  %v2345 = vlaneseq
  %v2346 = vshrl.u32 %v2345, 7
  %v2347 = vsub.s32 1, %v2346
  %v2348 = vrot.slane %v2316, %v2347
  %v2349 = vmul.f32 %v2343, %v2348
  %v2350 = vmul.f32 %v2344, %v2348
  %v2351 = vadd.f32 %v2341, %v2349
  %v2352 = vadd.f32 %v2342, %v2350
  %v2353 = vld [vmem:[#allocation2 + $0x2] sm:$0xff]
  %v2354 = vld [vmem:[#allocation2 + $0xa] sm:$0xff]
  %v2355 = vlaneseq
  %v2356 = vshrl.u32 %v2355, 7
  %v2357 = vsub.s32 0, %v2356
  %v2358 = vrot.slane %v2316, %v2357
  %v2359 = vmul.f32 %v2353, %v2358
  %v2360 = vmul.f32 %v2354, %v2358
  %v2361 = vadd.f32 %v2351, %v2359
  %v2362 = vadd.f32 %v2352, %v2360
  %v2363 = vxor.u32 %v2361, 2147483648
  %v2364 = vxor.u32 %v2362, 2147483648
  %v2365 = vmul.f32 %v2363, 1.442695
  %v2366 = vpow.pop %v2365
  %v2367 = vmul.f32 %v2364, 1.442695
  %v2368 = vpow.pop %v2367
  %v2369 = vadd.f32 %v2366, 1.0
  %v2370 = vadd.f32 %v2368, 1.0
  %v2371 = vrcp.pop %v2369
  %v2372 = vmul.f32 1.0, %v2371
  %v2373 = vrcp.pop %v2370
  %v2374 = vmul.f32 1.0, %v2373
  %v2375 = vmul.f32 %v2361, %v2372
  %v2376 = vmul.f32 %v2362, %v2374
  %s2377 = scalar_lea.vmem %s15, 64
  %v2378 = vld [vmem:[%s2377] sm:$0xff]
  %v2379 = vld [vmem:[%s2377 + $0x8] sm:$0xff]
  %v2380 = vld [vmem:[%s2377 + $0x10] sm:$0xff]
  %v2381 = vld [vmem:[%s2377 + $0x18] sm:$0xff]
  %v2382 = vld [vmem:[%s2377 + $0x20] sm:$0xff]
  %v2383 = vld [vmem:[%s2377 + $0x28] sm:$0xff]
  %v2384 = vld [vmem:[%s2377 + $0x30] sm:$0xff]
  %v2385 = vld [vmem:[%s2377 + $0x38] sm:$0xff]
  %s2386 = scalar_lea.vmem %s16, 1
  %v2387 = vld [vmem:[%s2386] sm:$0x1]
  %v2389 = vlaneseq
  %v2390 = vshrl.u32 %v2389, 7
  %v2391 = vsub.s32 0, %v2390
  %v2392 = vrot.slane %v2387, %v2391
  %v2395 = vsel %vm524, %v2375, 0
  %v2398 = vsel %vm524, %v2376, 0
  %2400 = vmatprep.subr.mxu0 0.0
  %2401 = vmatpush1.msra.mxu0 0.0
  %2402 = vmatprep.subr.mxu0 0.0
  %2403 = vmatpush1.msra.mxu0 0.0
  %2404 = vmatprep.subr.mxu0 0.0
  %2405 = vmatpush1.msra.mxu0 0.0
  %2406 = vmatprep.subr.mxu0 0.0
  %2407 = vmatpush1.msra.mxu0 0.0
  %2408 = vmatprep.subr.mxu0 0.0
  %2409 = vmatpush1.msra.mxu0 0.0
  %2410 = vmatprep.subr.mxu0 0.0
  %2411 = vmatpush1.msra.mxu0 0.0
  %2412 = vmatprep.subr.mxu0 0.0
  %2413 = vmatpush1.msra.mxu0 0.0
  %2414 = vmatprep.subr.mxu0 0.0
  %2415 = vmatpush1.msra.mxu0 0.0
  %2416 = vmatprep.subr.mxu0 0.0
  %2417 = vmatpush1.msra.mxu0 %v2385
  %2418 = vmatprep.subr.mxu0 0.0
  %2419 = vmatpush1.msra.mxu0 %v2384
  %2420 = vmatprep.subr.mxu0 0.0
  %2421 = vmatpush1.msra.mxu0 %v2383
  %2422 = vmatprep.subr.mxu0 0.0
  %2423 = vmatpush1.msra.mxu0 %v2382
  %2424 = vmatprep.subr.mxu0 0.0
  %2425 = vmatpush1.msra.mxu0 %v2381
  %2426 = vmatprep.subr.mxu0 0.0
  %2427 = vmatpush1.msra.mxu0 %v2380
  %2428 = vmatprep.subr.mxu0 0.0
  %2429 = vmatpush1.msra.mxu0 %v2379
  %2430 = vmatprep.subr.mxu0 0.0
  %2431 = vmatpush1.msra.mxu0 %v2378
  %2432 = vmatprep.subr.mxu0 0.0
  %2433 = vmatpush2.msra.mxu0 0.0
  %2434 = vmatprep.subr.mxu0 0.0
  %2435 = vmatpush2.msra.mxu0 0.0
  %2436 = vmatprep.subr.mxu0 0.0
  %2437 = vmatpush2.msra.mxu0 0.0
  %2438 = vmatprep.subr.mxu0 0.0
  %2439 = vmatpush2.msra.mxu0 0.0
  %2440 = vmatprep.subr.mxu0 0.0
  %2441 = vmatpush2.msra.mxu0 0.0
  %2442 = vmatprep.subr.mxu0 0.0
  %2443 = vmatpush2.msra.mxu0 0.0
  %2444 = vmatprep.subr.mxu0 0.0
  %2445 = vmatpush2.msra.mxu0 0.0
  %2446 = vmatprep.subr.mxu0 0.0
  %2447 = vmatpush2.msra.mxu0 0.0
  %2448 = vmatprep.subr.mxu0 0.0
  %2449 = vmatpush2.msra.mxu0 0.0
  %2450 = vmatprep.subr.mxu0 0.0
  %2451 = vmatpush2.msra.mxu0 0.0
  %2452 = vmatprep.subr.mxu0 0.0
  %2453 = vmatpush2.msra.mxu0 0.0
  %2454 = vmatprep.subr.mxu0 0.0
  %2455 = vmatpush2.msra.mxu0 0.0
  %2456 = vmatprep.subr.mxu0 0.0
  %2457 = vmatpush2.msra.mxu0 0.0
  %2458 = vmatprep.subr.mxu0 0.0
  %2459 = vmatpush2.msra.mxu0 0.0
  %2460 = vmatprep.subr.mxu0 0.0
  %2461 = vmatpush2.msra.mxu0 0.0
  %2462 = vmatprep.subr.mxu0 0.0
  %2463 = vmatpush2.msra.mxu0 0.0
  %2464 = vmatprep.mubr.f32.mxu0 0.0
  %2465 = vmatmul.mubr.f32.gmra.mxu0 %v2395
  %v2466 = vpop.f32.mrf.mxu0
  %v2467 = vadd.f32 %v2392, %v2466
  %v2468 = vpop.f32.mrf.mxu0
  %2469 = vmatprep.mubr.f32.mxu0 0.0
  %2470 = vmatmul.mubr.f32.gmra.mxu0 %v2398
  %v2471 = vpop.f32.mrf.mxu0
  %v2472 = vadd.f32 %v2392, %v2471
  %v2473 = vpop.f32.mrf.mxu0
  %2474 = vdwg.mxu0
  %v2475 = vmax.f32 %v2467, 0.0
  %v2476 = vmax.f32 %v2472, 0.0
  %vm2477 = vcmp.ne.f32.partialorder %v2467, %v2467
  %vm2478 = vcmp.ne.f32.partialorder %v2472, %v2472
  %v2479 = vadd.f32 %v2467, 0.0
  %v2480 = vadd.f32 %v2472, 0.0
  %v2481 = vand.u32 2147483647, %v2467
  %v2482 = vand.u32 2147483647, %v2472
  %v2483 = vsub.f32 0.0, %v2481
  %v2484 = vsub.f32 0.0, %v2482
  %v2485 = vmul.f32 %v2483, 1.442695
  %v2486 = vpow.pop %v2485
  %v2487 = vmul.f32 %v2484, 1.442695
  %v2488 = vpow.pop %v2487
  %v2489 = vadd.f32 %v2486, 1.0
  %v2490 = vlog2.pop %v2489
  %v2491 = vmul.f32 %v2490, 0.6931472
  %v2492 = vmul.f32 -0.5, %v2486
  %v2493 = vadd.f32 %v2492, 1.0
  %v2494 = vmul.f32 %v2493, %v2486
  %v2495 = vand.u32 2147483647, %v2486
  %vm2496 = vcmp.lt.f32.partialorder %v2495, 0.0004427343
  %v2497 = vsel %vm2496, %v2494, %v2491
  %v2498 = vadd.f32 %v2488, 1.0
  %v2499 = vlog2.pop %v2498
  %v2500 = vmul.f32 %v2499, 0.6931472
  %v2501 = vmul.f32 -0.5, %v2488
  %v2502 = vadd.f32 %v2501, 1.0
  %v2503 = vmul.f32 %v2502, %v2488
  %v2504 = vand.u32 2147483647, %v2488
  %vm2505 = vcmp.lt.f32.partialorder %v2504, 0.0004427343
  %v2506 = vsel %vm2505, %v2503, %v2500
  %v2507 = vadd.f32 %v2475, %v2497
  %v2508 = vadd.f32 %v2476, %v2506
  %v2509 = vsel %vm2477, %v2479, %v2507
  %v2510 = vsel %vm2478, %v2480, %v2508
  %s2511 = scalar_lea.vmem %s17, 16
  %v2512 = vld [vmem:[%s2511] sm:$0xff]
  %v2513 = vld [vmem:[%s2511 + $0x8] sm:$0xff]
  %v2516 = vcombine.high %v2509, %v2509
  %v2518 = vunpack.c.l.s4 1966171168
  %v2519 = vunpack.c.0.s8 %v2518
  %v2520 = vlaneseq
  %v2521 = vshrl.u32 %v2520, 7
  %v2522 = vsub.s32 %v2519, %v2521
  %v2523 = vrot.slane %v2509, %v2522
  %v2525 = vunpack.c.l.s4 1966171168
  %v2526 = vunpack.c.0.s8 %v2525
  %v2527 = vlaneseq
  %v2528 = vshrl.u32 %v2527, 7
  %v2529 = vsub.s32 %v2526, %v2528
  %v2530 = vrot.slane %v2516, %v2529
  %v2531 = vcombine.high %v2523, %v2523
  %v2532 = vcombine.high %v2530, %v2530
  %v2534 = vunpack.c.l.s4 1966171168
  %v2535 = vunpack.c.0.s8 %v2534
  %v2536 = vlaneseq
  %v2537 = vshrl.u32 %v2536, 7
  %v2538 = vsub.s32 %v2535, %v2537
  %v2539 = vrot.slane %v2523, %v2538
  %v2541 = vunpack.c.l.s4 1966171168
  %v2542 = vunpack.c.0.s8 %v2541
  %v2543 = vlaneseq
  %v2544 = vshrl.u32 %v2543, 7
  %v2545 = vsub.s32 %v2542, %v2544
  %v2546 = vrot.slane %v2530, %v2545
  %v2548 = vunpack.c.l.s4 1966171168
  %v2549 = vunpack.c.0.s8 %v2548
  %v2550 = vlaneseq
  %v2551 = vshrl.u32 %v2550, 7
  %v2552 = vsub.s32 %v2549, %v2551
  %v2553 = vrot.slane %v2531, %v2552
  %v2555 = vunpack.c.l.s4 1966171168
  %v2556 = vunpack.c.0.s8 %v2555
  %v2557 = vlaneseq
  %v2558 = vshrl.u32 %v2557, 7
  %v2559 = vsub.s32 %v2556, %v2558
  %v2560 = vrot.slane %v2532, %v2559
  %v2561 = vcombine.high %v2539, %v2539
  %v2562 = vcombine.high %v2546, %v2546
  %v2563 = vcombine.high %v2553, %v2553
  %v2564 = vcombine.high %v2560, %v2560
  %v2565 = vcombine.high %v2510, %v2510
  %v2567 = vunpack.c.l.s4 1966171168
  %v2568 = vunpack.c.0.s8 %v2567
  %v2569 = vlaneseq
  %v2570 = vshrl.u32 %v2569, 7
  %v2571 = vsub.s32 %v2568, %v2570
  %v2572 = vrot.slane %v2510, %v2571
  %v2574 = vunpack.c.l.s4 1966171168
  %v2575 = vunpack.c.0.s8 %v2574
  %v2576 = vlaneseq
  %v2577 = vshrl.u32 %v2576, 7
  %v2578 = vsub.s32 %v2575, %v2577
  %v2579 = vrot.slane %v2565, %v2578
  %v2580 = vcombine.high %v2572, %v2572
  %v2581 = vcombine.high %v2579, %v2579
  %v2583 = vunpack.c.l.s4 1966171168
  %v2584 = vunpack.c.0.s8 %v2583
  %v2585 = vlaneseq
  %v2586 = vshrl.u32 %v2585, 7
  %v2587 = vsub.s32 %v2584, %v2586
  %v2588 = vrot.slane %v2572, %v2587
  %v2590 = vunpack.c.l.s4 1966171168
  %v2591 = vunpack.c.0.s8 %v2590
  %v2592 = vlaneseq
  %v2593 = vshrl.u32 %v2592, 7
  %v2594 = vsub.s32 %v2591, %v2593
  %v2595 = vrot.slane %v2579, %v2594
  %v2597 = vunpack.c.l.s4 1966171168
  %v2598 = vunpack.c.0.s8 %v2597
  %v2599 = vlaneseq
  %v2600 = vshrl.u32 %v2599, 7
  %v2601 = vsub.s32 %v2598, %v2600
  %v2602 = vrot.slane %v2580, %v2601
  %v2604 = vunpack.c.l.s4 1966171168
  %v2605 = vunpack.c.0.s8 %v2604
  %v2606 = vlaneseq
  %v2607 = vshrl.u32 %v2606, 7
  %v2608 = vsub.s32 %v2605, %v2607
  %v2609 = vrot.slane %v2581, %v2608
  %v2610 = vcombine.high %v2588, %v2588
  %v2611 = vcombine.high %v2595, %v2595
  %v2612 = vcombine.high %v2602, %v2602
  %v2613 = vcombine.high %v2609, %v2609
  %v2614 = vlaneseq
  %v2615 = vshrl.u32 %v2614, 7
  %v2616 = vsub.s32 0, %v2615
  %v2617 = vrot.slane %v2539, %v2616
  %v2618 = vlaneseq
  %v2619 = vshrl.u32 %v2618, 7
  %v2620 = vsub.s32 0, %v2619
  %v2621 = vrot.slane %v2553, %v2620
  %v2622 = vlaneseq
  %v2623 = vshrl.u32 %v2622, 7
  %v2624 = vsub.s32 0, %v2623
  %v2625 = vrot.slane %v2561, %v2624
  %v2626 = vlaneseq
  %v2627 = vshrl.u32 %v2626, 7
  %v2628 = vsub.s32 0, %v2627
  %v2629 = vrot.slane %v2563, %v2628
  %v2630 = vlaneseq
  %v2631 = vshrl.u32 %v2630, 7
  %v2632 = vsub.s32 0, %v2631
  %v2633 = vrot.slane %v2546, %v2632
  %v2634 = vlaneseq
  %v2635 = vshrl.u32 %v2634, 7
  %v2636 = vsub.s32 0, %v2635
  %v2637 = vrot.slane %v2560, %v2636
  %v2638 = vlaneseq
  %v2639 = vshrl.u32 %v2638, 7
  %v2640 = vsub.s32 0, %v2639
  %v2641 = vrot.slane %v2562, %v2640
  %v2642 = vlaneseq
  %v2643 = vshrl.u32 %v2642, 7
  %v2644 = vsub.s32 0, %v2643
  %v2645 = vrot.slane %v2564, %v2644
  %v2646 = vlaneseq
  %v2647 = vshrl.u32 %v2646, 7
  %v2648 = vsub.s32 0, %v2647
  %v2649 = vrot.slane %v2588, %v2648
  %v2650 = vlaneseq
  %v2651 = vshrl.u32 %v2650, 7
  %v2652 = vsub.s32 0, %v2651
  %v2653 = vrot.slane %v2602, %v2652
  %v2654 = vlaneseq
  %v2655 = vshrl.u32 %v2654, 7
  %v2656 = vsub.s32 0, %v2655
  %v2657 = vrot.slane %v2610, %v2656
  %v2658 = vlaneseq
  %v2659 = vshrl.u32 %v2658, 7
  %v2660 = vsub.s32 0, %v2659
  %v2661 = vrot.slane %v2612, %v2660
  %v2662 = vlaneseq
  %v2663 = vshrl.u32 %v2662, 7
  %v2664 = vsub.s32 0, %v2663
  %v2665 = vrot.slane %v2595, %v2664
  %v2666 = vlaneseq
  %v2667 = vshrl.u32 %v2666, 7
  %v2668 = vsub.s32 0, %v2667
  %v2669 = vrot.slane %v2609, %v2668
  %v2670 = vlaneseq
  %v2671 = vshrl.u32 %v2670, 7
  %v2672 = vsub.s32 0, %v2671
  %v2673 = vrot.slane %v2611, %v2672
  %v2674 = vlaneseq
  %v2675 = vshrl.u32 %v2674, 7
  %v2676 = vsub.s32 0, %v2675
  %v2677 = vrot.slane %v2613, %v2676
  %v2694 = vmul.f32 %v2512, %v2617
  %v2695 = vmul.f32 %v2513, %v2617
  %v2696 = vmul.f32 %v2512, %v2621
  %v2697 = vmul.f32 %v2513, %v2621
  %v2698 = vmul.f32 %v2512, %v2625
  %v2699 = vmul.f32 %v2513, %v2625
  %v2700 = vmul.f32 %v2512, %v2629
  %v2701 = vmul.f32 %v2513, %v2629
  %v2702 = vmul.f32 %v2512, %v2633
  %v2703 = vmul.f32 %v2513, %v2633
  %v2704 = vmul.f32 %v2512, %v2637
  %v2705 = vmul.f32 %v2513, %v2637
  %v2706 = vmul.f32 %v2512, %v2641
  %v2707 = vmul.f32 %v2513, %v2641
  %v2708 = vmul.f32 %v2512, %v2645
  %v2709 = vmul.f32 %v2513, %v2645
  %v2710 = vmul.f32 %v2512, %v2649
  %v2711 = vmul.f32 %v2513, %v2649
  %v2712 = vmul.f32 %v2512, %v2653
  %v2713 = vmul.f32 %v2513, %v2653
  %v2714 = vmul.f32 %v2512, %v2657
  %v2715 = vmul.f32 %v2513, %v2657
  %v2716 = vmul.f32 %v2512, %v2661
  %v2717 = vmul.f32 %v2513, %v2661
  %v2718 = vmul.f32 %v2512, %v2665
  %v2719 = vmul.f32 %v2513, %v2665
  %v2720 = vmul.f32 %v2512, %v2669
  %v2721 = vmul.f32 %v2513, %v2669
  %v2722 = vmul.f32 %v2512, %v2673
  %v2723 = vmul.f32 %v2513, %v2673
  %v2724 = vmul.f32 %v2512, %v2677
  %v2725 = vmul.f32 %v2513, %v2677
  %v2726 = vmul.f32 %v2694, 1.442695
  %v2727 = vpow.pop %v2726
  %v2728 = vmul.f32 %v2695, 1.442695
  %v2729 = vpow.pop %v2728
  %v2730 = vmul.f32 %v2696, 1.442695
  %v2731 = vpow.pop %v2730
  %v2732 = vmul.f32 %v2697, 1.442695
  %v2733 = vpow.pop %v2732
  %v2734 = vmul.f32 %v2698, 1.442695
  %v2735 = vpow.pop %v2734
  %v2736 = vmul.f32 %v2699, 1.442695
  %v2737 = vpow.pop %v2736
  %v2738 = vmul.f32 %v2700, 1.442695
  %v2739 = vpow.pop %v2738
  %v2740 = vmul.f32 %v2701, 1.442695
  %v2741 = vpow.pop %v2740
  %v2742 = vmul.f32 %v2702, 1.442695
  %v2743 = vpow.pop %v2742
  %v2744 = vmul.f32 %v2703, 1.442695
  %v2745 = vpow.pop %v2744
  %v2746 = vmul.f32 %v2704, 1.442695
  %v2747 = vpow.pop %v2746
  %v2748 = vmul.f32 %v2705, 1.442695
  %v2749 = vpow.pop %v2748
  %v2750 = vmul.f32 %v2706, 1.442695
  %v2751 = vpow.pop %v2750
  %v2752 = vmul.f32 %v2707, 1.442695
  %v2753 = vpow.pop %v2752
  %v2754 = vmul.f32 %v2708, 1.442695
  %v2755 = vpow.pop %v2754
  %v2756 = vmul.f32 %v2709, 1.442695
  %v2757 = vpow.pop %v2756
  %v2758 = vmul.f32 %v2710, 1.442695
  %v2759 = vpow.pop %v2758
  %v2760 = vmul.f32 %v2711, 1.442695
  %v2761 = vpow.pop %v2760
  %v2762 = vmul.f32 %v2712, 1.442695
  %v2763 = vpow.pop %v2762
  %v2764 = vmul.f32 %v2713, 1.442695
  %v2765 = vpow.pop %v2764
  %v2766 = vmul.f32 %v2714, 1.442695
  %v2767 = vpow.pop %v2766
  %v2768 = vmul.f32 %v2715, 1.442695
  %v2769 = vpow.pop %v2768
  %v2770 = vmul.f32 %v2716, 1.442695
  %v2771 = vpow.pop %v2770
  %v2772 = vmul.f32 %v2717, 1.442695
  %v2773 = vpow.pop %v2772
  %v2774 = vmul.f32 %v2718, 1.442695
  %v2775 = vpow.pop %v2774
  %v2776 = vmul.f32 %v2719, 1.442695
  %v2777 = vpow.pop %v2776
  %v2778 = vmul.f32 %v2720, 1.442695
  %v2779 = vpow.pop %v2778
  %v2780 = vmul.f32 %v2721, 1.442695
  %v2781 = vpow.pop %v2780
  %v2782 = vmul.f32 %v2722, 1.442695
  %v2783 = vpow.pop %v2782
  %v2784 = vmul.f32 %v2723, 1.442695
  %v2785 = vpow.pop %v2784
  %v2786 = vmul.f32 %v2724, 1.442695
  %v2787 = vpow.pop %v2786
  %v2788 = vmul.f32 %v2725, 1.442695
  %v2789 = vpow.pop %v2788
  %2790 = vst.msk [vmem:[#allocation3] sm:$0xff] %vm524, %v2727
  %2791 = vst.msk [vmem:[#allocation3 + $0x8] sm:$0xff] %vm524, %v2729
  %2792 = vst.msk [vmem:[#allocation3 + $0x10] sm:$0xff] %vm524, %v2731
  %2793 = vst.msk [vmem:[#allocation3 + $0x18] sm:$0xff] %vm524, %v2733
  %2794 = vst.msk [vmem:[#allocation3 + $0x20] sm:$0xff] %vm524, %v2735
  %2795 = vst.msk [vmem:[#allocation3 + $0x28] sm:$0xff] %vm524, %v2737
  %2796 = vst.msk [vmem:[#allocation3 + $0x30] sm:$0xff] %vm524, %v2739
  %2797 = vst.msk [vmem:[#allocation3 + $0x38] sm:$0xff] %vm524, %v2741
  %2798 = vst.msk [vmem:[#allocation3 + $0x40] sm:$0xff] %vm524, %v2743
  %2799 = vst.msk [vmem:[#allocation3 + $0x48] sm:$0xff] %vm524, %v2745
  %2800 = vst.msk [vmem:[#allocation3 + $0x50] sm:$0xff] %vm524, %v2747
  %2801 = vst.msk [vmem:[#allocation3 + $0x58] sm:$0xff] %vm524, %v2749
  %2802 = vst.msk [vmem:[#allocation3 + $0x60] sm:$0xff] %vm524, %v2751
  %2803 = vst.msk [vmem:[#allocation3 + $0x68] sm:$0xff] %vm524, %v2753
  %2804 = vst.msk [vmem:[#allocation3 + $0x70] sm:$0xff] %vm524, %v2755
  %2805 = vst.msk [vmem:[#allocation3 + $0x78] sm:$0xff] %vm524, %v2757
  %2806 = vst.msk [vmem:[#allocation3 + $0x80] sm:$0xff] %vm524, %v2759
  %2807 = vst.msk [vmem:[#allocation3 + $0x88] sm:$0xff] %vm524, %v2761
  %2808 = vst.msk [vmem:[#allocation3 + $0x90] sm:$0xff] %vm524, %v2763
  %2809 = vst.msk [vmem:[#allocation3 + $0x98] sm:$0xff] %vm524, %v2765
  %2810 = vst.msk [vmem:[#allocation3 + $0xa0] sm:$0xff] %vm524, %v2767
  %2811 = vst.msk [vmem:[#allocation3 + $0xa8] sm:$0xff] %vm524, %v2769
  %2812 = vst.msk [vmem:[#allocation3 + $0xb0] sm:$0xff] %vm524, %v2771
  %2813 = vst.msk [vmem:[#allocation3 + $0xb8] sm:$0xff] %vm524, %v2773
  %2814 = vst.msk [vmem:[#allocation3 + $0xc0] sm:$0xff] %vm524, %v2775
  %2815 = vst.msk [vmem:[#allocation3 + $0xc8] sm:$0xff] %vm524, %v2777
  %2816 = vst.msk [vmem:[#allocation3 + $0xd0] sm:$0xff] %vm524, %v2779
  %2817 = vst.msk [vmem:[#allocation3 + $0xd8] sm:$0xff] %vm524, %v2781
  %2818 = vst.msk [vmem:[#allocation3 + $0xe0] sm:$0xff] %vm524, %v2783
  %2819 = vst.msk [vmem:[#allocation3 + $0xe8] sm:$0xff] %vm524, %v2785
  %2820 = vst.msk [vmem:[#allocation3 + $0xf0] sm:$0xff] %vm524, %v2787
  %2821 = vst.msk [vmem:[#allocation3 + $0xf8] sm:$0xff] %vm524, %v2789
  %v2822 = vlaneseq
  %v2823 = vshrl.u32 %v2822, 7
  %v2824 = vsub.s32 0, %v2823
  %v2825 = vrot.slane %v2467, %v2824
  %s2827 = sor.u32 256, 64
  %2828 = vbcast.lane.b32.xlu0 %v2825, %s2827
  %v2829 = vpop.permute.xlu0 %2828
  %s2831 = sor.u32 256, 72
  %2832 = vbcast.lane.b32.xlu0 %v2825, %s2831
  %v2833 = vpop.permute.xlu0 %2832
  %v2834 = vlaneseq
  %v2835 = vshrl.u32 %v2834, 7
  %v2836 = vsub.s32 1, %v2835
  %v2837 = vrot.slane %v2467, %v2836
  %s2839 = sor.u32 256, 64
  %2840 = vbcast.lane.b32.xlu0 %v2837, %s2839
  %v2841 = vpop.permute.xlu0 %2840
  %s2843 = sor.u32 256, 72
  %2844 = vbcast.lane.b32.xlu0 %v2837, %s2843
  %v2845 = vpop.permute.xlu0 %2844
  %v2846 = vlaneseq
  %v2847 = vshrl.u32 %v2846, 7
  %v2848 = vsub.s32 2, %v2847
  %v2849 = vrot.slane %v2467, %v2848
  %s2851 = sor.u32 256, 64
  %2852 = vbcast.lane.b32.xlu0 %v2849, %s2851
  %v2853 = vpop.permute.xlu0 %2852
  %s2855 = sor.u32 256, 72
  %2856 = vbcast.lane.b32.xlu0 %v2849, %s2855
  %v2857 = vpop.permute.xlu0 %2856
  %v2858 = vlaneseq
  %v2859 = vshrl.u32 %v2858, 7
  %v2860 = vsub.s32 3, %v2859
  %v2861 = vrot.slane %v2467, %v2860
  %s2863 = sor.u32 256, 64
  %2864 = vbcast.lane.b32.xlu0 %v2861, %s2863
  %v2865 = vpop.permute.xlu0 %2864
  %s2867 = sor.u32 256, 72
  %2868 = vbcast.lane.b32.xlu0 %v2861, %s2867
  %v2869 = vpop.permute.xlu0 %2868
  %v2870 = vlaneseq
  %v2871 = vshrl.u32 %v2870, 7
  %v2872 = vsub.s32 4, %v2871
  %v2873 = vrot.slane %v2467, %v2872
  %s2875 = sor.u32 256, 64
  %2876 = vbcast.lane.b32.xlu0 %v2873, %s2875
  %v2877 = vpop.permute.xlu0 %2876
  %s2879 = sor.u32 256, 72
  %2880 = vbcast.lane.b32.xlu0 %v2873, %s2879
  %v2881 = vpop.permute.xlu0 %2880
  %v2882 = vlaneseq
  %v2883 = vshrl.u32 %v2882, 7
  %v2884 = vsub.s32 5, %v2883
  %v2885 = vrot.slane %v2467, %v2884
  %s2887 = sor.u32 256, 64
  %2888 = vbcast.lane.b32.xlu0 %v2885, %s2887
  %v2889 = vpop.permute.xlu0 %2888
  %s2891 = sor.u32 256, 72
  %2892 = vbcast.lane.b32.xlu0 %v2885, %s2891
  %v2893 = vpop.permute.xlu0 %2892
  %v2894 = vlaneseq
  %v2895 = vshrl.u32 %v2894, 7
  %v2896 = vsub.s32 6, %v2895
  %v2897 = vrot.slane %v2467, %v2896
  %s2899 = sor.u32 256, 64
  %2900 = vbcast.lane.b32.xlu0 %v2897, %s2899
  %v2901 = vpop.permute.xlu0 %2900
  %s2903 = sor.u32 256, 72
  %2904 = vbcast.lane.b32.xlu0 %v2897, %s2903
  %v2905 = vpop.permute.xlu0 %2904
  %v2906 = vlaneseq
  %v2907 = vshrl.u32 %v2906, 7
  %v2908 = vsub.s32 7, %v2907
  %v2909 = vrot.slane %v2467, %v2908
  %s2911 = sor.u32 256, 64
  %2912 = vbcast.lane.b32.xlu0 %v2909, %s2911
  %v2913 = vpop.permute.xlu0 %2912
  %s2915 = sor.u32 256, 72
  %2916 = vbcast.lane.b32.xlu0 %v2909, %s2915
  %v2917 = vpop.permute.xlu0 %2916
  %v2918 = vlaneseq
  %v2919 = vshrl.u32 %v2918, 7
  %v2920 = vsub.s32 0, %v2919
  %v2921 = vrot.slane %v2472, %v2920
  %s2923 = sor.u32 256, 64
  %2924 = vbcast.lane.b32.xlu0 %v2921, %s2923
  %v2925 = vpop.permute.xlu0 %2924
  %s2927 = sor.u32 256, 72
  %2928 = vbcast.lane.b32.xlu0 %v2921, %s2927
  %v2929 = vpop.permute.xlu0 %2928
  %v2930 = vlaneseq
  %v2931 = vshrl.u32 %v2930, 7
  %v2932 = vsub.s32 1, %v2931
  %v2933 = vrot.slane %v2472, %v2932
  %s2935 = sor.u32 256, 64
  %2936 = vbcast.lane.b32.xlu0 %v2933, %s2935
  %v2937 = vpop.permute.xlu0 %2936
  %s2939 = sor.u32 256, 72
  %2940 = vbcast.lane.b32.xlu0 %v2933, %s2939
  %v2941 = vpop.permute.xlu0 %2940
  %v2942 = vlaneseq
  %v2943 = vshrl.u32 %v2942, 7
  %v2944 = vsub.s32 2, %v2943
  %v2945 = vrot.slane %v2472, %v2944
  %s2947 = sor.u32 256, 64
  %2948 = vbcast.lane.b32.xlu0 %v2945, %s2947
  %v2949 = vpop.permute.xlu0 %2948
  %s2951 = sor.u32 256, 72
  %2952 = vbcast.lane.b32.xlu0 %v2945, %s2951
  %v2953 = vpop.permute.xlu0 %2952
  %v2954 = vlaneseq
  %v2955 = vshrl.u32 %v2954, 7
  %v2956 = vsub.s32 3, %v2955
  %v2957 = vrot.slane %v2472, %v2956
  %s2959 = sor.u32 256, 64
  %2960 = vbcast.lane.b32.xlu0 %v2957, %s2959
  %v2961 = vpop.permute.xlu0 %2960
  %s2963 = sor.u32 256, 72
  %2964 = vbcast.lane.b32.xlu0 %v2957, %s2963
  %v2965 = vpop.permute.xlu0 %2964
  %v2966 = vlaneseq
  %v2967 = vshrl.u32 %v2966, 7
  %v2968 = vsub.s32 4, %v2967
  %v2969 = vrot.slane %v2472, %v2968
  %s2971 = sor.u32 256, 64
  %2972 = vbcast.lane.b32.xlu0 %v2969, %s2971
  %v2973 = vpop.permute.xlu0 %2972
  %s2975 = sor.u32 256, 72
  %2976 = vbcast.lane.b32.xlu0 %v2969, %s2975
  %v2977 = vpop.permute.xlu0 %2976
  %v2978 = vlaneseq
  %v2979 = vshrl.u32 %v2978, 7
  %v2980 = vsub.s32 5, %v2979
  %v2981 = vrot.slane %v2472, %v2980
  %s2983 = sor.u32 256, 64
  %2984 = vbcast.lane.b32.xlu0 %v2981, %s2983
  %v2985 = vpop.permute.xlu0 %2984
  %s2987 = sor.u32 256, 72
  %2988 = vbcast.lane.b32.xlu0 %v2981, %s2987
  %v2989 = vpop.permute.xlu0 %2988
  %v2990 = vlaneseq
  %v2991 = vshrl.u32 %v2990, 7
  %v2992 = vsub.s32 6, %v2991
  %v2993 = vrot.slane %v2472, %v2992
  %s2995 = sor.u32 256, 64
  %2996 = vbcast.lane.b32.xlu0 %v2993, %s2995
  %v2997 = vpop.permute.xlu0 %2996
  %s2999 = sor.u32 256, 72
  %3000 = vbcast.lane.b32.xlu0 %v2993, %s2999
  %v3001 = vpop.permute.xlu0 %3000
  %v3002 = vlaneseq
  %v3003 = vshrl.u32 %v3002, 7
  %v3004 = vsub.s32 7, %v3003
  %v3005 = vrot.slane %v2472, %v3004
  %s3007 = sor.u32 256, 64
  %3008 = vbcast.lane.b32.xlu0 %v3005, %s3007
  %v3009 = vpop.permute.xlu0 %3008
  %s3011 = sor.u32 256, 72
  %3012 = vbcast.lane.b32.xlu0 %v3005, %s3011
  %v3013 = vpop.permute.xlu0 %3012
  %3014 = vst.msk [vmem:[#allocation4] sm:$0xff] %vm524, %v2829
  %3015 = vst.msk [vmem:[#allocation4 + $0x8] sm:$0xff] %vm524, %v2833
  %3016 = vst.msk [vmem:[#allocation4 + $0x10] sm:$0xff] %vm524, %v2841
  %3017 = vst.msk [vmem:[#allocation4 + $0x18] sm:$0xff] %vm524, %v2845
  %3018 = vst.msk [vmem:[#allocation4 + $0x20] sm:$0xff] %vm524, %v2853
  %3019 = vst.msk [vmem:[#allocation4 + $0x28] sm:$0xff] %vm524, %v2857
  %3020 = vst.msk [vmem:[#allocation4 + $0x30] sm:$0xff] %vm524, %v2865
  %3021 = vst.msk [vmem:[#allocation4 + $0x38] sm:$0xff] %vm524, %v2869
  %3022 = vst.msk [vmem:[#allocation4 + $0x40] sm:$0xff] %vm524, %v2877
  %3023 = vst.msk [vmem:[#allocation4 + $0x48] sm:$0xff] %vm524, %v2881
  %3024 = vst.msk [vmem:[#allocation4 + $0x50] sm:$0xff] %vm524, %v2889
  %3025 = vst.msk [vmem:[#allocation4 + $0x58] sm:$0xff] %vm524, %v2893
  %3026 = vst.msk [vmem:[#allocation4 + $0x60] sm:$0xff] %vm524, %v2901
  %3027 = vst.msk [vmem:[#allocation4 + $0x68] sm:$0xff] %vm524, %v2905
  %3028 = vst.msk [vmem:[#allocation4 + $0x70] sm:$0xff] %vm524, %v2913
  %3029 = vst.msk [vmem:[#allocation4 + $0x78] sm:$0xff] %vm524, %v2917
  %3030 = vst.msk [vmem:[#allocation4 + $0x80] sm:$0xff] %vm524, %v2925
  %3031 = vst.msk [vmem:[#allocation4 + $0x88] sm:$0xff] %vm524, %v2929
  %3032 = vst.msk [vmem:[#allocation4 + $0x90] sm:$0xff] %vm524, %v2937
  %3033 = vst.msk [vmem:[#allocation4 + $0x98] sm:$0xff] %vm524, %v2941
  %3034 = vst.msk [vmem:[#allocation4 + $0xa0] sm:$0xff] %vm524, %v2949
  %3035 = vst.msk [vmem:[#allocation4 + $0xa8] sm:$0xff] %vm524, %v2953
  %3036 = vst.msk [vmem:[#allocation4 + $0xb0] sm:$0xff] %vm524, %v2961
  %3037 = vst.msk [vmem:[#allocation4 + $0xb8] sm:$0xff] %vm524, %v2965
  %3038 = vst.msk [vmem:[#allocation4 + $0xc0] sm:$0xff] %vm524, %v2973
  %3039 = vst.msk [vmem:[#allocation4 + $0xc8] sm:$0xff] %vm524, %v2977
  %3040 = vst.msk [vmem:[#allocation4 + $0xd0] sm:$0xff] %vm524, %v2985
  %3041 = vst.msk [vmem:[#allocation4 + $0xd8] sm:$0xff] %vm524, %v2989
  %3042 = vst.msk [vmem:[#allocation4 + $0xe0] sm:$0xff] %vm524, %v2997
  %3043 = vst.msk [vmem:[#allocation4 + $0xe8] sm:$0xff] %vm524, %v3001
  %3044 = vst.msk [vmem:[#allocation4 + $0xf0] sm:$0xff] %vm524, %v3009
  %3045 = vst.msk [vmem:[#allocation4 + $0xf8] sm:$0xff] %vm524, %v3013
  %v3046 = vld [vmem:[#allocation3] sm:$0xff]
  %v3047 = vld [vmem:[#allocation3 + $0x8] sm:$0xff]
  %v3048 = vld [vmem:[#allocation3 + $0x10] sm:$0xff]
  %v3049 = vld [vmem:[#allocation3 + $0x18] sm:$0xff]
  %v3050 = vmul.f32 %v3046, 0.0
  %v3051 = vmul.f32 %v3047, 0.0
  %v3052 = vmul.f32 %v3048, 0.0
  %v3053 = vmul.f32 %v3049, 0.0
  %v3054 = vld [vmem:[#allocation4] sm:$0xff]
  %v3055 = vld [vmem:[#allocation4 + $0x8] sm:$0xff]
  %v3056 = vld [vmem:[#allocation4 + $0x10] sm:$0xff]
  %v3057 = vld [vmem:[#allocation4 + $0x18] sm:$0xff]
  %v3058 = vadd.f32 %v3050, %v3054
  %v3059 = vadd.f32 %v3051, %v3055
  %v3060 = vadd.f32 %v3052, %v3056
  %v3061 = vadd.f32 %v3053, %v3057
  %3062 = vst.msk [vmem:[#allocation5] sm:$0xff] %vm524, %v3058
  %3063 = vst.msk [vmem:[#allocation5 + $0x8] sm:$0xff] %vm524, %v3059
  %3064 = vst.msk [vmem:[#allocation5 + $0x10] sm:$0xff] %vm524, %v3060
  %3065 = vst.msk [vmem:[#allocation5 + $0x18] sm:$0xff] %vm524, %v3061
  %v3066 = vld [vmem:[%s1565] sm:$0xff]
  %v3067 = vld [vmem:[%s1565 + $0x8] sm:$0xff]
  %v3068 = vld [vmem:[%s1565 + $0x10] sm:$0xff]
  %v3069 = vld [vmem:[%s1565 + $0x18] sm:$0xff]
  %v3070 = vmul.f32 %v3058, %v3066
  %v3071 = vmul.f32 %v3059, %v3067
  %v3072 = vmul.f32 %v3060, %v3068
  %v3073 = vmul.f32 %v3061, %v3069
  %v3074 = vld [vmem:[%s1574] sm:$0xff]
  %v3075 = vld [vmem:[%s1574 + $0x8] sm:$0xff]
  %v3076 = vld [vmem:[%s1574 + $0x10] sm:$0xff]
  %v3077 = vld [vmem:[%s1574 + $0x18] sm:$0xff]
  %v3078 = vadd.f32 %v3070, %v3074
  %v3079 = vadd.f32 %v3071, %v3075
  %v3080 = vadd.f32 %v3072, %v3076
  %v3081 = vadd.f32 %v3073, %v3077
  %3082 = vst.msk [vmem:[%s1583] sm:$0xff] %vm524, %v3078
  %3083 = vst.msk [vmem:[%s1583 + $0x8] sm:$0xff] %vm524, %v3079
  %3084 = vst.msk [vmem:[%s1583 + $0x10] sm:$0xff] %vm524, %v3080
  %3085 = vst.msk [vmem:[%s1583 + $0x18] sm:$0xff] %vm524, %v3081
  %v3086 = vld [vmem:[%s1588] sm:$0xff]
  %v3087 = vld [vmem:[%s1588 + $0x8] sm:$0xff]
  %v3088 = vld [vmem:[%s1588 + $0x10] sm:$0xff]
  %v3089 = vld [vmem:[%s1588 + $0x18] sm:$0xff]
  %v3090 = vmul.f32 %v3078, %v3086
  %v3091 = vmul.f32 %v3079, %v3087
  %v3092 = vmul.f32 %v3080, %v3088
  %v3093 = vmul.f32 %v3081, %v3089
  %v3094 = vld [vmem:[%s1597] sm:$0xff]
  %v3095 = vld [vmem:[%s1597 + $0x8] sm:$0xff]
  %v3096 = vld [vmem:[%s1597 + $0x10] sm:$0xff]
  %v3097 = vld [vmem:[%s1597 + $0x18] sm:$0xff]
  %v3098 = vadd.f32 %v3090, %v3094
  %v3099 = vadd.f32 %v3091, %v3095
  %v3100 = vadd.f32 %v3092, %v3096
  %v3101 = vadd.f32 %v3093, %v3097
  %3102 = vst.msk [vmem:[%s1606] sm:$0xff] %vm524, %v3098
  %3103 = vst.msk [vmem:[%s1606 + $0x8] sm:$0xff] %vm524, %v3099
  %3104 = vst.msk [vmem:[%s1606 + $0x10] sm:$0xff] %vm524, %v3100
  %3105 = vst.msk [vmem:[%s1606 + $0x18] sm:$0xff] %vm524, %v3101
  %v3106 = vld [vmem:[%s1611] sm:$0xff]
  %v3107 = vld [vmem:[%s1611 + $0x8] sm:$0xff]
  %v3108 = vld [vmem:[%s1611 + $0x10] sm:$0xff]
  %v3109 = vld [vmem:[%s1611 + $0x18] sm:$0xff]
  %v3110 = vmul.f32 %v3098, %v3106
  %v3111 = vmul.f32 %v3099, %v3107
  %v3112 = vmul.f32 %v3100, %v3108
  %v3113 = vmul.f32 %v3101, %v3109
  %v3114 = vld [vmem:[%s1620] sm:$0xff]
  %v3115 = vld [vmem:[%s1620 + $0x8] sm:$0xff]
  %v3116 = vld [vmem:[%s1620 + $0x10] sm:$0xff]
  %v3117 = vld [vmem:[%s1620 + $0x18] sm:$0xff]
  %v3118 = vadd.f32 %v3110, %v3114
  %v3119 = vadd.f32 %v3111, %v3115
  %v3120 = vadd.f32 %v3112, %v3116
  %v3121 = vadd.f32 %v3113, %v3117
  %3122 = vst.msk [vmem:[%s1629] sm:$0xff] %vm524, %v3118
  %3123 = vst.msk [vmem:[%s1629 + $0x8] sm:$0xff] %vm524, %v3119
  %3124 = vst.msk [vmem:[%s1629 + $0x10] sm:$0xff] %vm524, %v3120
  %3125 = vst.msk [vmem:[%s1629 + $0x18] sm:$0xff] %vm524, %v3121
  %v3126 = vld [vmem:[%s1634] sm:$0xff]
  %v3127 = vld [vmem:[%s1634 + $0x8] sm:$0xff]
  %v3128 = vld [vmem:[%s1634 + $0x10] sm:$0xff]
  %v3129 = vld [vmem:[%s1634 + $0x18] sm:$0xff]
  %v3130 = vmul.f32 %v3118, %v3126
  %v3131 = vmul.f32 %v3119, %v3127
  %v3132 = vmul.f32 %v3120, %v3128
  %v3133 = vmul.f32 %v3121, %v3129
  %v3134 = vld [vmem:[%s1643] sm:$0xff]
  %v3135 = vld [vmem:[%s1643 + $0x8] sm:$0xff]
  %v3136 = vld [vmem:[%s1643 + $0x10] sm:$0xff]
  %v3137 = vld [vmem:[%s1643 + $0x18] sm:$0xff]
  %v3138 = vadd.f32 %v3130, %v3134
  %v3139 = vadd.f32 %v3131, %v3135
  %v3140 = vadd.f32 %v3132, %v3136
  %v3141 = vadd.f32 %v3133, %v3137
  %3142 = vst.msk [vmem:[%s1652] sm:$0xff] %vm524, %v3138
  %3143 = vst.msk [vmem:[%s1652 + $0x8] sm:$0xff] %vm524, %v3139
  %3144 = vst.msk [vmem:[%s1652 + $0x10] sm:$0xff] %vm524, %v3140
  %3145 = vst.msk [vmem:[%s1652 + $0x18] sm:$0xff] %vm524, %v3141
  %v3146 = vld [vmem:[%s1657] sm:$0xff]
  %v3147 = vld [vmem:[%s1657 + $0x8] sm:$0xff]
  %v3148 = vld [vmem:[%s1657 + $0x10] sm:$0xff]
  %v3149 = vld [vmem:[%s1657 + $0x18] sm:$0xff]
  %v3150 = vmul.f32 %v3138, %v3146
  %v3151 = vmul.f32 %v3139, %v3147
  %v3152 = vmul.f32 %v3140, %v3148
  %v3153 = vmul.f32 %v3141, %v3149
  %v3154 = vld [vmem:[%s1666] sm:$0xff]
  %v3155 = vld [vmem:[%s1666 + $0x8] sm:$0xff]
  %v3156 = vld [vmem:[%s1666 + $0x10] sm:$0xff]
  %v3157 = vld [vmem:[%s1666 + $0x18] sm:$0xff]
  %v3158 = vadd.f32 %v3150, %v3154
  %v3159 = vadd.f32 %v3151, %v3155
  %v3160 = vadd.f32 %v3152, %v3156
  %v3161 = vadd.f32 %v3153, %v3157
  %3162 = vst.msk [vmem:[%s1675] sm:$0xff] %vm524, %v3158
  %3163 = vst.msk [vmem:[%s1675 + $0x8] sm:$0xff] %vm524, %v3159
  %3164 = vst.msk [vmem:[%s1675 + $0x10] sm:$0xff] %vm524, %v3160
  %3165 = vst.msk [vmem:[%s1675 + $0x18] sm:$0xff] %vm524, %v3161
  %v3166 = vld [vmem:[%s1680] sm:$0xff]
  %v3167 = vld [vmem:[%s1680 + $0x8] sm:$0xff]
  %v3168 = vld [vmem:[%s1680 + $0x10] sm:$0xff]
  %v3169 = vld [vmem:[%s1680 + $0x18] sm:$0xff]
  %v3170 = vmul.f32 %v3158, %v3166
  %v3171 = vmul.f32 %v3159, %v3167
  %v3172 = vmul.f32 %v3160, %v3168
  %v3173 = vmul.f32 %v3161, %v3169
  %v3174 = vld [vmem:[%s1689] sm:$0xff]
  %v3175 = vld [vmem:[%s1689 + $0x8] sm:$0xff]
  %v3176 = vld [vmem:[%s1689 + $0x10] sm:$0xff]
  %v3177 = vld [vmem:[%s1689 + $0x18] sm:$0xff]
  %v3178 = vadd.f32 %v3170, %v3174
  %v3179 = vadd.f32 %v3171, %v3175
  %v3180 = vadd.f32 %v3172, %v3176
  %v3181 = vadd.f32 %v3173, %v3177
  %3182 = vst.msk [vmem:[%s1698] sm:$0xff] %vm524, %v3178
  %3183 = vst.msk [vmem:[%s1698 + $0x8] sm:$0xff] %vm524, %v3179
  %3184 = vst.msk [vmem:[%s1698 + $0x10] sm:$0xff] %vm524, %v3180
  %3185 = vst.msk [vmem:[%s1698 + $0x18] sm:$0xff] %vm524, %v3181
  %v3186 = vld [vmem:[%s1703] sm:$0xff]
  %v3187 = vld [vmem:[%s1703 + $0x8] sm:$0xff]
  %v3188 = vld [vmem:[%s1703 + $0x10] sm:$0xff]
  %v3189 = vld [vmem:[%s1703 + $0x18] sm:$0xff]
  %v3190 = vmul.f32 %v3178, %v3186
  %v3191 = vmul.f32 %v3179, %v3187
  %v3192 = vmul.f32 %v3180, %v3188
  %v3193 = vmul.f32 %v3181, %v3189
  %v3194 = vld [vmem:[%s1712] sm:$0xff]
  %v3195 = vld [vmem:[%s1712 + $0x8] sm:$0xff]
  %v3196 = vld [vmem:[%s1712 + $0x10] sm:$0xff]
  %v3197 = vld [vmem:[%s1712 + $0x18] sm:$0xff]
  %v3198 = vadd.f32 %v3190, %v3194
  %v3199 = vadd.f32 %v3191, %v3195
  %v3200 = vadd.f32 %v3192, %v3196
  %v3201 = vadd.f32 %v3193, %v3197
  %3202 = vst.msk [vmem:[%s1721] sm:$0xff] %vm524, %v3198
  %3203 = vst.msk [vmem:[%s1721 + $0x8] sm:$0xff] %vm524, %v3199
  %3204 = vst.msk [vmem:[%s1721 + $0x10] sm:$0xff] %vm524, %v3200
  %3205 = vst.msk [vmem:[%s1721 + $0x18] sm:$0xff] %vm524, %v3201
  %v3206 = vld [vmem:[#allocation5] sm:$0xff]
  %v3207 = vld [vmem:[#allocation5 + $0x8] sm:$0xff]
  %v3208 = vld [vmem:[#allocation5 + $0x10] sm:$0xff]
  %v3209 = vld [vmem:[#allocation5 + $0x18] sm:$0xff]
  %v3210 = vld [vmem:[#allocation5 + $0x20] sm:$0xff]
  %v3211 = vld [vmem:[#allocation5 + $0x28] sm:$0xff]
  %v3212 = vld [vmem:[#allocation5 + $0x30] sm:$0xff]
  %v3213 = vld [vmem:[#allocation5 + $0x38] sm:$0xff]
  %v3214 = vld [vmem:[#allocation5 + $0x40] sm:$0xff]
  %v3215 = vld [vmem:[#allocation5 + $0x48] sm:$0xff]
  %v3216 = vld [vmem:[#allocation5 + $0x50] sm:$0xff]
  %v3217 = vld [vmem:[#allocation5 + $0x58] sm:$0xff]
  %v3218 = vld [vmem:[#allocation5 + $0x60] sm:$0xff]
  %v3219 = vld [vmem:[#allocation5 + $0x68] sm:$0xff]
  %v3220 = vld [vmem:[#allocation5 + $0x70] sm:$0xff]
  %v3221 = vld [vmem:[#allocation5 + $0x78] sm:$0xff]
  %v3222 = vld [vmem:[#allocation5 + $0x80] sm:$0xff]
  %v3223 = vld [vmem:[#allocation5 + $0x88] sm:$0xff]
  %v3224 = vld [vmem:[#allocation5 + $0x90] sm:$0xff]
  %v3225 = vld [vmem:[#allocation5 + $0x98] sm:$0xff]
  %v3226 = vld [vmem:[#allocation5 + $0xa0] sm:$0xff]
  %v3227 = vld [vmem:[#allocation5 + $0xa8] sm:$0xff]
  %v3228 = vld [vmem:[#allocation5 + $0xb0] sm:$0xff]
  %v3229 = vld [vmem:[#allocation5 + $0xb8] sm:$0xff]
  %v3230 = vld [vmem:[#allocation5 + $0xc0] sm:$0xff]
  %v3231 = vld [vmem:[#allocation5 + $0xc8] sm:$0xff]
  %v3232 = vld [vmem:[#allocation5 + $0xd0] sm:$0xff]
  %v3233 = vld [vmem:[#allocation5 + $0xd8] sm:$0xff]
  %v3234 = vld [vmem:[#allocation5 + $0xe0] sm:$0xff]
  %v3235 = vld [vmem:[#allocation5 + $0xe8] sm:$0xff]
  %v3236 = vld [vmem:[#allocation5 + $0xf0] sm:$0xff]
  %v3237 = vld [vmem:[#allocation5 + $0xf8] sm:$0xff]
  %v3238 = vsel %vm524, %v3206, 0.0
  %v3239 = vsel %vm524, %v3207, 0.0
  %v3240 = vadd.f32 %v3238, %v3239
  %v3241 = vrot.slane %v3240, 4
  %v3242 = vadd.f32 %v3240, %v3241
  %v3243 = vrot.slane %v3242, 2
  %v3244 = vadd.f32 %v3242, %v3243
  %v3245 = vrot.slane %v3244, 1
  %v3246 = vadd.f32 %v3244, %v3245
  %v3247 = vsel %vm524, %v3208, 0.0
  %v3248 = vsel %vm524, %v3209, 0.0
  %v3249 = vadd.f32 %v3247, %v3248
  %v3250 = vrot.slane %v3249, 4
  %v3251 = vadd.f32 %v3249, %v3250
  %v3252 = vrot.slane %v3251, 2
  %v3253 = vadd.f32 %v3251, %v3252
  %v3254 = vrot.slane %v3253, 1
  %v3255 = vadd.f32 %v3253, %v3254
  %v3256 = vsel %vm524, %v3210, 0.0
  %v3257 = vsel %vm524, %v3211, 0.0
  %v3258 = vadd.f32 %v3256, %v3257
  %v3259 = vrot.slane %v3258, 4
  %v3260 = vadd.f32 %v3258, %v3259
  %v3261 = vrot.slane %v3260, 2
  %v3262 = vadd.f32 %v3260, %v3261
  %v3263 = vrot.slane %v3262, 1
  %v3264 = vadd.f32 %v3262, %v3263
  %v3265 = vsel %vm524, %v3212, 0.0
  %v3266 = vsel %vm524, %v3213, 0.0
  %v3267 = vadd.f32 %v3265, %v3266
  %v3268 = vrot.slane %v3267, 4
  %v3269 = vadd.f32 %v3267, %v3268
  %v3270 = vrot.slane %v3269, 2
  %v3271 = vadd.f32 %v3269, %v3270
  %v3272 = vrot.slane %v3271, 1
  %v3273 = vadd.f32 %v3271, %v3272
  %v3274 = vsel %vm524, %v3214, 0.0
  %v3275 = vsel %vm524, %v3215, 0.0
  %v3276 = vadd.f32 %v3274, %v3275
  %v3277 = vrot.slane %v3276, 4
  %v3278 = vadd.f32 %v3276, %v3277
  %v3279 = vrot.slane %v3278, 2
  %v3280 = vadd.f32 %v3278, %v3279
  %v3281 = vrot.slane %v3280, 1
  %v3282 = vadd.f32 %v3280, %v3281
  %v3283 = vsel %vm524, %v3216, 0.0
  %v3284 = vsel %vm524, %v3217, 0.0
  %v3285 = vadd.f32 %v3283, %v3284
  %v3286 = vrot.slane %v3285, 4
  %v3287 = vadd.f32 %v3285, %v3286
  %v3288 = vrot.slane %v3287, 2
  %v3289 = vadd.f32 %v3287, %v3288
  %v3290 = vrot.slane %v3289, 1
  %v3291 = vadd.f32 %v3289, %v3290
  %v3292 = vsel %vm524, %v3218, 0.0
  %v3293 = vsel %vm524, %v3219, 0.0
  %v3294 = vadd.f32 %v3292, %v3293
  %v3295 = vrot.slane %v3294, 4
  %v3296 = vadd.f32 %v3294, %v3295
  %v3297 = vrot.slane %v3296, 2
  %v3298 = vadd.f32 %v3296, %v3297
  %v3299 = vrot.slane %v3298, 1
  %v3300 = vadd.f32 %v3298, %v3299
  %v3301 = vsel %vm524, %v3220, 0.0
  %v3302 = vsel %vm524, %v3221, 0.0
  %v3303 = vadd.f32 %v3301, %v3302
  %v3304 = vrot.slane %v3303, 4
  %v3305 = vadd.f32 %v3303, %v3304
  %v3306 = vrot.slane %v3305, 2
  %v3307 = vadd.f32 %v3305, %v3306
  %v3308 = vrot.slane %v3307, 1
  %v3309 = vadd.f32 %v3307, %v3308
  %v3310 = vsel %vm524, %v3222, 0.0
  %v3311 = vsel %vm524, %v3223, 0.0
  %v3312 = vadd.f32 %v3310, %v3311
  %v3313 = vrot.slane %v3312, 4
  %v3314 = vadd.f32 %v3312, %v3313
  %v3315 = vrot.slane %v3314, 2
  %v3316 = vadd.f32 %v3314, %v3315
  %v3317 = vrot.slane %v3316, 1
  %v3318 = vadd.f32 %v3316, %v3317
  %v3319 = vsel %vm524, %v3224, 0.0
  %v3320 = vsel %vm524, %v3225, 0.0
  %v3321 = vadd.f32 %v3319, %v3320
  %v3322 = vrot.slane %v3321, 4
  %v3323 = vadd.f32 %v3321, %v3322
  %v3324 = vrot.slane %v3323, 2
  %v3325 = vadd.f32 %v3323, %v3324
  %v3326 = vrot.slane %v3325, 1
  %v3327 = vadd.f32 %v3325, %v3326
  %v3328 = vsel %vm524, %v3226, 0.0
  %v3329 = vsel %vm524, %v3227, 0.0
  %v3330 = vadd.f32 %v3328, %v3329
  %v3331 = vrot.slane %v3330, 4
  %v3332 = vadd.f32 %v3330, %v3331
  %v3333 = vrot.slane %v3332, 2
  %v3334 = vadd.f32 %v3332, %v3333
  %v3335 = vrot.slane %v3334, 1
  %v3336 = vadd.f32 %v3334, %v3335
  %v3337 = vsel %vm524, %v3228, 0.0
  %v3338 = vsel %vm524, %v3229, 0.0
  %v3339 = vadd.f32 %v3337, %v3338
  %v3340 = vrot.slane %v3339, 4
  %v3341 = vadd.f32 %v3339, %v3340
  %v3342 = vrot.slane %v3341, 2
  %v3343 = vadd.f32 %v3341, %v3342
  %v3344 = vrot.slane %v3343, 1
  %v3345 = vadd.f32 %v3343, %v3344
  %v3346 = vsel %vm524, %v3230, 0.0
  %v3347 = vsel %vm524, %v3231, 0.0
  %v3348 = vadd.f32 %v3346, %v3347
  %v3349 = vrot.slane %v3348, 4
  %v3350 = vadd.f32 %v3348, %v3349
  %v3351 = vrot.slane %v3350, 2
  %v3352 = vadd.f32 %v3350, %v3351
  %v3353 = vrot.slane %v3352, 1
  %v3354 = vadd.f32 %v3352, %v3353
  %v3355 = vsel %vm524, %v3232, 0.0
  %v3356 = vsel %vm524, %v3233, 0.0
  %v3357 = vadd.f32 %v3355, %v3356
  %v3358 = vrot.slane %v3357, 4
  %v3359 = vadd.f32 %v3357, %v3358
  %v3360 = vrot.slane %v3359, 2
  %v3361 = vadd.f32 %v3359, %v3360
  %v3362 = vrot.slane %v3361, 1
  %v3363 = vadd.f32 %v3361, %v3362
  %v3364 = vsel %vm524, %v3234, 0.0
  %v3365 = vsel %vm524, %v3235, 0.0
  %v3366 = vadd.f32 %v3364, %v3365
  %v3367 = vrot.slane %v3366, 4
  %v3368 = vadd.f32 %v3366, %v3367
  %v3369 = vrot.slane %v3368, 2
  %v3370 = vadd.f32 %v3368, %v3369
  %v3371 = vrot.slane %v3370, 1
  %v3372 = vadd.f32 %v3370, %v3371
  %v3373 = vsel %vm524, %v3236, 0.0
  %v3374 = vsel %vm524, %v3237, 0.0
  %v3375 = vadd.f32 %v3373, %v3374
  %v3376 = vrot.slane %v3375, 4
  %v3377 = vadd.f32 %v3375, %v3376
  %v3378 = vrot.slane %v3377, 2
  %v3379 = vadd.f32 %v3377, %v3378
  %v3380 = vrot.slane %v3379, 1
  %v3381 = vadd.f32 %v3379, %v3380
  %s3382 = scalar_lea.vmem %s18, 1
  %v3383 = vld [vmem:[%s3382] sm:$0x1]
  %v3385 = vlaneseq
  %v3386 = vshrl.u32 %v3385, 7
  %v3387 = vsub.s32 0, %v3386
  %v3388 = vrot.slane %v3383, %v3387
  %v3390 = vmul.f32 %v3388, %v2375
  %v3391 = vmul.f32 %v3388, %v2376
  %v3394 = vrot.slane %v3390, 1
  %v3395 = vrot.slane %v3390, 2
  %v3396 = vrot.slane %v3390, 3
  %v3397 = vrot.slane %v3390, 4
  %v3398 = vrot.slane %v3390, 5
  %v3399 = vrot.slane %v3390, 6
  %v3400 = vrot.slane %v3390, 7
  %v3401 = vrot.slane %v3391, 1
  %v3402 = vrot.slane %v3391, 2
  %v3403 = vrot.slane %v3391, 3
  %v3404 = vrot.slane %v3391, 4
  %v3405 = vrot.slane %v3391, 5
  %v3406 = vrot.slane %v3391, 6
  %v3407 = vrot.slane %v3391, 7
  %v3424 = vadd.f32 %v3246, %v3390
  %v3425 = vadd.f32 %v3255, %v3394
  %v3426 = vadd.f32 %v3264, %v3395
  %v3427 = vadd.f32 %v3273, %v3396
  %v3428 = vadd.f32 %v3282, %v3397
  %v3429 = vadd.f32 %v3291, %v3398
  %v3430 = vadd.f32 %v3300, %v3399
  %v3431 = vadd.f32 %v3309, %v3400
  %v3432 = vadd.f32 %v3318, %v3391
  %v3433 = vadd.f32 %v3327, %v3401
  %v3434 = vadd.f32 %v3336, %v3402
  %v3435 = vadd.f32 %v3345, %v3403
  %v3436 = vadd.f32 %v3354, %v3404
  %v3437 = vadd.f32 %v3363, %v3405
  %v3438 = vadd.f32 %v3372, %v3406
  %v3439 = vadd.f32 %v3381, %v3407
  %v3440 = vxor.u32 %v2305, 2147483648
  %v3441 = vxor.u32 %v2310, 2147483648
  %v3442 = vmul.f32 %v3440, 1.442695
  %v3443 = vpow.pop %v3442
  %v3444 = vmul.f32 %v3441, 1.442695
  %v3445 = vpow.pop %v3444
  %v3446 = vadd.f32 %v3443, 1.0
  %v3447 = vadd.f32 %v3445, 1.0
  %v3448 = vrcp.pop %v3446
  %v3449 = vmul.f32 1.0, %v3448
  %v3450 = vrcp.pop %v3447
  %v3451 = vmul.f32 1.0, %v3450
  %v3452 = vmul.f32 %v2305, %v3449
  %v3453 = vmul.f32 %v2310, %v3451
  %v3456 = vrot.slane %v3452, 1
  %v3457 = vrot.slane %v3452, 2
  %v3458 = vrot.slane %v3452, 3
  %v3459 = vrot.slane %v3452, 4
  %v3460 = vrot.slane %v3452, 5
  %v3461 = vrot.slane %v3452, 6
  %v3462 = vrot.slane %v3452, 7
  %v3463 = vrot.slane %v3453, 1
  %v3464 = vrot.slane %v3453, 2
  %v3465 = vrot.slane %v3453, 3
  %v3466 = vrot.slane %v3453, 4
  %v3467 = vrot.slane %v3453, 5
  %v3468 = vrot.slane %v3453, 6
  %v3469 = vrot.slane %v3453, 7
  %3470 = vrot.lane.b32.xlu0 %v3452, 64
  %v3471 = vpop.permute.xlu0 %3470
  %3472 = vrot.lane.b32.xlu0 %v3456, 64
  %v3473 = vpop.permute.xlu0 %3472
  %3474 = vrot.lane.b32.xlu0 %v3457, 64
  %v3475 = vpop.permute.xlu0 %3474
  %3476 = vrot.lane.b32.xlu0 %v3458, 64
  %v3477 = vpop.permute.xlu0 %3476
  %3478 = vrot.lane.b32.xlu0 %v3459, 64
  %v3479 = vpop.permute.xlu0 %3478
  %3480 = vrot.lane.b32.xlu0 %v3460, 64
  %v3481 = vpop.permute.xlu0 %3480
  %3482 = vrot.lane.b32.xlu0 %v3461, 64
  %v3483 = vpop.permute.xlu0 %3482
  %3484 = vrot.lane.b32.xlu0 %v3462, 64
  %v3485 = vpop.permute.xlu0 %3484
  %3486 = vrot.lane.b32.xlu0 %v3453, 64
  %v3487 = vpop.permute.xlu0 %3486
  %3488 = vrot.lane.b32.xlu0 %v3463, 64
  %v3489 = vpop.permute.xlu0 %3488
  %3490 = vrot.lane.b32.xlu0 %v3464, 64
  %v3491 = vpop.permute.xlu0 %3490
  %3492 = vrot.lane.b32.xlu0 %v3465, 64
  %v3493 = vpop.permute.xlu0 %3492
  %3494 = vrot.lane.b32.xlu0 %v3466, 64
  %v3495 = vpop.permute.xlu0 %3494
  %3496 = vrot.lane.b32.xlu0 %v3467, 64
  %v3497 = vpop.permute.xlu0 %3496
  %3498 = vrot.lane.b32.xlu0 %v3468, 64
  %v3499 = vpop.permute.xlu0 %3498
  %3500 = vrot.lane.b32.xlu0 %v3469, 64
  %v3501 = vpop.permute.xlu0 %3500
  %v3518 = vmul.f32 %v3424, %v3471
  %v3519 = vmul.f32 %v3425, %v3473
  %v3520 = vmul.f32 %v3426, %v3475
  %v3521 = vmul.f32 %v3427, %v3477
  %v3522 = vmul.f32 %v3428, %v3479
  %v3523 = vmul.f32 %v3429, %v3481
  %v3524 = vmul.f32 %v3430, %v3483
  %v3525 = vmul.f32 %v3431, %v3485
  %v3526 = vmul.f32 %v3432, %v3487
  %v3527 = vmul.f32 %v3433, %v3489
  %v3528 = vmul.f32 %v3434, %v3491
  %v3529 = vmul.f32 %v3435, %v3493
  %v3530 = vmul.f32 %v3436, %v3495
  %v3531 = vmul.f32 %v3437, %v3497
  %v3532 = vmul.f32 %v3438, %v3499
  %v3533 = vmul.f32 %v3439, %v3501
  %s3534 = scalar_lea.vmem %s19, 64
  %v3535 = vld [vmem:[%s3534] sm:$0xff]
  %v3536 = vld [vmem:[%s3534 + $0x8] sm:$0xff]
  %v3537 = vld [vmem:[%s3534 + $0x10] sm:$0xff]
  %v3538 = vld [vmem:[%s3534 + $0x18] sm:$0xff]
  %v3539 = vld [vmem:[%s3534 + $0x20] sm:$0xff]
  %v3540 = vld [vmem:[%s3534 + $0x28] sm:$0xff]
  %v3541 = vld [vmem:[%s3534 + $0x30] sm:$0xff]
  %v3542 = vld [vmem:[%s3534 + $0x38] sm:$0xff]
  %v3559 = vrot.slane %v3519, 7
  %v3560 = vsel %vm2078, %v3559, %v3518
  %v3561 = vrot.slane %v3520, 6
  %v3562 = vsel %vm2081, %v3561, %v3560
  %v3563 = vrot.slane %v3521, 5
  %v3564 = vsel %vm2084, %v3563, %v3562
  %v3565 = vrot.slane %v3522, 4
  %v3566 = vsel %vm2087, %v3565, %v3564
  %v3567 = vrot.slane %v3523, 3
  %v3568 = vsel %vm2090, %v3567, %v3566
  %v3569 = vrot.slane %v3524, 2
  %v3570 = vsel %vm2093, %v3569, %v3568
  %v3571 = vrot.slane %v3525, 1
  %v3572 = vsel %vm2096, %v3571, %v3570
  %v3573 = vrot.slane %v3527, 7
  %v3574 = vsel %vm2078, %v3573, %v3526
  %v3575 = vrot.slane %v3528, 6
  %v3576 = vsel %vm2081, %v3575, %v3574
  %v3577 = vrot.slane %v3529, 5
  %v3578 = vsel %vm2084, %v3577, %v3576
  %v3579 = vrot.slane %v3530, 4
  %v3580 = vsel %vm2087, %v3579, %v3578
  %v3581 = vrot.slane %v3531, 3
  %v3582 = vsel %vm2090, %v3581, %v3580
  %v3583 = vrot.slane %v3532, 2
  %v3584 = vsel %vm2093, %v3583, %v3582
  %v3585 = vrot.slane %v3533, 1
  %v3586 = vsel %vm2096, %v3585, %v3584
  %v3587 = vsel %vm524, %v3572, 0
  %v3589 = vsel %vm524, %v3586, 0
  %3591 = vmatprep.subr.mxu0 0.0
  %3592 = vmatpush1.msra.mxu0 0.0
  %3593 = vmatprep.subr.mxu0 0.0
  %3594 = vmatpush1.msra.mxu0 0.0
  %3595 = vmatprep.subr.mxu0 0.0
  %3596 = vmatpush1.msra.mxu0 0.0
  %3597 = vmatprep.subr.mxu0 0.0
  %3598 = vmatpush1.msra.mxu0 0.0
  %3599 = vmatprep.subr.mxu0 0.0
  %3600 = vmatpush1.msra.mxu0 0.0
  %3601 = vmatprep.subr.mxu0 0.0
  %3602 = vmatpush1.msra.mxu0 0.0
  %3603 = vmatprep.subr.mxu0 0.0
  %3604 = vmatpush1.msra.mxu0 0.0
  %3605 = vmatprep.subr.mxu0 0.0
  %3606 = vmatpush1.msra.mxu0 0.0
  %3607 = vmatprep.subr.mxu0 0.0
  %3608 = vmatpush1.msra.mxu0 %v3542
  %3609 = vmatprep.subr.mxu0 0.0
  %3610 = vmatpush1.msra.mxu0 %v3541
  %3611 = vmatprep.subr.mxu0 0.0
  %3612 = vmatpush1.msra.mxu0 %v3540
  %3613 = vmatprep.subr.mxu0 0.0
  %3614 = vmatpush1.msra.mxu0 %v3539
  %3615 = vmatprep.subr.mxu0 0.0
  %3616 = vmatpush1.msra.mxu0 %v3538
  %3617 = vmatprep.subr.mxu0 0.0
  %3618 = vmatpush1.msra.mxu0 %v3537
  %3619 = vmatprep.subr.mxu0 0.0
  %3620 = vmatpush1.msra.mxu0 %v3536
  %3621 = vmatprep.subr.mxu0 0.0
  %3622 = vmatpush1.msra.mxu0 %v3535
  %3623 = vmatprep.subr.mxu0 0.0
  %3624 = vmatpush2.msra.mxu0 0.0
  %3625 = vmatprep.subr.mxu0 0.0
  %3626 = vmatpush2.msra.mxu0 0.0
  %3627 = vmatprep.subr.mxu0 0.0
  %3628 = vmatpush2.msra.mxu0 0.0
  %3629 = vmatprep.subr.mxu0 0.0
  %3630 = vmatpush2.msra.mxu0 0.0
  %3631 = vmatprep.subr.mxu0 0.0
  %3632 = vmatpush2.msra.mxu0 0.0
  %3633 = vmatprep.subr.mxu0 0.0
  %3634 = vmatpush2.msra.mxu0 0.0
  %3635 = vmatprep.subr.mxu0 0.0
  %3636 = vmatpush2.msra.mxu0 0.0
  %3637 = vmatprep.subr.mxu0 0.0
  %3638 = vmatpush2.msra.mxu0 0.0
  %3639 = vmatprep.subr.mxu0 0.0
  %3640 = vmatpush2.msra.mxu0 0.0
  %3641 = vmatprep.subr.mxu0 0.0
  %3642 = vmatpush2.msra.mxu0 0.0
  %3643 = vmatprep.subr.mxu0 0.0
  %3644 = vmatpush2.msra.mxu0 0.0
  %3645 = vmatprep.subr.mxu0 0.0
  %3646 = vmatpush2.msra.mxu0 0.0
  %3647 = vmatprep.subr.mxu0 0.0
  %3648 = vmatpush2.msra.mxu0 0.0
  %3649 = vmatprep.subr.mxu0 0.0
  %3650 = vmatpush2.msra.mxu0 0.0
  %3651 = vmatprep.subr.mxu0 0.0
  %3652 = vmatpush2.msra.mxu0 0.0
  %3653 = vmatprep.subr.mxu0 0.0
  %3654 = vmatpush2.msra.mxu0 0.0
  %3655 = vmatprep.mubr.f32.mxu0 0.0
  %3656 = vmatmul.mubr.f32.gmra.mxu0 %v3587
  %v3657 = vpop.f32.mrf.mxu0
  %v3658 = vadd.f32 0.0, %v3657
  %v3659 = vpop.f32.mrf.mxu0
  %3660 = vmatprep.mubr.f32.mxu0 0.0
  %3661 = vmatmul.mubr.f32.gmra.mxu0 %v3589
  %v3662 = vpop.f32.mrf.mxu0
  %v3663 = vadd.f32 0.0, %v3662
  %v3664 = vpop.f32.mrf.mxu0
  %3665 = vdwg.mxu0
  %v3666 = vadd.f32 %v2191, %v3658
  %v3667 = vadd.f32 %v2192, %v3663
  %v3670 = vcombine.high %v3666, %v3666
  %v3672 = vunpack.c.l.s4 1983009808
  %v3673 = vunpack.c.0.s8 %v3672
  %v3674 = vlaneseq
  %v3675 = vshrl.u32 %v3674, 7
  %v3676 = vsub.s32 %v3673, %v3675
  %v3677 = vrot.slane %v3666, %v3676
  %v3679 = vunpack.c.l.s4 1983009808
  %v3680 = vunpack.c.0.s8 %v3679
  %v3681 = vlaneseq
  %v3682 = vshrl.u32 %v3681, 7
  %v3683 = vsub.s32 %v3680, %v3682
  %v3684 = vrot.slane %v3670, %v3683
  %v3685 = vcombine.high %v3677, %v3677
  %v3686 = vcombine.high %v3684, %v3684
  %v3687 = vcombine.high %v3667, %v3667
  %v3689 = vunpack.c.l.s4 1983009808
  %v3690 = vunpack.c.0.s8 %v3689
  %v3691 = vlaneseq
  %v3692 = vshrl.u32 %v3691, 7
  %v3693 = vsub.s32 %v3690, %v3692
  %v3694 = vrot.slane %v3667, %v3693
  %v3696 = vunpack.c.l.s4 1983009808
  %v3697 = vunpack.c.0.s8 %v3696
  %v3698 = vlaneseq
  %v3699 = vshrl.u32 %v3698, 7
  %v3700 = vsub.s32 %v3697, %v3699
  %v3701 = vrot.slane %v3687, %v3700
  %v3702 = vcombine.high %v3694, %v3694
  %v3703 = vcombine.high %v3701, %v3701
  %vm3712 = vcmask 254976
  %v3713 = vsel %vm3712, %v3677, 0.0
  %v3714 = vsel %vm3712, %v3685, 0.0
  %v3715 = vadd.f32 %v3713, %v3714
  %v3716 = vsel %vm3712, %v3684, 0.0
  %v3717 = vadd.f32 %v3715, %v3716
  %v3718 = vsel %vm3712, %v3686, 0.0
  %v3719 = vadd.f32 %v3717, %v3718
  %v3720 = vsel %vm3712, %v3694, 0.0
  %v3721 = vadd.f32 %v3719, %v3720
  %v3722 = vsel %vm3712, %v3702, 0.0
  %v3723 = vadd.f32 %v3721, %v3722
  %v3724 = vsel %vm3712, %v3701, 0.0
  %v3725 = vadd.f32 %v3723, %v3724
  %v3726 = vsel %vm3712, %v3703, 0.0
  %v3727 = vadd.f32 %v3725, %v3726
  %v3728 = vrcp.pop 8.0
  %v3729 = vmul.f32 %v3727, %v3728
  %v3730 = vld [vmem:[%s20] sm:$0xff]
  %v3731 = vld [vmem:[%s20 + $0x8] sm:$0xff]
  %v3732 = vld [vmem:[%s20 + $0x10] sm:$0xff]
  %v3733 = vld [vmem:[%s20 + $0x18] sm:$0xff]
  %v3734 = vld [vmem:[%s20 + $0x20] sm:$0xff]
  %v3735 = vld [vmem:[%s20 + $0x28] sm:$0xff]
  %v3736 = vld [vmem:[%s20 + $0x30] sm:$0xff]
  %v3737 = vld [vmem:[%s20 + $0x38] sm:$0xff]
  %v3738 = vld [vmem:[%s21] sm:$0x3]
  %v3740 = vlaneseq
  %v3741 = vshrl.u32 %v3740, 7
  %v3742 = vsub.s32 0, %v3741
  %v3743 = vrot.slane %v3738, %v3742
  %v3744 = vlaneseq
  %v3745 = vshrl.u32 %v3744, 7
  %v3746 = vsub.s32 1, %v3745
  %v3747 = vrot.slane %v3738, %v3746
  %v3751 = vsel %vm309, %v3729, 0
  %3753 = vmatprep.subr.mxu0 0.0
  %3754 = vmatpush1.msra.mxu0 0.0
  %3755 = vmatprep.subr.mxu0 0.0
  %3756 = vmatpush1.msra.mxu0 0.0
  %3757 = vmatprep.subr.mxu0 0.0
  %3758 = vmatpush1.msra.mxu0 0.0
  %3759 = vmatprep.subr.mxu0 0.0
  %3760 = vmatpush1.msra.mxu0 0.0
  %3761 = vmatprep.subr.mxu0 0.0
  %3762 = vmatpush1.msra.mxu0 0.0
  %3763 = vmatprep.subr.mxu0 0.0
  %3764 = vmatpush1.msra.mxu0 0.0
  %3765 = vmatprep.subr.mxu0 0.0
  %3766 = vmatpush1.msra.mxu0 0.0
  %3767 = vmatprep.subr.mxu0 0.0
  %3768 = vmatpush1.msra.mxu0 0.0
  %3769 = vmatprep.subr.mxu0 0.0
  %3770 = vmatpush1.msra.mxu0 0.0
  %3771 = vmatprep.subr.mxu0 0.0
  %3772 = vmatpush1.msra.mxu0 0.0
  %3773 = vmatprep.subr.mxu0 0.0
  %3774 = vmatpush1.msra.mxu0 0.0
  %3775 = vmatprep.subr.mxu0 0.0
  %3776 = vmatpush1.msra.mxu0 0.0
  %3777 = vmatprep.subr.mxu0 %v3737
  %3778 = vmatpush1.msra.mxu0 %v3736
  %3779 = vmatprep.subr.mxu0 %v3735
  %3780 = vmatpush1.msra.mxu0 %v3734
  %3781 = vmatprep.subr.mxu0 %v3733
  %3782 = vmatpush1.msra.mxu0 %v3732
  %3783 = vmatprep.subr.mxu0 %v3731
  %3784 = vmatpush1.msra.mxu0 %v3730
  %3785 = vmatprep.subr.mxu0 0.0
  %3786 = vmatpush2.msra.mxu0 0.0
  %3787 = vmatprep.subr.mxu0 0.0
  %3788 = vmatpush2.msra.mxu0 0.0
  %3789 = vmatprep.subr.mxu0 0.0
  %3790 = vmatpush2.msra.mxu0 0.0
  %3791 = vmatprep.subr.mxu0 0.0
  %3792 = vmatpush2.msra.mxu0 0.0
  %3793 = vmatprep.subr.mxu0 0.0
  %3794 = vmatpush2.msra.mxu0 0.0
  %3795 = vmatprep.subr.mxu0 0.0
  %3796 = vmatpush2.msra.mxu0 0.0
  %3797 = vmatprep.subr.mxu0 0.0
  %3798 = vmatpush2.msra.mxu0 0.0
  %3799 = vmatprep.subr.mxu0 0.0
  %3800 = vmatpush2.msra.mxu0 0.0
  %3801 = vmatprep.subr.mxu0 0.0
  %3802 = vmatpush2.msra.mxu0 0.0
  %3803 = vmatprep.subr.mxu0 0.0
  %3804 = vmatpush2.msra.mxu0 0.0
  %3805 = vmatprep.subr.mxu0 0.0
  %3806 = vmatpush2.msra.mxu0 0.0
  %3807 = vmatprep.subr.mxu0 0.0
  %3808 = vmatpush2.msra.mxu0 0.0
  %3809 = vmatprep.subr.mxu0 0.0
  %3810 = vmatpush2.msra.mxu0 0.0
  %3811 = vmatprep.subr.mxu0 0.0
  %3812 = vmatpush2.msra.mxu0 0.0
  %3813 = vmatprep.subr.mxu0 0.0
  %3814 = vmatpush2.msra.mxu0 0.0
  %3815 = vmatprep.subr.mxu0 0.0
  %3816 = vmatpush2.msra.mxu0 0.0
  %3817 = vmatprep.mubr.f32.mxu0 0.0
  %3818 = vmatmul.mubr.f32.gmra.mxu0 %v3751
  %v3819 = vpop.f32.mrf.mxu0
  %v3820 = vadd.f32 %v3743, %v3819
  %v3821 = vpop.f32.mrf.mxu0
  %v3822 = vadd.f32 %v3747, %v3821
  %3823 = vdwg.mxu0
  %v3826 = vcombine.low %v3820, %v3822
  %v3828 = vunpack.c.l.s4 1983009808
  %v3829 = vunpack.c.0.s8 %v3828
  %v3830 = vlaneseq
  %v3831 = vshrl.u32 %v3830, 7
  %v3832 = vsub.s32 %v3829, %v3831
  %v3833 = vrot.slane %v3826, %v3832
  %vm3835 = vcmask 1041408
  %vm3836 = vcmask 519170
  %vm3837 = vmor %vm3836, %vm3835
  %3838 = vst.msk [vmem:[%s22] sm:$0xf] %vm3837, %v3833
  // Predicated region
  $region90: #{diffusion_forward.1} parent=0 // pred_check
    _
  $region91: #{diffusion_forward.1} parent=0 // pred_check_branch
    %3840 = sbr.rel (0) target = $region93
  $region92: #{diffusion_forward.1} parent=0 // pred_region
    _
  $region93: #{diffusion_forward.1} parent=0 // pred_fallthru
    _
  // Predicated region
  $region94: #{diffusion_forward.1} parent=0 // pred_check
    _
  $region95: #{diffusion_forward.1} parent=0 // pred_check_branch
    %3842 = sbr.rel (0) target = $region97
  $region96: #{diffusion_forward.1} parent=0 // pred_region
    _
  $region97: #{diffusion_forward.1} parent=0 // pred_fallthru
    _

</llo_original>
